<compile_context>
chip_gen: v7x
topology: tpu7x:2x2x1
jax: 0.10.0
libtpu: 0.0.40
codegen_flags: <defaults>
</compile_context>

<pallas_src>
import jax
import jax.numpy as jnp
from jax import lax
from jax.experimental import pallas as pl
from jax.experimental.pallas import tpu as pltpu

K1, P1 = 64, 32       # firstconv kernel width / padding
K3, P3 = 16, 8        # separableConv kernel width / padding
POOL1, POOL2 = 4, 8   # AvgPool widths
BN_EPS = 1e-5
N_F1 = 8              # firstconv output channels (= depthwise groups)
N_F2 = 16             # depthwise / separable channels


def _elu(x):
    # ELU(alpha=1); clamp arg of exp so the unselected branch never overflows.
    return jnp.where(x > 0, x, jnp.exp(jnp.minimum(x, 0.0)) - 1.0)


# ----------------------------------------------------------------------------
# Pallas kernel: full EEGNet forward for B_TILE batch samples per grid step.
# Activation rows are b-major: row r = b*16 + conv_channel.
# ----------------------------------------------------------------------------
def eegnet_kernel(x_ref, wdbd_ref, bandcat_ref, gmask_ref, c2_ref, p1m_ref,
                  w3bd_ref, s3_ref, b3_ref, p2c_ref, bigmask_ref, foldc_ref,
                  sumb_ref, bl_ref, out_ref):
    bt = x_ref.shape[1]
    chans = x_ref.shape[2]
    wpad = x_ref.shape[3]
    w1p = bandcat_ref.shape[1] // N_F1      # 128-aligned per-group stride
    w3in = p1m_ref.shape[1]                 # pooled + zero-padded width
    w3out = w3in - K3 + 1                   # separable conv output width

    # (B_TILE, Chans, wpad) -> (B_TILE*Chans, wpad): batch stacked into rows.
    xpf = x_ref[0].reshape(bt * chans, wpad)

    # Stage A: depthwiseConv spatial part (collapse EEG channels) for every
    # sample at once via a block-diagonal weight.          -> (R, wpad)
    z = jnp.dot(wdbd_ref[...], xpf, preferred_element_type=jnp.float32)

    # Stage B: firstconv time convolution for all 8 filter groups in ONE
    # banded matmul, then a one-hot per-row group selection.  BN1*BN2 scales
    # are folded into gmask, all shifts into c2.            -> (R, w1p)
    y_all = jnp.dot(z, bandcat_ref[...], preferred_element_type=jnp.float32)
    y2 = gmask_ref[:, 0:1] * y_all[:, 0:w1p]
    for g in range(1, N_F1):
        y2 = y2 + gmask_ref[:, g:g + 1] * y_all[:, g * w1p:(g + 1) * w1p]
    y2 = _elu(y2 + c2_ref[...])

    # AvgPool2d((1,4)) fused with the (0,8) zero pad of separableConv.
    y2p = jnp.dot(y2, p1m_ref[...], preferred_element_type=jnp.float32)  # (R, w3in)

    # separableConv as a single im2col matmul: contraction over (tap, row).
    s_big = jnp.concatenate([y2p[:, k:k + w3out] for k in range(K3)], axis=0)
    y3 = jnp.dot(w3bd_ref[...], s_big, preferred_element_type=jnp.float32)
    y3 = _elu(y3 * s3_ref[...] + b3_ref[...])                # BN3 + ELU, (R, w3out)

    # AvgPool2d((1,8)) + flatten + Linear fused:
    #   p2c folds the pooling into the classifier weight (expanded per conv
    #   channel), bigmask/foldc select each row's own channel block, sumb sums
    #   the 16 rows belonging to each sample.
    pl_all = jnp.dot(y3, p2c_ref[...], preferred_element_type=jnp.float32)     # (R, 16*nc)
    row_logits = jnp.dot(pl_all * bigmask_ref[...], foldc_ref[...],
                         preferred_element_type=jnp.float32)                   # (R, nc)
    logits = jnp.dot(sumb_ref[...], row_logits,
                     preferred_element_type=jnp.float32) + bl_ref[...]         # (BT, nc)
    out_ref[0] = logits


# ----------------------------------------------------------------------------
# Parameter init (deterministic, synthetic) — matches nn.Module shapes.
# ----------------------------------------------------------------------------
def init_params(key, num_classes, chans, samples):
    ks = jax.random.split(key, 17)
    p = {}
    p['w1'] = 0.1 * jax.random.normal(ks[0], (8, 1, 1, K1), jnp.float32)
    p['g1'] = 0.5 + jax.random.uniform(ks[1], (8,), jnp.float32)
    p['be1'] = 0.1 * jax.random.normal(ks[2], (8,), jnp.float32)
    p['rm1'] = 0.1 * jax.random.normal(ks[3], (8,), jnp.float32)
    p['rv1'] = 0.5 + jax.random.uniform(ks[4], (8,), jnp.float32)
    p['wd'] = 0.2 * jax.random.normal(ks[5], (16, 1, chans, 1), jnp.float32)
    p['g2'] = 0.5 + jax.random.uniform(ks[6], (16,), jnp.float32)
    p['be2'] = 0.1 * jax.random.normal(ks[7], (16,), jnp.float32)
    p['rm2'] = 0.1 * jax.random.normal(ks[8], (16,), jnp.float32)
    p['rv2'] = 0.5 + jax.random.uniform(ks[9], (16,), jnp.float32)
    p['w3'] = 0.1 * jax.random.normal(ks[10], (16, 16, 1, K3), jnp.float32)
    p['g3'] = 0.5 + jax.random.uniform(ks[11], (16,), jnp.float32)
    p['be3'] = 0.1 * jax.random.normal(ks[12], (16,), jnp.float32)
    p['rm3'] = 0.1 * jax.random.normal(ks[13], (16,), jnp.float32)
    p['rv3'] = 0.5 + jax.random.uniform(ks[14], (16,), jnp.float32)
    feat = 16 * (samples // 32)
    p['wl'] = 0.1 * jax.random.normal(ks[15], (num_classes, feat), jnp.float32)
    p['bl'] = 0.1 * jax.random.normal(ks[16], (num_classes,), jnp.float32)
    return p


def _bn_fold(g, be, rm, rv):
    scale = g / jnp.sqrt(rv + BN_EPS)
    return scale, be - rm * scale


# ----------------------------------------------------------------------------
# Wrapper: build matmul-form operands (layout plumbing) and launch the kernel.
# ----------------------------------------------------------------------------
def build_kernel_operands(p, chans, samples, num_classes, b_tile):
    wpad = samples + 2 * P1
    w1len = wpad - K1 + 1                 # = samples + 1
    w1p = pl.cdiv(w1len, 128) * 128       # 128-lane aligned group stride
    wp1 = w1len // POOL1
    w3in = wp1 + 2 * P3
    w3out = w3in - K3 + 1
    wp2 = w3out // POOL2
    rows = b_tile * N_F2
    f32 = jnp.float32

    s1, sh1 = _bn_fold(p['g1'], p['be1'], p['rm1'], p['rv1'])   # (8,)
    s2, sh2 = _bn_fold(p['g2'], p['be2'], p['rm2'], p['rv2'])   # (16,)
    s3, sh3 = _bn_fold(p['g3'], p['be3'], p['rm3'], p['rv3'])   # (16,)

    eye_b = jnp.eye(b_tile, dtype=f32)

    # Block-diagonal depthwise spatial weight: rows (b, o), cols (b, h).
    wd2 = p['wd'][:, 0, :, 0].astype(f32)                       # (16, Chans)
    wdbd = jnp.einsum('ab,oh->aobh', eye_b, wd2).reshape(rows, b_tile * chans)

    # Group-expanded banded firstconv matrix, one 128-aligned column block per
    # filter group: bandcat[t', g*w1p + t] = w1[g, t'-t] for 0 <= t'-t < K1.
    # TODO(synk): O(samples^2) operand; for very long EEG records this should
    # become a time-tiled / tap-sum formulation to respect v7x VMEM.
    w1f = p['w1'][:, 0, 0, :].astype(f32)                       # (8, K1)
    d = jnp.arange(wpad)[:, None] - jnp.arange(w1len)[None, :]
    band = jnp.where((d >= 0) & (d < K1), w1f[:, jnp.clip(d, 0, K1 - 1)], 0.0)
    band = jnp.pad(band, ((0, 0), (0, 0), (0, w1p - w1len)))    # (8, wpad, w1p)
    bandcat = jnp.transpose(band, (1, 0, 2)).reshape(wpad, N_F1 * w1p)

    # One-hot group selector with BN1*BN2 scale folded; all shifts in c2.
    o = jnp.arange(N_F2)
    grp = o // 2                                                # group of each conv chan
    gmask16 = jnp.where(jnp.arange(N_F1)[None, :] == grp[:, None],
                        (s2 * s1[grp])[:, None], 0.0).astype(f32)   # (16, 8)
    gmask = jnp.tile(gmask16, (b_tile, 1))                          # (R, 8)
    wsum = wd2.sum(axis=1)                                          # (16,)
    c2 = jnp.tile(s2 * sh1[grp] * wsum + sh2, (b_tile,))[:, None].astype(f32)

    # AvgPool(1,4) fused with the (0,8) zero padding of the separable conv.
    tt = jnp.arange(w1p)[:, None]
    jj = jnp.arange(w3in)[None, :] - P3
    p1m = jnp.where((jj >= 0) & (jj < wp1) & (tt // POOL1 == jj),
                    1.0 / POOL1, 0.0).astype(f32)                   # (w1p, w3in)

    # separableConv im2col weight, columns ordered (tap k, b, c_in).
    w3t = p['w3'][:, :, 0, :].astype(f32)                           # (co, ci, k)
    w3bd = jnp.einsum('ab,oik->aokbi', eye_b, w3t).reshape(rows, K3 * rows)

    s3row = jnp.tile(s3, (b_tile,))[:, None].astype(f32)            # (R, 1)
    b3row = jnp.tile(sh3, (b_tile,))[:, None].astype(f32)           # (R, 1)

    # AvgPool(1,8) folded into the classifier weight, expanded per channel:
    # p2c[t, co*nc + n] = sum_p pool2[t, p] * wl[n, co*wp2 + p].
    pool2 = jnp.where(jnp.arange(w3out)[:, None] // POOL2 ==
                      jnp.arange(wp2)[None, :], 1.0 / POOL2, 0.0).astype(f32)
    wl3 = p['wl'].reshape(num_classes, N_F2, wp2).astype(f32)       # (n, co, p)
    p2c = jnp.einsum('tp,nop->ton', pool2, wl3).reshape(w3out,
                                                        N_F2 * num_classes)

    # Per-row channel-block selector / column folder / per-sample row summer.
    bigmask = jnp.tile(
        jnp.repeat(jnp.eye(N_F2, dtype=f32), num_classes, axis=1),
        (b_tile, 1))                                                # (R, 16*nc)
    foldc = jnp.tile(jnp.eye(num_classes, dtype=f32), (N_F2, 1))    # (16*nc, nc)
    sumb = jnp.repeat(eye_b, N_F2, axis=1)                          # (BT, R)
    bl2 = p['bl'][None, :].astype(f32)

    return (wdbd, bandcat, gmask, c2, p1m, w3bd, s3row, b3row, p2c, bigmask,
            foldc, sumb, bl2)


def eegnet_pallas(x, params, *, chans, samples, num_classes, b_tile=4):
    B = x.shape[0]
    n_tiles = pl.cdiv(B, b_tile)
    b_padded = n_tiles * b_tile
    wpad = samples + 2 * P1

    xpad = jnp.pad(x.astype(jnp.float32),
                   ((0, b_padded - B), (0, 0), (P1, P1)))
    xarr = xpad.reshape(n_tiles, b_tile, chans, wpad)

    ops = build_kernel_operands(params, chans, samples, num_classes, b_tile)

    def const_map(nd):
        return lambda i: (0,) * nd

    in_specs = [pl.BlockSpec((1, b_tile, chans, wpad), lambda i: (i, 0, 0, 0))]
    for op in ops:
        # Constant weight operands: full-array blocks, block index never moves
        # so Pallas skips the re-DMA after the first grid step.
        in_specs.append(pl.BlockSpec(op.shape, const_map(op.ndim)))
    out_spec = pl.BlockSpec((1, b_tile, num_classes), lambda i: (i, 0, 0))

    out = pl.pallas_call(
        eegnet_kernel,
        grid=(n_tiles,),
        in_specs=in_specs,
        out_specs=out_spec,
        out_shape=jax.ShapeDtypeStruct((n_tiles, b_tile, num_classes),
                                       jnp.float32),
        compiler_params=pltpu.CompilerParams(
            dimension_semantics=("parallel",),
            vmem_limit_bytes=32 * 1024 * 1024),
    )(xarr, *ops)
    return out.reshape(b_padded, num_classes)[:B]


# ----------------------------------------------------------------------------
# Pure-JAX reference (lax.conv), used only to sanity-check the kernel.
# ----------------------------------------------------------------------------
def _avgpool_w(h, k):
    B, C, H, W = h.shape
    Wt = (W // k) * k
    return h[..., :Wt].reshape(B, C, H, W // k, k).mean(-1)


def eegnet_ref(x, p):
    dn = ('NCHW', 'OIHW', 'NCHW')
    scale1, shift1 = _bn_fold(p['g1'], p['be1'], p['rm1'], p['rv1'])
    scale2, shift2 = _bn_fold(p['g2'], p['be2'], p['rm2'], p['rv2'])
    scale3, shift3 = _bn_fold(p['g3'], p['be3'], p['rm3'], p['rv3'])
    h = x[:, None, :, :]
    h = lax.conv_general_dilated(h, p['w1'], (1, 1), ((0, 0), (P1, P1)),
                                 dimension_numbers=dn,
                                 precision=lax.Precision.HIGHEST)
    h = h * scale1[None, :, None, None] + shift1[None, :, None, None]
    h = lax.conv_general_dilated(h, p['wd'], (1, 1), 'VALID',
                                 dimension_numbers=dn, feature_group_count=8,
                                 precision=lax.Precision.HIGHEST)
    h = h * scale2[None, :, None, None] + shift2[None, :, None, None]
    h = _elu(h)
    h = _avgpool_w(h, POOL1)
    h = lax.conv_general_dilated(h, p['w3'], (1, 1), ((0, 0), (P3, P3)),
                                 dimension_numbers=dn,
                                 precision=lax.Precision.HIGHEST)
    h = h * scale3[None, :, None, None] + shift3[None, :, None, None]
    h = _elu(h)
    h = _avgpool_w(h, POOL2)
    h = h.reshape(h.shape[0], -1)
    return h @ p['wl'].T + p['bl']


if __name__ == "__main__":
    # Small shapes consistent with the module (Chans=8, Samples=128 keeps the
    # Linear in_features == 16 * (Samples // 32) identity intact).
    B, num_classes, chans, samples = 8, 4, 8, 128
    key = jax.random.PRNGKey(0)
    kx, kp = jax.random.split(key)
    x = jax.random.normal(kx, (B, chans, samples), jnp.float32)
    params = init_params(kp, num_classes, chans, samples)

    out = eegnet_pallas(x, params, chans=chans, samples=samples,
                        num_classes=num_classes, b_tile=4)
    out = jax.block_until_ready(out)

    ref = eegnet_ref(x, params)
    assert out.shape == (B, num_classes)
    # TODO(synk): Dropout(0.25) and batch-stat BatchNorm are training-mode only;
    # inference semantics (identity dropout, running-stat BN) are implemented.
    assert jnp.allclose(out, ref, rtol=2e-2, atol=2e-2), (out, ref)
    print("KERNEL_OK")
</pallas_src>

<mosaic_0001>
module attributes {stable_mosaic.version = 11 : i64} {
  func.func @eegnet_kernel(%arg0: i32, %arg1: memref<1x4x8x192xf32, #tpu.memory_space<vmem>>, %arg2: memref<64x32xf32, #tpu.memory_space<vmem>>, %arg3: memref<192x2048xf32, #tpu.memory_space<vmem>>, %arg4: memref<64x8xf32, #tpu.memory_space<vmem>>, %arg5: memref<64x1xf32, #tpu.memory_space<vmem>>, %arg6: memref<256x48xf32, #tpu.memory_space<vmem>>, %arg7: memref<64x1024xf32, #tpu.memory_space<vmem>>, %arg8: memref<64x1xf32, #tpu.memory_space<vmem>>, %arg9: memref<64x1xf32, #tpu.memory_space<vmem>>, %arg10: memref<33x64xf32, #tpu.memory_space<vmem>>, %arg11: memref<64x64xf32, #tpu.memory_space<vmem>>, %arg12: memref<64x4xf32, #tpu.memory_space<vmem>>, %arg13: memref<4x64xf32, #tpu.memory_space<vmem>>, %arg14: memref<1x4xf32, #tpu.memory_space<vmem>>, %arg15: memref<1x4x4xf32, #tpu.memory_space<vmem>>) attributes {dimension_semantics = [#tpu.dimension_semantics<parallel>], iteration_bounds = array<i64: 2>, scalar_prefetch = 0 : i64, scratch_operands = 0 : i64, tpu.core_type = #tpu.core_type<tc>, window_params = [{transform_indices = @transform_0, window_bounds = array<i64: 1, 4, 8, 192>}, {pipeline_mode = #tpu.pipeline_mode<synchronous>, transform_indices = @transform_1, window_bounds = array<i64: 64, 32>}, {pipeline_mode = #tpu.pipeline_mode<synchronous>, transform_indices = @transform_2, window_bounds = array<i64: 192, 2048>}, {pipeline_mode = #tpu.pipeline_mode<synchronous>, transform_indices = @transform_3, window_bounds = array<i64: 64, 8>}, {pipeline_mode = #tpu.pipeline_mode<synchronous>, transform_indices = @transform_4, window_bounds = array<i64: 64, 1>}, {pipeline_mode = #tpu.pipeline_mode<synchronous>, transform_indices = @transform_5, window_bounds = array<i64: 256, 48>}, {pipeline_mode = #tpu.pipeline_mode<synchronous>, transform_indices = @transform_6, window_bounds = array<i64: 64, 1024>}, {pipeline_mode = #tpu.pipeline_mode<synchronous>, transform_indices = @transform_7, window_bounds = array<i64: 64, 1>}, {pipeline_mode = #tpu.pipeline_mode<synchronous>, transform_indices = @transform_8, window_bounds = array<i64: 64, 1>}, {pipeline_mode = #tpu.pipeline_mode<synchronous>, transform_indices = @transform_9, window_bounds = array<i64: 33, 64>}, {pipeline_mode = #tpu.pipeline_mode<synchronous>, transform_indices = @transform_10, window_bounds = array<i64: 64, 64>}, {pipeline_mode = #tpu.pipeline_mode<synchronous>, transform_indices = @transform_11, window_bounds = array<i64: 64, 4>}, {pipeline_mode = #tpu.pipeline_mode<synchronous>, transform_indices = @transform_12, window_bounds = array<i64: 4, 64>}, {pipeline_mode = #tpu.pipeline_mode<synchronous>, transform_indices = @transform_13, window_bounds = array<i64: 1, 4>}, {transform_indices = @transform_14, window_bounds = array<i64: 1, 4, 4>}]} {
    %c0 = arith.constant 0 : index
    %c0_0 = arith.constant 0 : index
    %c0_1 = arith.constant 0 : index
    %c0_2 = arith.constant 0 : index
    %0 = vector.load %arg1[%c0, %c0_0, %c0_1, %c0_2] : memref<1x4x8x192xf32, #tpu.memory_space<vmem>>, vector<1x4x8x192xf32>
    %1 = vector.shape_cast %0 : vector<1x4x8x192xf32> to vector<4x8x192xf32>
    %2 = vector.shape_cast %1 : vector<4x8x192xf32> to vector<32x192xf32>
    %c0_3 = arith.constant 0 : index
    %c0_4 = arith.constant 0 : index
    %3 = vector.load %arg2[%c0_3, %c0_4] : memref<64x32xf32, #tpu.memory_space<vmem>>, vector<64x32xf32>
    %cst = arith.constant dense<0.000000e+00> : vector<64x192xf32>
    %4 = tpu.matmul %3, %2, %cst {dimension_numbers = #tpu.dot_dimension_numbers<[1], [0], [0], [1], [0, 0, 1, 1], [], []>} : vector<64x32xf32>, vector<32x192xf32>, vector<64x192xf32> -> vector<64x192xf32>
    %c0_5 = arith.constant 0 : index
    %c0_6 = arith.constant 0 : index
    %5 = vector.load %arg3[%c0_5, %c0_6] : memref<192x2048xf32, #tpu.memory_space<vmem>>, vector<192x2048xf32>
    %cst_7 = arith.constant dense<0.000000e+00> : vector<64x2048xf32>
    %6 = tpu.matmul %4, %5, %cst_7 {dimension_numbers = #tpu.dot_dimension_numbers<[1], [0], [0], [1], [0, 0, 1, 1], [], []>} : vector<64x192xf32>, vector<192x2048xf32>, vector<64x2048xf32> -> vector<64x2048xf32>
    %c0_8 = arith.constant 0 : index
    %c0_9 = arith.constant 0 : index
    %7 = vector.load %arg4[%c0_8, %c0_9] : memref<64x8xf32, #tpu.memory_space<vmem>>, vector<64x1xf32>
    %8 = vector.extract_strided_slice %6 {offsets = [0, 0], sizes = [64, 256], strides = [1, 1]} : vector<64x2048xf32> to vector<64x256xf32>
    %9 = vector.broadcast %7 : vector<64x1xf32> to vector<64x256xf32>
    %10 = arith.mulf %9, %8 : vector<64x256xf32>
    %c0_10 = arith.constant 0 : index
    %c1 = arith.constant 1 : index
    %11 = vector.load %arg4[%c0_10, %c1] : memref<64x8xf32, #tpu.memory_space<vmem>>, vector<64x1xf32>
    %12 = vector.extract_strided_slice %6 {offsets = [0, 256], sizes = [64, 256], strides = [1, 1]} : vector<64x2048xf32> to vector<64x256xf32>
    %13 = vector.broadcast %11 : vector<64x1xf32> to vector<64x256xf32>
    %14 = arith.mulf %13, %12 : vector<64x256xf32>
    %15 = arith.addf %10, %14 : vector<64x256xf32>
    %c0_11 = arith.constant 0 : index
    %c2 = arith.constant 2 : index
    %16 = vector.load %arg4[%c0_11, %c2] : memref<64x8xf32, #tpu.memory_space<vmem>>, vector<64x1xf32>
    %17 = vector.extract_strided_slice %6 {offsets = [0, 512], sizes = [64, 256], strides = [1, 1]} : vector<64x2048xf32> to vector<64x256xf32>
    %18 = vector.broadcast %16 : vector<64x1xf32> to vector<64x256xf32>
    %19 = arith.mulf %18, %17 : vector<64x256xf32>
    %20 = arith.addf %15, %19 : vector<64x256xf32>
    %c0_12 = arith.constant 0 : index
    %c3 = arith.constant 3 : index
    %21 = vector.load %arg4[%c0_12, %c3] : memref<64x8xf32, #tpu.memory_space<vmem>>, vector<64x1xf32>
    %22 = vector.extract_strided_slice %6 {offsets = [0, 768], sizes = [64, 256], strides = [1, 1]} : vector<64x2048xf32> to vector<64x256xf32>
    %23 = vector.broadcast %21 : vector<64x1xf32> to vector<64x256xf32>
    %24 = arith.mulf %23, %22 : vector<64x256xf32>
    %25 = arith.addf %20, %24 : vector<64x256xf32>
    %c0_13 = arith.constant 0 : index
    %c4 = arith.constant 4 : index
    %26 = vector.load %arg4[%c0_13, %c4] : memref<64x8xf32, #tpu.memory_space<vmem>>, vector<64x1xf32>
    %27 = vector.extract_strided_slice %6 {offsets = [0, 1024], sizes = [64, 256], strides = [1, 1]} : vector<64x2048xf32> to vector<64x256xf32>
    %28 = vector.broadcast %26 : vector<64x1xf32> to vector<64x256xf32>
    %29 = arith.mulf %28, %27 : vector<64x256xf32>
    %30 = arith.addf %25, %29 : vector<64x256xf32>
    %c0_14 = arith.constant 0 : index
    %c5 = arith.constant 5 : index
    %31 = vector.load %arg4[%c0_14, %c5] : memref<64x8xf32, #tpu.memory_space<vmem>>, vector<64x1xf32>
    %32 = vector.extract_strided_slice %6 {offsets = [0, 1280], sizes = [64, 256], strides = [1, 1]} : vector<64x2048xf32> to vector<64x256xf32>
    %33 = vector.broadcast %31 : vector<64x1xf32> to vector<64x256xf32>
    %34 = arith.mulf %33, %32 : vector<64x256xf32>
    %35 = arith.addf %30, %34 : vector<64x256xf32>
    %c0_15 = arith.constant 0 : index
    %c6 = arith.constant 6 : index
    %36 = vector.load %arg4[%c0_15, %c6] : memref<64x8xf32, #tpu.memory_space<vmem>>, vector<64x1xf32>
    %37 = vector.extract_strided_slice %6 {offsets = [0, 1536], sizes = [64, 256], strides = [1, 1]} : vector<64x2048xf32> to vector<64x256xf32>
    %38 = vector.broadcast %36 : vector<64x1xf32> to vector<64x256xf32>
    %39 = arith.mulf %38, %37 : vector<64x256xf32>
    %40 = arith.addf %35, %39 : vector<64x256xf32>
    %c0_16 = arith.constant 0 : index
    %c7 = arith.constant 7 : index
    %41 = vector.load %arg4[%c0_16, %c7] : memref<64x8xf32, #tpu.memory_space<vmem>>, vector<64x1xf32>
    %42 = vector.extract_strided_slice %6 {offsets = [0, 1792], sizes = [64, 256], strides = [1, 1]} : vector<64x2048xf32> to vector<64x256xf32>
    %43 = vector.broadcast %41 : vector<64x1xf32> to vector<64x256xf32>
    %44 = arith.mulf %43, %42 : vector<64x256xf32>
    %45 = arith.addf %40, %44 : vector<64x256xf32>
    %c0_17 = arith.constant 0 : index
    %c0_18 = arith.constant 0 : index
    %46 = vector.load %arg5[%c0_17, %c0_18] : memref<64x1xf32, #tpu.memory_space<vmem>>, vector<64x1xf32>
    %47 = vector.broadcast %46 : vector<64x1xf32> to vector<64x256xf32>
    %48 = arith.addf %45, %47 : vector<64x256xf32>
    %cst_19 = arith.constant 0.000000e+00 : f32
    %49 = vector.broadcast %cst_19 : f32 to vector<64x256xf32>
    %50 = arith.cmpf ogt, %48, %49 : vector<64x256xf32>
    %cst_20 = arith.constant 0.000000e+00 : f32
    %51 = vector.broadcast %cst_20 : f32 to vector<64x256xf32>
    %52 = arith.minimumf %48, %51 : vector<64x256xf32>
    %53 = math.exp %52 : vector<64x256xf32>
    %cst_21 = arith.constant 1.000000e+00 : f32
    %54 = vector.broadcast %cst_21 : f32 to vector<64x256xf32>
    %55 = arith.subf %53, %54 : vector<64x256xf32>
    %56 = arith.select %50, %48, %55 : vector<64x256xi1>, vector<64x256xf32>
    %c0_22 = arith.constant 0 : index
    %c0_23 = arith.constant 0 : index
    %57 = vector.load %arg6[%c0_22, %c0_23] : memref<256x48xf32, #tpu.memory_space<vmem>>, vector<256x48xf32>
    %cst_24 = arith.constant dense<0.000000e+00> : vector<64x48xf32>
    %58 = tpu.matmul %56, %57, %cst_24 {dimension_numbers = #tpu.dot_dimension_numbers<[1], [0], [0], [1], [0, 0, 1, 1], [], []>} : vector<64x256xf32>, vector<256x48xf32>, vector<64x48xf32> -> vector<64x48xf32>
    %59 = vector.extract_strided_slice %58 {offsets = [0, 0], sizes = [64, 33], strides = [1, 1]} : vector<64x48xf32> to vector<64x33xf32>
    %60 = vector.extract_strided_slice %58 {offsets = [0, 1], sizes = [64, 33], strides = [1, 1]} : vector<64x48xf32> to vector<64x33xf32>
    %61 = vector.extract_strided_slice %58 {offsets = [0, 2], sizes = [64, 33], strides = [1, 1]} : vector<64x48xf32> to vector<64x33xf32>
    %62 = vector.extract_strided_slice %58 {offsets = [0, 3], sizes = [64, 33], strides = [1, 1]} : vector<64x48xf32> to vector<64x33xf32>
    %63 = vector.extract_strided_slice %58 {offsets = [0, 4], sizes = [64, 33], strides = [1, 1]} : vector<64x48xf32> to vector<64x33xf32>
    %64 = vector.extract_strided_slice %58 {offsets = [0, 5], sizes = [64, 33], strides = [1, 1]} : vector<64x48xf32> to vector<64x33xf32>
    %65 = vector.extract_strided_slice %58 {offsets = [0, 6], sizes = [64, 33], strides = [1, 1]} : vector<64x48xf32> to vector<64x33xf32>
    %66 = vector.extract_strided_slice %58 {offsets = [0, 7], sizes = [64, 33], strides = [1, 1]} : vector<64x48xf32> to vector<64x33xf32>
    %67 = vector.extract_strided_slice %58 {offsets = [0, 8], sizes = [64, 33], strides = [1, 1]} : vector<64x48xf32> to vector<64x33xf32>
    %68 = vector.extract_strided_slice %58 {offsets = [0, 9], sizes = [64, 33], strides = [1, 1]} : vector<64x48xf32> to vector<64x33xf32>
    %69 = vector.extract_strided_slice %58 {offsets = [0, 10], sizes = [64, 33], strides = [1, 1]} : vector<64x48xf32> to vector<64x33xf32>
    %70 = vector.extract_strided_slice %58 {offsets = [0, 11], sizes = [64, 33], strides = [1, 1]} : vector<64x48xf32> to vector<64x33xf32>
    %71 = vector.extract_strided_slice %58 {offsets = [0, 12], sizes = [64, 33], strides = [1, 1]} : vector<64x48xf32> to vector<64x33xf32>
    %72 = vector.extract_strided_slice %58 {offsets = [0, 13], sizes = [64, 33], strides = [1, 1]} : vector<64x48xf32> to vector<64x33xf32>
    %73 = vector.extract_strided_slice %58 {offsets = [0, 14], sizes = [64, 33], strides = [1, 1]} : vector<64x48xf32> to vector<64x33xf32>
    %74 = vector.extract_strided_slice %58 {offsets = [0, 15], sizes = [64, 33], strides = [1, 1]} : vector<64x48xf32> to vector<64x33xf32>
    %75 = tpu.concatenate %59, %60, %61, %62, %63, %64, %65, %66, %67, %68, %69, %70, %71, %72, %73, %74 in 0 : vector<64x33xf32>, vector<64x33xf32>, vector<64x33xf32>, vector<64x33xf32>, vector<64x33xf32>, vector<64x33xf32>, vector<64x33xf32>, vector<64x33xf32>, vector<64x33xf32>, vector<64x33xf32>, vector<64x33xf32>, vector<64x33xf32>, vector<64x33xf32>, vector<64x33xf32>, vector<64x33xf32>, vector<64x33xf32> -> vector<1024x33xf32>
    %c0_25 = arith.constant 0 : index
    %c0_26 = arith.constant 0 : index
    %76 = vector.load %arg7[%c0_25, %c0_26] : memref<64x1024xf32, #tpu.memory_space<vmem>>, vector<64x1024xf32>
    %cst_27 = arith.constant dense<0.000000e+00> : vector<64x33xf32>
    %77 = tpu.matmul %76, %75, %cst_27 {dimension_numbers = #tpu.dot_dimension_numbers<[1], [0], [0], [1], [0, 0, 1, 1], [], []>} : vector<64x1024xf32>, vector<1024x33xf32>, vector<64x33xf32> -> vector<64x33xf32>
    %c0_28 = arith.constant 0 : index
    %c0_29 = arith.constant 0 : index
    %78 = vector.load %arg8[%c0_28, %c0_29] : memref<64x1xf32, #tpu.memory_space<vmem>>, vector<64x1xf32>
    %79 = vector.broadcast %78 : vector<64x1xf32> to vector<64x33xf32>
    %80 = arith.mulf %77, %79 : vector<64x33xf32>
    %c0_30 = arith.constant 0 : index
    %c0_31 = arith.constant 0 : index
    %81 = vector.load %arg9[%c0_30, %c0_31] : memref<64x1xf32, #tpu.memory_space<vmem>>, vector<64x1xf32>
    %82 = vector.broadcast %81 : vector<64x1xf32> to vector<64x33xf32>
    %83 = arith.addf %80, %82 : vector<64x33xf32>
    %cst_32 = arith.constant 0.000000e+00 : f32
    %84 = vector.broadcast %cst_32 : f32 to vector<64x33xf32>
    %85 = arith.cmpf ogt, %83, %84 : vector<64x33xf32>
    %cst_33 = arith.constant 0.000000e+00 : f32
    %86 = vector.broadcast %cst_33 : f32 to vector<64x33xf32>
    %87 = arith.minimumf %83, %86 : vector<64x33xf32>
    %88 = math.exp %87 : vector<64x33xf32>
    %cst_34 = arith.constant 1.000000e+00 : f32
    %89 = vector.broadcast %cst_34 : f32 to vector<64x33xf32>
    %90 = arith.subf %88, %89 : vector<64x33xf32>
    %91 = arith.select %85, %83, %90 : vector<64x33xi1>, vector<64x33xf32>
    %c0_35 = arith.constant 0 : index
    %c0_36 = arith.constant 0 : index
    %92 = vector.load %arg10[%c0_35, %c0_36] : memref<33x64xf32, #tpu.memory_space<vmem>>, vector<33x64xf32>
    %cst_37 = arith.constant dense<0.000000e+00> : vector<64x64xf32>
    %93 = tpu.matmul %91, %92, %cst_37 {dimension_numbers = #tpu.dot_dimension_numbers<[1], [0], [0], [1], [0, 0, 1, 1], [], []>} : vector<64x33xf32>, vector<33x64xf32>, vector<64x64xf32> -> vector<64x64xf32>
    %c0_38 = arith.constant 0 : index
    %c0_39 = arith.constant 0 : index
    %94 = vector.load %arg11[%c0_38, %c0_39] : memref<64x64xf32, #tpu.memory_space<vmem>>, vector<64x64xf32>
    %95 = arith.mulf %93, %94 : vector<64x64xf32>
    %c0_40 = arith.constant 0 : index
    %c0_41 = arith.constant 0 : index
    %96 = vector.load %arg12[%c0_40, %c0_41] : memref<64x4xf32, #tpu.memory_space<vmem>>, vector<64x4xf32>
    %cst_42 = arith.constant dense<0.000000e+00> : vector<64x4xf32>
    %97 = tpu.matmul %95, %96, %cst_42 {dimension_numbers = #tpu.dot_dimension_numbers<[1], [0], [0], [1], [0, 0, 1, 1], [], []>} : vector<64x64xf32>, vector<64x4xf32>, vector<64x4xf32> -> vector<64x4xf32>
    %c0_43 = arith.constant 0 : index
    %c0_44 = arith.constant 0 : index
    %98 = vector.load %arg13[%c0_43, %c0_44] : memref<4x64xf32, #tpu.memory_space<vmem>>, vector<4x64xf32>
    %cst_45 = arith.constant dense<0.000000e+00> : vector<4x4xf32>
    %99 = tpu.matmul %98, %97, %cst_45 {dimension_numbers = #tpu.dot_dimension_numbers<[1], [0], [0], [1], [0, 0, 1, 1], [], []>} : vector<4x64xf32>, vector<64x4xf32>, vector<4x4xf32> -> vector<4x4xf32>
    %c0_46 = arith.constant 0 : index
    %c0_47 = arith.constant 0 : index
    %100 = vector.load %arg14[%c0_46, %c0_47] : memref<1x4xf32, #tpu.memory_space<vmem>>, vector<1x4xf32>
    %101 = vector.broadcast %100 : vector<1x4xf32> to vector<4x4xf32>
    %102 = arith.addf %99, %101 : vector<4x4xf32>
    %c0_48 = arith.constant 0 : index
    %c0_49 = arith.constant 0 : index
    %c0_50 = arith.constant 0 : index
    %103 = vector.load %arg15[%c0_48, %c0_49, %c0_50] : memref<1x4x4xf32, #tpu.memory_space<vmem>>, vector<1x4x4xf32>
    %104 = vector.shape_cast %103 : vector<1x4x4xf32> to vector<4x4xf32>
    %105 = vector.shape_cast %102 : vector<4x4xf32> to vector<1x4x4xf32>
    tpu.vector_store %arg15[%c0_48, %c0_49, %c0_50], %105 {strides = array<i32>} : memref<1x4x4xf32, #tpu.memory_space<vmem>>, vector<1x4x4xf32>,
    return
  }
  func.func @transform_0(%arg0: i32) -> (i32, i32, i32, i32) {
    %c0_i32 = arith.constant 0 : i32
    %c0_i32_0 = arith.constant 0 : i32
    %c0_i32_1 = arith.constant 0 : i32
    %c0_i32_2 = arith.constant 0 : i32
    return %arg0, %c0_i32, %c0_i32_0, %c0_i32_1 : i32, i32, i32, i32
  }
  func.func @transform_1(%arg0: i32) -> (i32, i32) {
    %c0_i32 = arith.constant 0 : i32
    %c0_i32_0 = arith.constant 0 : i32
    %c0_i32_1 = arith.constant 0 : i32
    return %c0_i32, %c0_i32_0 : i32, i32
  }
  func.func @transform_2(%arg0: i32) -> (i32, i32) {
    %c0_i32 = arith.constant 0 : i32
    %c0_i32_0 = arith.constant 0 : i32
    %c0_i32_1 = arith.constant 0 : i32
    return %c0_i32, %c0_i32_0 : i32, i32
  }
  func.func @transform_3(%arg0: i32) -> (i32, i32) {
    %c0_i32 = arith.constant 0 : i32
    %c0_i32_0 = arith.constant 0 : i32
    %c0_i32_1 = arith.constant 0 : i32
    return %c0_i32, %c0_i32_0 : i32, i32
  }
  func.func @transform_4(%arg0: i32) -> (i32, i32) {
    %c0_i32 = arith.constant 0 : i32
    %c0_i32_0 = arith.constant 0 : i32
    %c0_i32_1 = arith.constant 0 : i32
    return %c0_i32, %c0_i32_0 : i32, i32
  }
  func.func @transform_5(%arg0: i32) -> (i32, i32) {
    %c0_i32 = arith.constant 0 : i32
    %c0_i32_0 = arith.constant 0 : i32
    %c0_i32_1 = arith.constant 0 : i32
    return %c0_i32, %c0_i32_0 : i32, i32
  }
  func.func @transform_6(%arg0: i32) -> (i32, i32) {
    %c0_i32 = arith.constant 0 : i32
    %c0_i32_0 = arith.constant 0 : i32
    %c0_i32_1 = arith.constant 0 : i32
    return %c0_i32, %c0_i32_0 : i32, i32
  }
  func.func @transform_7(%arg0: i32) -> (i32, i32) {
    %c0_i32 = arith.constant 0 : i32
    %c0_i32_0 = arith.constant 0 : i32
    %c0_i32_1 = arith.constant 0 : i32
    return %c0_i32, %c0_i32_0 : i32, i32
  }
  func.func @transform_8(%arg0: i32) -> (i32, i32) {
    %c0_i32 = arith.constant 0 : i32
    %c0_i32_0 = arith.constant 0 : i32
    %c0_i32_1 = arith.constant 0 : i32
    return %c0_i32, %c0_i32_0 : i32, i32
  }
  func.func @transform_9(%arg0: i32) -> (i32, i32) {
    %c0_i32 = arith.constant 0 : i32
    %c0_i32_0 = arith.constant 0 : i32
    %c0_i32_1 = arith.constant 0 : i32
    return %c0_i32, %c0_i32_0 : i32, i32
  }
  func.func @transform_10(%arg0: i32) -> (i32, i32) {
    %c0_i32 = arith.constant 0 : i32
    %c0_i32_0 = arith.constant 0 : i32
    %c0_i32_1 = arith.constant 0 : i32
    return %c0_i32, %c0_i32_0 : i32, i32
  }
  func.func @transform_11(%arg0: i32) -> (i32, i32) {
    %c0_i32 = arith.constant 0 : i32
    %c0_i32_0 = arith.constant 0 : i32
    %c0_i32_1 = arith.constant 0 : i32
    return %c0_i32, %c0_i32_0 : i32, i32
  }
  func.func @transform_12(%arg0: i32) -> (i32, i32) {
    %c0_i32 = arith.constant 0 : i32
    %c0_i32_0 = arith.constant 0 : i32
    %c0_i32_1 = arith.constant 0 : i32
    return %c0_i32, %c0_i32_0 : i32, i32
  }
  func.func @transform_13(%arg0: i32) -> (i32, i32) {
    %c0_i32 = arith.constant 0 : i32
    %c0_i32_0 = arith.constant 0 : i32
    %c0_i32_1 = arith.constant 0 : i32
    return %c0_i32, %c0_i32_0 : i32, i32
  }
  func.func @transform_14(%arg0: i32) -> (i32, i32, i32) {
    %c0_i32 = arith.constant 0 : i32
    %c0_i32_0 = arith.constant 0 : i32
    %c0_i32_1 = arith.constant 0 : i32
    return %arg0, %c0_i32, %c0_i32_0 : i32, i32, i32
  }
}

</mosaic_0001>

<llo_original>
// kernel: tpu_custom_call.1
$region0: #{tpu_custom_call.1}
  #allocation0 [shape = 'u32[]', space=smem, size = 0x4, offset = 0x4, fixed_abs, tag = 'smem constant byte address 0x4 - core index']
  #allocation1 [shape = 'u32[144,128]{1,0:T(1,128)}', space=vmem, size = 0x12000, scoped, tag = 'internal scratch']
  %s0 = inlined_call_operand.hbm [shape: f32[2,4,8,192], index: 0, kind: input, shape index: {}]
  %s1 = inlined_call_operand.vmem [shape: f32[64,32], index: 1, kind: input, shape index: {}]
  %s2 = inlined_call_operand.hbm [shape: f32[192,2048], index: 2, kind: input, shape index: {}]
  %s3 = inlined_call_operand.vmem [shape: f32[64,8], index: 3, kind: input, shape index: {}]
  %s4 = inlined_call_operand.vmem [shape: f32[64,1], index: 4, kind: input, shape index: {}]
  %s5 = inlined_call_operand.vmem [shape: f32[256,48], index: 5, kind: input, shape index: {}]
  %s6 = inlined_call_operand.hbm [shape: f32[64,1024], index: 6, kind: input, shape index: {}]
  %s7 = inlined_call_operand.vmem [shape: f32[64,1], index: 7, kind: input, shape index: {}]
  %s8 = inlined_call_operand.vmem [shape: f32[64,1], index: 8, kind: input, shape index: {}]
  %s9 = inlined_call_operand.hbm [shape: f32[33,64], index: 9, kind: input, shape index: {}]
  %s10 = inlined_call_operand.hbm [shape: f32[64,64], index: 10, kind: input, shape index: {}]
  %s11 = inlined_call_operand.vmem [shape: f32[64,4], index: 11, kind: input, shape index: {}]
  %s12 = inlined_call_operand.hbm [shape: f32[4,64], index: 12, kind: input, shape index: {}]
  %s13 = inlined_call_operand.hbm [shape: f32[1,4], index: 13, kind: input, shape index: {}]
  %s14 = inlined_call_operand.hbm [shape: f32[2,4,4], index: 14, kind: output, shape index: {}]
  %s15 = sld [smem:[#allocation0]]
  $region117: #{tpu_custom_call.1} parent=0
    _
  %s17 = ssub.s32 1, %s15
  %s18 = scalar_select 0, %s17, %s15
  $region1: #{tpu_custom_call.1} parent=0
    #allocation2 [shape = 'u8[65536]{0}', space=vmem, size = 0x10000, scoped, tag = 'input window, operand 0']
    #allocation3 [shape = 's32[2]{0}', space=sflag, size = 0x8, scoped, tag = 'scoped memory for tpu_custom_call.1']
    #allocation4 [shape = 's32[2]{0}', space=sflag, size = 0x8, scoped, tag = 'scoped memory for tpu_custom_call.1']
    #allocation5 [shape = 'u8[1572864]{0}', space=vmem, size = 0x180000, scoped, tag = 'input window, operand 2, single buffered']
    #allocation6 [shape = 's32[1]{0}', space=sflag, size = 0x4, scoped, tag = 'scoped memory for tpu_custom_call.1']
    #allocation7 [shape = 'u8[262144]{0}', space=vmem, size = 0x40000, scoped, tag = 'input window, operand 6, single buffered']
    #allocation8 [shape = 'u8[20480]{0}', space=vmem, size = 0x5000, scoped, tag = 'input window, operand 9, single buffered']
    #allocation9 [shape = 's32[1]{0}', space=sflag, size = 0x4, scoped, tag = 'scoped memory for tpu_custom_call.1']
    #allocation10 [shape = 'u8[32768]{0}', space=vmem, size = 0x8000, scoped, tag = 'input window, operand 10, single buffered']
    #allocation11 [shape = 'u8[2048]{0}', space=vmem, size = 0x800, scoped, tag = 'input window, operand 12, single buffered']
    #allocation12 [shape = 's32[1]{0}', space=sflag, size = 0x4, scoped, tag = 'scoped memory for tpu_custom_call.1']
    #allocation13 [shape = 'u8[512]{0}', space=vmem, size = 0x400, scoped, tag = 'input window, operand 13, single buffered']
    #allocation14 [shape = 'u8[4096]{0}', space=vmem, size = 0x1000, scoped, tag = 'output window, operand 0']
    %19 = vsyncpa [#allocation3], 0
    %s20 = scalar_lea.sflag [#allocation3], 1
    %21 = vsyncpa %s20, 0
    %22 = vsyncpa [#allocation6], 0
    %23 = vsyncpa [#allocation9], 0
    %24 = vsyncpa [#allocation12], 0
    %25 = vsyncpa [#allocation4], 0
    %s26 = scalar_lea.sflag [#allocation4], 1
    %27 = vsyncpa %s26, 0
    loop: start=0, step=1, limit=4
    $region2: #{tpu_custom_call.1} parent=1 // loop_pre_header
      _
    $region3: #{tpu_custom_call.1} parent=1 // loop_header
      %s29 = sphi 0, %s33
      %p30 = scmp.ge.s32.totalorder %s29, 4
      %s39 = sphi 0, %s41
      %s42 = sphi 0, %s39
      %s43 = sphi 0, %s42
      %s59 = sphi 0, %s43
      %s63 = sphi 0, %s63
      %s65 = sphi 0, %s63
      %s66 = sphi 0, %s65
      %s80 = sphi 0, %s66
      %s84 = sphi 0, %s84
      %s86 = sphi 0, %s84
      %s87 = sphi 0, %s86
      %s101 = sphi 0, %s87
      %s105 = sphi 0, %s105
      %s107 = sphi 0, %s105
      %s108 = sphi 0, %s107
      %s122 = sphi 0, %s108
      %s126 = sphi 0, %s126
      %s128 = sphi 0, %s126
      %s129 = sphi 0, %s128
      %s143 = sphi 0, %s129
      %s147 = sphi 0, %s147
      %s149 = sphi 0, %s147
      %s150 = sphi 0, %s149
      %s164 = sphi 0, %s150
      %s168 = sphi 0, %s168
      %s170 = sphi 0, %s168
      %s171 = sphi 0, %s170
      %s185 = sphi 0, %s171
      %s189 = sphi 0, %s189
      %s191 = sphi 0, %s189
      %s192 = sphi 0, %s191
      %s206 = sphi 0, %s192
      %s210 = sphi 0, %s210
      %s212 = sphi 0, %s210
      %s213 = sphi 0, %s212
      %s227 = sphi 0, %s213
      %s231 = sphi 0, %s231
      %s233 = sphi 0, %s231
      %s234 = sphi 0, %s233
      %s248 = sphi 0, %s234
      %s252 = sphi 0, %s252
      %s254 = sphi 0, %s252
      %s255 = sphi 0, %s254
      %s269 = sphi 0, %s255
      %s273 = sphi 0, %s273
      %s275 = sphi 0, %s273
      %s276 = sphi 0, %s275
      %s290 = sphi 0, %s276
      %s294 = sphi 0, %s294
      %s296 = sphi 0, %s294
      %s297 = sphi 0, %s296
      %s311 = sphi 0, %s297
      %s315 = sphi 0, %s315
      %s317 = sphi 0, %s315
      %s318 = sphi 0, %s317
      %s332 = sphi 0, %s318
      %s338 = sphi 0, %s340
      %s341 = sphi 0, %s338
      %s342 = sphi 0, %s341
      %s358 = sphi 0, %s342
    $region4: #{tpu_custom_call.1} parent=1 // loop_header_branch
      %32 = sbr.rel (%p30) target = $region8
    $region5: #{tpu_custom_call.1} parent=1 // loop_body
      %s34 = ssub.s32 %s29, 1
      %s35 = ssub.s32 %s29, 2
      %s36 = sadd.s32 %s29, 1
      %s37 = ssub.s32 %s29, %s36
      %p38 = scmp.eq.s32.totalorder %s37, 0
      %s40 = sadd.s32 %s39, 1
      %s41 = scalar_select %p38, %s39, %s40
      %p44 = pneg %p38
      %p45 = scmp.eq.s32.totalorder %s29, 1
      %p46 = por %p44, %p45
      %p47 = scmp.ne.s32.totalorder %s39, %s42
      %p48 = scmp.eq.s32.totalorder %s29, 0
      %p49 = por %p47, %p48
      %p50 = scmp.ne.s32.totalorder %s39, %s42
      %p51 = scmp.eq.s32.totalorder %s34, 1
      %p52 = por %p50, %p51
      %p53 = scmp.ne.s32.totalorder %s42, %s43
      %p54 = scmp.eq.s32.totalorder %s34, 0
      %p55 = por %p53, %p54
      %p56 = scmp.ne.s32.totalorder %s42, %s43
      %p57 = scmp.eq.s32.totalorder %s35, 1
      %p58 = por %p56, %p57
      %p60 = scmp.ne.s32.totalorder %s43, %s59
      %p61 = scmp.eq.s32.totalorder %s35, 0
      %p62 = por %p60, %p61
      %s64 = sadd.s32 %s63, 1
      %p67 = scmp.eq.s32.totalorder %s29, 1
      %p68 = scmp.ne.s32.totalorder %s63, %s65
      %p69 = scmp.eq.s32.totalorder %s29, 0
      %p70 = por %p68, %p69
      %p71 = scmp.ne.s32.totalorder %s63, %s65
      %p72 = scmp.eq.s32.totalorder %s34, 1
      %p73 = por %p71, %p72
      %p74 = scmp.ne.s32.totalorder %s65, %s66
      %p75 = scmp.eq.s32.totalorder %s34, 0
      %p76 = por %p74, %p75
      %p77 = scmp.ne.s32.totalorder %s65, %s66
      %p78 = scmp.eq.s32.totalorder %s35, 1
      %p79 = por %p77, %p78
      %p81 = scmp.ne.s32.totalorder %s66, %s80
      %p82 = scmp.eq.s32.totalorder %s35, 0
      %p83 = por %p81, %p82
      %s85 = sadd.s32 %s84, 1
      %p88 = scmp.eq.s32.totalorder %s29, 1
      %p89 = scmp.ne.s32.totalorder %s84, %s86
      %p90 = scmp.eq.s32.totalorder %s29, 0
      %p91 = por %p89, %p90
      %p92 = scmp.ne.s32.totalorder %s84, %s86
      %p93 = scmp.eq.s32.totalorder %s34, 1
      %p94 = por %p92, %p93
      %p95 = scmp.ne.s32.totalorder %s86, %s87
      %p96 = scmp.eq.s32.totalorder %s34, 0
      %p97 = por %p95, %p96
      %p98 = scmp.ne.s32.totalorder %s86, %s87
      %p99 = scmp.eq.s32.totalorder %s35, 1
      %p100 = por %p98, %p99
      %p102 = scmp.ne.s32.totalorder %s87, %s101
      %p103 = scmp.eq.s32.totalorder %s35, 0
      %p104 = por %p102, %p103
      %s106 = sadd.s32 %s105, 1
      %p109 = scmp.eq.s32.totalorder %s29, 1
      %p110 = scmp.ne.s32.totalorder %s105, %s107
      %p111 = scmp.eq.s32.totalorder %s29, 0
      %p112 = por %p110, %p111
      %p113 = scmp.ne.s32.totalorder %s105, %s107
      %p114 = scmp.eq.s32.totalorder %s34, 1
      %p115 = por %p113, %p114
      %p116 = scmp.ne.s32.totalorder %s107, %s108
      %p117 = scmp.eq.s32.totalorder %s34, 0
      %p118 = por %p116, %p117
      %p119 = scmp.ne.s32.totalorder %s107, %s108
      %p120 = scmp.eq.s32.totalorder %s35, 1
      %p121 = por %p119, %p120
      %p123 = scmp.ne.s32.totalorder %s108, %s122
      %p124 = scmp.eq.s32.totalorder %s35, 0
      %p125 = por %p123, %p124
      %s127 = sadd.s32 %s126, 1
      %p130 = scmp.eq.s32.totalorder %s29, 1
      %p131 = scmp.ne.s32.totalorder %s126, %s128
      %p132 = scmp.eq.s32.totalorder %s29, 0
      %p133 = por %p131, %p132
      %p134 = scmp.ne.s32.totalorder %s126, %s128
      %p135 = scmp.eq.s32.totalorder %s34, 1
      %p136 = por %p134, %p135
      %p137 = scmp.ne.s32.totalorder %s128, %s129
      %p138 = scmp.eq.s32.totalorder %s34, 0
      %p139 = por %p137, %p138
      %p140 = scmp.ne.s32.totalorder %s128, %s129
      %p141 = scmp.eq.s32.totalorder %s35, 1
      %p142 = por %p140, %p141
      %p144 = scmp.ne.s32.totalorder %s129, %s143
      %p145 = scmp.eq.s32.totalorder %s35, 0
      %p146 = por %p144, %p145
      %s148 = sadd.s32 %s147, 1
      %p151 = scmp.eq.s32.totalorder %s29, 1
      %p152 = scmp.ne.s32.totalorder %s147, %s149
      %p153 = scmp.eq.s32.totalorder %s29, 0
      %p154 = por %p152, %p153
      %p155 = scmp.ne.s32.totalorder %s147, %s149
      %p156 = scmp.eq.s32.totalorder %s34, 1
      %p157 = por %p155, %p156
      %p158 = scmp.ne.s32.totalorder %s149, %s150
      %p159 = scmp.eq.s32.totalorder %s34, 0
      %p160 = por %p158, %p159
      %p161 = scmp.ne.s32.totalorder %s149, %s150
      %p162 = scmp.eq.s32.totalorder %s35, 1
      %p163 = por %p161, %p162
      %p165 = scmp.ne.s32.totalorder %s150, %s164
      %p166 = scmp.eq.s32.totalorder %s35, 0
      %p167 = por %p165, %p166
      %s169 = sadd.s32 %s168, 1
      %p172 = scmp.eq.s32.totalorder %s29, 1
      %p173 = scmp.ne.s32.totalorder %s168, %s170
      %p174 = scmp.eq.s32.totalorder %s29, 0
      %p175 = por %p173, %p174
      %p176 = scmp.ne.s32.totalorder %s168, %s170
      %p177 = scmp.eq.s32.totalorder %s34, 1
      %p178 = por %p176, %p177
      %p179 = scmp.ne.s32.totalorder %s170, %s171
      %p180 = scmp.eq.s32.totalorder %s34, 0
      %p181 = por %p179, %p180
      %p182 = scmp.ne.s32.totalorder %s170, %s171
      %p183 = scmp.eq.s32.totalorder %s35, 1
      %p184 = por %p182, %p183
      %p186 = scmp.ne.s32.totalorder %s171, %s185
      %p187 = scmp.eq.s32.totalorder %s35, 0
      %p188 = por %p186, %p187
      %s190 = sadd.s32 %s189, 1
      %p193 = scmp.eq.s32.totalorder %s29, 1
      %p194 = scmp.ne.s32.totalorder %s189, %s191
      %p195 = scmp.eq.s32.totalorder %s29, 0
      %p196 = por %p194, %p195
      %p197 = scmp.ne.s32.totalorder %s189, %s191
      %p198 = scmp.eq.s32.totalorder %s34, 1
      %p199 = por %p197, %p198
      %p200 = scmp.ne.s32.totalorder %s191, %s192
      %p201 = scmp.eq.s32.totalorder %s34, 0
      %p202 = por %p200, %p201
      %p203 = scmp.ne.s32.totalorder %s191, %s192
      %p204 = scmp.eq.s32.totalorder %s35, 1
      %p205 = por %p203, %p204
      %p207 = scmp.ne.s32.totalorder %s192, %s206
      %p208 = scmp.eq.s32.totalorder %s35, 0
      %p209 = por %p207, %p208
      %s211 = sadd.s32 %s210, 1
      %p214 = scmp.eq.s32.totalorder %s29, 1
      %p215 = scmp.ne.s32.totalorder %s210, %s212
      %p216 = scmp.eq.s32.totalorder %s29, 0
      %p217 = por %p215, %p216
      %p218 = scmp.ne.s32.totalorder %s210, %s212
      %p219 = scmp.eq.s32.totalorder %s34, 1
      %p220 = por %p218, %p219
      %p221 = scmp.ne.s32.totalorder %s212, %s213
      %p222 = scmp.eq.s32.totalorder %s34, 0
      %p223 = por %p221, %p222
      %p224 = scmp.ne.s32.totalorder %s212, %s213
      %p225 = scmp.eq.s32.totalorder %s35, 1
      %p226 = por %p224, %p225
      %p228 = scmp.ne.s32.totalorder %s213, %s227
      %p229 = scmp.eq.s32.totalorder %s35, 0
      %p230 = por %p228, %p229
      %s232 = sadd.s32 %s231, 1
      %p235 = scmp.eq.s32.totalorder %s29, 1
      %p236 = scmp.ne.s32.totalorder %s231, %s233
      %p237 = scmp.eq.s32.totalorder %s29, 0
      %p238 = por %p236, %p237
      %p239 = scmp.ne.s32.totalorder %s231, %s233
      %p240 = scmp.eq.s32.totalorder %s34, 1
      %p241 = por %p239, %p240
      %p242 = scmp.ne.s32.totalorder %s233, %s234
      %p243 = scmp.eq.s32.totalorder %s34, 0
      %p244 = por %p242, %p243
      %p245 = scmp.ne.s32.totalorder %s233, %s234
      %p246 = scmp.eq.s32.totalorder %s35, 1
      %p247 = por %p245, %p246
      %p249 = scmp.ne.s32.totalorder %s234, %s248
      %p250 = scmp.eq.s32.totalorder %s35, 0
      %p251 = por %p249, %p250
      %s253 = sadd.s32 %s252, 1
      %p256 = scmp.eq.s32.totalorder %s29, 1
      %p257 = scmp.ne.s32.totalorder %s252, %s254
      %p258 = scmp.eq.s32.totalorder %s29, 0
      %p259 = por %p257, %p258
      %p260 = scmp.ne.s32.totalorder %s252, %s254
      %p261 = scmp.eq.s32.totalorder %s34, 1
      %p262 = por %p260, %p261
      %p263 = scmp.ne.s32.totalorder %s254, %s255
      %p264 = scmp.eq.s32.totalorder %s34, 0
      %p265 = por %p263, %p264
      %p266 = scmp.ne.s32.totalorder %s254, %s255
      %p267 = scmp.eq.s32.totalorder %s35, 1
      %p268 = por %p266, %p267
      %p270 = scmp.ne.s32.totalorder %s255, %s269
      %p271 = scmp.eq.s32.totalorder %s35, 0
      %p272 = por %p270, %p271
      %s274 = sadd.s32 %s273, 1
      %p277 = scmp.eq.s32.totalorder %s29, 1
      %p278 = scmp.ne.s32.totalorder %s273, %s275
      %p279 = scmp.eq.s32.totalorder %s29, 0
      %p280 = por %p278, %p279
      %p281 = scmp.ne.s32.totalorder %s273, %s275
      %p282 = scmp.eq.s32.totalorder %s34, 1
      %p283 = por %p281, %p282
      %p284 = scmp.ne.s32.totalorder %s275, %s276
      %p285 = scmp.eq.s32.totalorder %s34, 0
      %p286 = por %p284, %p285
      %p287 = scmp.ne.s32.totalorder %s275, %s276
      %p288 = scmp.eq.s32.totalorder %s35, 1
      %p289 = por %p287, %p288
      %p291 = scmp.ne.s32.totalorder %s276, %s290
      %p292 = scmp.eq.s32.totalorder %s35, 0
      %p293 = por %p291, %p292
      %s295 = sadd.s32 %s294, 1
      %p298 = scmp.eq.s32.totalorder %s29, 1
      %p299 = scmp.ne.s32.totalorder %s294, %s296
      %p300 = scmp.eq.s32.totalorder %s29, 0
      %p301 = por %p299, %p300
      %p302 = scmp.ne.s32.totalorder %s294, %s296
      %p303 = scmp.eq.s32.totalorder %s34, 1
      %p304 = por %p302, %p303
      %p305 = scmp.ne.s32.totalorder %s296, %s297
      %p306 = scmp.eq.s32.totalorder %s34, 0
      %p307 = por %p305, %p306
      %p308 = scmp.ne.s32.totalorder %s296, %s297
      %p309 = scmp.eq.s32.totalorder %s35, 1
      %p310 = por %p308, %p309
      %p312 = scmp.ne.s32.totalorder %s297, %s311
      %p313 = scmp.eq.s32.totalorder %s35, 0
      %p314 = por %p312, %p313
      %s316 = sadd.s32 %s315, 1
      %p319 = scmp.eq.s32.totalorder %s29, 1
      %p320 = scmp.ne.s32.totalorder %s315, %s317
      %p321 = scmp.eq.s32.totalorder %s29, 0
      %p322 = por %p320, %p321
      %p323 = scmp.ne.s32.totalorder %s315, %s317
      %p324 = scmp.eq.s32.totalorder %s34, 1
      %p325 = por %p323, %p324
      %p326 = scmp.ne.s32.totalorder %s317, %s318
      %p327 = scmp.eq.s32.totalorder %s34, 0
      %p328 = por %p326, %p327
      %p329 = scmp.ne.s32.totalorder %s317, %s318
      %p330 = scmp.eq.s32.totalorder %s35, 1
      %p331 = por %p329, %p330
      %p333 = scmp.ne.s32.totalorder %s318, %s332
      %p334 = scmp.eq.s32.totalorder %s35, 0
      %p335 = por %p333, %p334
      %s336 = ssub.s32 %s29, %s36
      %p337 = scmp.eq.s32.totalorder %s336, 0
      %s339 = sadd.s32 %s338, 1
      %s340 = scalar_select %p337, %s338, %s339
      %p343 = pneg %p337
      %p344 = scmp.eq.s32.totalorder %s29, 1
      %p345 = por %p343, %p344
      %p346 = scmp.ne.s32.totalorder %s338, %s341
      %p347 = scmp.eq.s32.totalorder %s29, 0
      %p348 = por %p346, %p347
      %p349 = scmp.ne.s32.totalorder %s338, %s341
      %p350 = scmp.eq.s32.totalorder %s34, 1
      %p351 = por %p349, %p350
      %p352 = scmp.ne.s32.totalorder %s341, %s342
      %p353 = scmp.eq.s32.totalorder %s34, 0
      %p354 = por %p352, %p353
      %p355 = scmp.ne.s32.totalorder %s341, %s342
      %p356 = scmp.eq.s32.totalorder %s35, 1
      %p357 = por %p355, %p356
      %p359 = scmp.ne.s32.totalorder %s342, %s358
      %p360 = scmp.eq.s32.totalorder %s35, 0
      %p361 = por %p359, %p360
      %p362 = scmp.le.s32.totalorder 1, %s29
      %p363 = scmp.lt.s32.totalorder %s29, 3
      %p364 = pnand %p362, %p363
      %p365 = pneg %p364
      // Predicated region
      $region9: #{tpu_custom_call.1} parent=5 // pred_check
        _
      $region10: #{tpu_custom_call.1} parent=5 // pred_check_branch
        %367 = sbr.rel (%p364) target = $region12
      $region11: #{tpu_custom_call.1} parent=5 // pred_region
        %s368 = ssub.s32 %s29, 1
        // Predicated region
        $region13: #{tpu_custom_call.1} parent=11 // pred_check
          %p369 = pneg %p76
        $region14: #{tpu_custom_call.1} parent=11 // pred_check_branch
          %371 = sbr.rel (%p369) target = $region16
        $region15: #{tpu_custom_call.1} parent=11 // pred_region
          _
        $region16: #{tpu_custom_call.1} parent=11 // pred_fallthru
          _
        // Predicated region
        $region17: #{tpu_custom_call.1} parent=11 // pred_check
          %p372 = pneg %p97
        $region18: #{tpu_custom_call.1} parent=11 // pred_check_branch
          %374 = sbr.rel (%p372) target = $region20
        $region19: #{tpu_custom_call.1} parent=11 // pred_region
          %s376 = ssub.s32 49152, 49152
          %377 = vsyncadd [#allocation6], %s376
          %s378 = sshll.u32 [#allocation5], 4
          %s379 = int_to_ptr.vmem [resolvable:$true] %s378
          %384 = dma.hbm_to_vmem [thread:$0]  %s2, 49152, %s379, [#allocation6], 2048, 2048, 128
        $region20: #{tpu_custom_call.1} parent=11 // pred_fallthru
          _
        // Predicated region
        $region21: #{tpu_custom_call.1} parent=11 // pred_check
          %p385 = pneg %p118
        $region22: #{tpu_custom_call.1} parent=11 // pred_check_branch
          %387 = sbr.rel (%p385) target = $region24
        $region23: #{tpu_custom_call.1} parent=11 // pred_region
          _
        $region24: #{tpu_custom_call.1} parent=11 // pred_fallthru
          _
        // Predicated region
        $region25: #{tpu_custom_call.1} parent=11 // pred_check
          %p388 = pneg %p139
        $region26: #{tpu_custom_call.1} parent=11 // pred_check_branch
          %390 = sbr.rel (%p388) target = $region28
        $region27: #{tpu_custom_call.1} parent=11 // pred_region
          _
        $region28: #{tpu_custom_call.1} parent=11 // pred_fallthru
          _
        // Predicated region
        $region29: #{tpu_custom_call.1} parent=11 // pred_check
          %p391 = pneg %p160
        $region30: #{tpu_custom_call.1} parent=11 // pred_check_branch
          %393 = sbr.rel (%p391) target = $region32
        $region31: #{tpu_custom_call.1} parent=11 // pred_region
          _
        $region32: #{tpu_custom_call.1} parent=11 // pred_fallthru
          _
        // Predicated region
        $region33: #{tpu_custom_call.1} parent=11 // pred_check
          %p394 = pneg %p181
        $region34: #{tpu_custom_call.1} parent=11 // pred_check_branch
          %396 = sbr.rel (%p394) target = $region36
        $region35: #{tpu_custom_call.1} parent=11 // pred_region
          %s398 = ssub.s32 8192, 8192
          %399 = vsyncadd [#allocation6], %s398
          %s400 = sshll.u32 [#allocation7], 4
          %s401 = int_to_ptr.vmem [resolvable:$true] %s400
          %406 = dma.hbm_to_vmem [thread:$0]  %s6, 8192, %s401, [#allocation6], 1024, 1024, 64
        $region36: #{tpu_custom_call.1} parent=11 // pred_fallthru
          _
        // Predicated region
        $region37: #{tpu_custom_call.1} parent=11 // pred_check
          %p407 = pneg %p202
        $region38: #{tpu_custom_call.1} parent=11 // pred_check_branch
          %409 = sbr.rel (%p407) target = $region40
        $region39: #{tpu_custom_call.1} parent=11 // pred_region
          _
        $region40: #{tpu_custom_call.1} parent=11 // pred_fallthru
          _
        // Predicated region
        $region41: #{tpu_custom_call.1} parent=11 // pred_check
          %p410 = pneg %p223
        $region42: #{tpu_custom_call.1} parent=11 // pred_check_branch
          %412 = sbr.rel (%p410) target = $region44
        $region43: #{tpu_custom_call.1} parent=11 // pred_region
          _
        $region44: #{tpu_custom_call.1} parent=11 // pred_fallthru
          _
        // Predicated region
        $region45: #{tpu_custom_call.1} parent=11 // pred_check
          %p413 = pneg %p244
        $region46: #{tpu_custom_call.1} parent=11 // pred_check_branch
          %415 = sbr.rel (%p413) target = $region48
        $region47: #{tpu_custom_call.1} parent=11 // pred_region
          %s417 = ssub.s32 640, 640
          %418 = vsyncadd [#allocation9], %s417
          %s419 = sshll.u32 [#allocation8], 4
          %s420 = int_to_ptr.vmem [resolvable:$true] %s419
          %425 = dma.hbm_to_vmem [thread:$0]  %s9, 640, %s420, [#allocation9], 128, 128, 8
        $region48: #{tpu_custom_call.1} parent=11 // pred_fallthru
          _
        // Predicated region
        $region49: #{tpu_custom_call.1} parent=11 // pred_check
          %p426 = pneg %p265
        $region50: #{tpu_custom_call.1} parent=11 // pred_check_branch
          %428 = sbr.rel (%p426) target = $region52
        $region51: #{tpu_custom_call.1} parent=11 // pred_region
          %s430 = ssub.s32 1024, 1024
          %431 = vsyncadd [#allocation9], %s430
          %s432 = sshll.u32 [#allocation10], 4
          %s433 = int_to_ptr.vmem [resolvable:$true] %s432
          %438 = dma.hbm_to_vmem [thread:$0]  %s10, 1024, %s433, [#allocation9], 128, 128, 8
        $region52: #{tpu_custom_call.1} parent=11 // pred_fallthru
          _
        // Predicated region
        $region53: #{tpu_custom_call.1} parent=11 // pred_check
          %p439 = pneg %p286
        $region54: #{tpu_custom_call.1} parent=11 // pred_check_branch
          %441 = sbr.rel (%p439) target = $region56
        $region55: #{tpu_custom_call.1} parent=11 // pred_region
          _
        $region56: #{tpu_custom_call.1} parent=11 // pred_fallthru
          _
        // Predicated region
        $region57: #{tpu_custom_call.1} parent=11 // pred_check
          %p442 = pneg %p307
        $region58: #{tpu_custom_call.1} parent=11 // pred_check_branch
          %444 = sbr.rel (%p442) target = $region60
        $region59: #{tpu_custom_call.1} parent=11 // pred_region
          %s446 = ssub.s32 64, 64
          %447 = vsyncadd [#allocation12], %s446
          %s449 = sshll.u32 [#allocation11], 4
          %s450 = int_to_ptr.vmem [resolvable:$true] %s449
          %452 = dma.hbm_to_vmem [thread:$0]  %s12, 64, %s450, [#allocation12]
        $region60: #{tpu_custom_call.1} parent=11 // pred_fallthru
          _
        // Predicated region
        $region61: #{tpu_custom_call.1} parent=11 // pred_check
          %p453 = pneg %p328
        $region62: #{tpu_custom_call.1} parent=11 // pred_check_branch
          %455 = sbr.rel (%p453) target = $region64
        $region63: #{tpu_custom_call.1} parent=11 // pred_region
          %s457 = ssub.s32 16, 16
          %458 = vsyncadd [#allocation12], %s457
          %s460 = sshll.u32 [#allocation13], 4
          %s461 = int_to_ptr.vmem [resolvable:$true] %s460
          %463 = dma.hbm_to_vmem [thread:$0]  %s13, 16, %s461, [#allocation12]
        $region64: #{tpu_custom_call.1} parent=11 // pred_fallthru
          _
      $region12: #{tpu_custom_call.1} parent=5 // pred_fallthru
        _
      %p464 = scmp.lt.s32.totalorder %s29, 2
      // Predicated region
      $region65: #{tpu_custom_call.1} parent=5 // pred_check
        %p465 = pneg %p464
      $region66: #{tpu_custom_call.1} parent=5 // pred_check_branch
        %467 = sbr.rel (%p465) target = $region68
      $region67: #{tpu_custom_call.1} parent=5 // pred_region
        // Predicated region
        $region69: #{tpu_custom_call.1} parent=67 // pred_check
          %p468 = pneg %p49
        $region70: #{tpu_custom_call.1} parent=67 // pred_check_branch
          %470 = sbr.rel (%p468) target = $region72
        $region71: #{tpu_custom_call.1} parent=67 // pred_region
          %s471 = sand.u32 %s39, 1
          %s472 = scalar_lea.sflag [#allocation3], %s471
          %s473 = sand.u32 %s39, 1
          %s474 = smul.addr %s473, 64
          %s475 = scalar_lea.vmem [#allocation2], %s474
          %s477 = ssub.s32 1024, 1024
          %478 = vsyncadd %s472, %s477
          %s479 = smul.addr %s29, 8
          %s480 = smul.addr %s479, 128
          %s481 = scalar_lea.hbm %s0, %s480
          %s482 = sshll.u32 %s475, 4
          %s483 = int_to_ptr.vmem [resolvable:$true] %s482
          %488 = dma.hbm_to_vmem [thread:$0]  %s481, 1024, %s483, %s472, 256, 256, 16
        $region72: #{tpu_custom_call.1} parent=67 // pred_fallthru
          _
      $region68: #{tpu_custom_call.1} parent=5 // pred_fallthru
        _
      %p489 = scmp.le.s32.totalorder 1, %s29
      %p490 = scmp.lt.s32.totalorder %s29, 3
      %p491 = pnand %p489, %p490
      %p492 = pneg %p491
      // Predicated region
      $region73: #{tpu_custom_call.1} parent=5 // pred_check
        _
      $region74: #{tpu_custom_call.1} parent=5 // pred_check_branch
        %494 = sbr.rel (%p491) target = $region76
      $region75: #{tpu_custom_call.1} parent=5 // pred_region
        %s495 = ssub.s32 %s29, 1
        %s496 = sand.u32 %s42, 1
        %s497 = scalar_lea.sflag [#allocation3], %s496
        %s498 = sand.u32 %s42, 1
        %s499 = smul.addr %s498, 64
        %s500 = scalar_lea.vmem [#allocation2], %s499
        // Predicated region
        $region77: #{tpu_custom_call.1} parent=75 // pred_check
          %p501 = pneg %p55
        $region78: #{tpu_custom_call.1} parent=75 // pred_check_branch
          %503 = sbr.rel (%p501) target = $region80
        $region79: #{tpu_custom_call.1} parent=75 // pred_region
          %504 = dma.done %s497, 1024
        $region80: #{tpu_custom_call.1} parent=75 // pred_fallthru
          _
        // Predicated region
        $region81: #{tpu_custom_call.1} parent=75 // pred_check
          %p505 = pneg %p97
        $region82: #{tpu_custom_call.1} parent=75 // pred_check_branch
          %507 = sbr.rel (%p505) target = $region84
        $region83: #{tpu_custom_call.1} parent=75 // pred_region
          %508 = dma.done [#allocation6], 49152
        $region84: #{tpu_custom_call.1} parent=75 // pred_fallthru
          _
        // Predicated region
        $region85: #{tpu_custom_call.1} parent=75 // pred_check
          %p509 = pneg %p181
        $region86: #{tpu_custom_call.1} parent=75 // pred_check_branch
          %511 = sbr.rel (%p509) target = $region88
        $region87: #{tpu_custom_call.1} parent=75 // pred_region
          %512 = dma.done [#allocation6], 8192
        $region88: #{tpu_custom_call.1} parent=75 // pred_fallthru
          _
        // Predicated region
        $region89: #{tpu_custom_call.1} parent=75 // pred_check
          %p513 = pneg %p244
        $region90: #{tpu_custom_call.1} parent=75 // pred_check_branch
          %515 = sbr.rel (%p513) target = $region92
        $region91: #{tpu_custom_call.1} parent=75 // pred_region
          %516 = dma.done [#allocation9], 640
        $region92: #{tpu_custom_call.1} parent=75 // pred_fallthru
          _
        // Predicated region
        $region93: #{tpu_custom_call.1} parent=75 // pred_check
          %p517 = pneg %p265
        $region94: #{tpu_custom_call.1} parent=75 // pred_check_branch
          %519 = sbr.rel (%p517) target = $region96
        $region95: #{tpu_custom_call.1} parent=75 // pred_region
          %520 = dma.done [#allocation9], 1024
        $region96: #{tpu_custom_call.1} parent=75 // pred_fallthru
          _
        // Predicated region
        $region97: #{tpu_custom_call.1} parent=75 // pred_check
          %p521 = pneg %p307
        $region98: #{tpu_custom_call.1} parent=75 // pred_check_branch
          %523 = sbr.rel (%p521) target = $region100
        $region99: #{tpu_custom_call.1} parent=75 // pred_region
          %524 = dma.done [#allocation12], 64
        $region100: #{tpu_custom_call.1} parent=75 // pred_fallthru
          _
        // Predicated region
        $region101: #{tpu_custom_call.1} parent=75 // pred_check
          %p525 = pneg %p328
        $region102: #{tpu_custom_call.1} parent=75 // pred_check_branch
          %527 = sbr.rel (%p525) target = $region104
        $region103: #{tpu_custom_call.1} parent=75 // pred_region
          %528 = dma.done [#allocation12], 16
        $region104: #{tpu_custom_call.1} parent=75 // pred_fallthru
          _
        %s529 = sand.u32 %s42, 1
        %s530 = scalar_lea.sflag [#allocation3], %s529
        %s531 = sand.u32 %s42, 1
        %s532 = smul.addr %s531, 64
        %s533 = scalar_lea.vmem [#allocation2], %s532
        %p534 = pneg %p55
        %p535 = pneg %p52
        %p536 = pneg %p76
        %p537 = pneg %p73
        %p538 = pneg %p97
        %p539 = pneg %p94
        %p540 = pneg %p118
        %p541 = pneg %p115
        %p542 = pneg %p139
        %p543 = pneg %p136
        %p544 = pneg %p160
        %p545 = pneg %p157
        %p546 = pneg %p181
        %p547 = pneg %p178
        %p548 = pneg %p202
        %p549 = pneg %p199
        %p550 = pneg %p223
        %p551 = pneg %p220
        %p552 = pneg %p244
        %p553 = pneg %p241
        %p554 = pneg %p265
        %p555 = pneg %p262
        %p556 = pneg %p286
        %p557 = pneg %p283
        %p558 = pneg %p307
        %p559 = pneg %p304
        %p560 = pneg %p328
        %p561 = pneg %p325
        %p562 = pneg %p354
        %p563 = pneg %p351
        %s564 = sand.u32 %s341, 1
        %s565 = scalar_lea.sflag [#allocation4], %s564
        %s566 = sand.u32 %s341, 1
        %s567 = smul.addr %s566, 4
        %s568 = scalar_lea.vmem [#allocation14], %s567
        %v569 = vld [vmem:[%s500] sm:$0xff]
        %v570 = vld [vmem:[%s500 + $0x8] sm:$0xff]
        %v571 = vld [vmem:[%s500 + $0x10] sm:$0xff]
        %v572 = vld [vmem:[%s500 + $0x18] sm:$0xff]
        %v573 = vld [vmem:[%s500 + $0x20] sm:$0xff]
        %v574 = vld [vmem:[%s500 + $0x28] sm:$0xff]
        %v575 = vld [vmem:[%s500 + $0x30] sm:$0xff]
        %v576 = vld [vmem:[%s500 + $0x38] sm:$0xff]
        %v577 = vld [vmem:[%s1] sm:$0xff]
        %v578 = vld [vmem:[%s1 + $0x8] sm:$0xff]
        %v579 = vld [vmem:[%s1 + $0x10] sm:$0xff]
        %v580 = vld [vmem:[%s1 + $0x18] sm:$0xff]
        %v581 = vld [vmem:[%s1 + $0x20] sm:$0xff]
        %v582 = vld [vmem:[%s1 + $0x28] sm:$0xff]
        %v583 = vld [vmem:[%s1 + $0x30] sm:$0xff]
        %v584 = vld [vmem:[%s1 + $0x38] sm:$0xff]
        %vm585 = vcmask 261120
        %v587 = vsel %vm585, %v577, 0
        %v590 = vsel %vm585, %v578, 0
        %v593 = vsel %vm585, %v579, 0
        %v596 = vsel %vm585, %v580, 0
        %v599 = vsel %vm585, %v581, 0
        %v602 = vsel %vm585, %v582, 0
        %v605 = vsel %vm585, %v583, 0
        %v608 = vsel %vm585, %v584, 0
        %610 = vmatprep.subr.mxu0 %v570
        %611 = vmatpush1.msra.mxu0 %v569
        %612 = vmatprep.subr.mxu0 %v572
        %613 = vmatpush1.msra.mxu0 %v571
        %614 = vmatprep.subr.mxu0 %v574
        %615 = vmatpush1.msra.mxu0 %v573
        %616 = vmatprep.subr.mxu0 %v576
        %617 = vmatpush1.msra.mxu0 %v575
        %618 = vmatprep.subr.mxu0 0.0
        %619 = vmatpush1.msra.mxu0 0.0
        %620 = vmatprep.subr.mxu0 0.0
        %621 = vmatpush1.msra.mxu0 0.0
        %622 = vmatprep.subr.mxu0 0.0
        %623 = vmatpush1.msra.mxu0 0.0
        %624 = vmatprep.subr.mxu0 0.0
        %625 = vmatpush1.msra.mxu0 0.0
        %626 = vmatprep.subr.mxu0 0.0
        %627 = vmatpush1.msra.mxu0 0.0
        %628 = vmatprep.subr.mxu0 0.0
        %629 = vmatpush1.msra.mxu0 0.0
        %630 = vmatprep.subr.mxu0 0.0
        %631 = vmatpush1.msra.mxu0 0.0
        %632 = vmatprep.subr.mxu0 0.0
        %633 = vmatpush1.msra.mxu0 0.0
        %634 = vmatprep.subr.mxu0 0.0
        %635 = vmatpush1.msra.mxu0 0.0
        %636 = vmatprep.subr.mxu0 0.0
        %637 = vmatpush1.msra.mxu0 0.0
        %638 = vmatprep.subr.mxu0 0.0
        %639 = vmatpush1.msra.mxu0 0.0
        %640 = vmatprep.subr.mxu0 0.0
        %641 = vmatpush1.msra.mxu0 0.0
        %642 = vmatprep.subr.mxu0 0.0
        %643 = vmatpush1.msra.mxu0 0.0
        %644 = vmatprep.subr.mxu0 0.0
        %645 = vmatpush1.msra.mxu0 0.0
        %646 = vmatprep.subr.mxu0 0.0
        %647 = vmatpush1.msra.mxu0 0.0
        %648 = vmatprep.subr.mxu0 0.0
        %649 = vmatpush1.msra.mxu0 0.0
        %650 = vmatprep.subr.mxu0 0.0
        %651 = vmatpush1.msra.mxu0 0.0
        %652 = vmatprep.subr.mxu0 0.0
        %653 = vmatpush1.msra.mxu0 0.0
        %654 = vmatprep.subr.mxu0 0.0
        %655 = vmatpush1.msra.mxu0 0.0
        %656 = vmatprep.subr.mxu0 0.0
        %657 = vmatpush1.msra.mxu0 0.0
        %658 = vmatprep.subr.mxu0 0.0
        %659 = vmatpush1.msra.mxu0 0.0
        %660 = vmatprep.subr.mxu0 0.0
        %661 = vmatpush1.msra.mxu0 0.0
        %662 = vmatprep.subr.mxu0 0.0
        %663 = vmatpush1.msra.mxu0 0.0
        %664 = vmatprep.subr.mxu0 0.0
        %665 = vmatpush1.msra.mxu0 0.0
        %666 = vmatprep.subr.mxu0 0.0
        %667 = vmatpush1.msra.mxu0 0.0
        %668 = vmatprep.subr.mxu0 0.0
        %669 = vmatpush1.msra.mxu0 0.0
        %670 = vmatprep.subr.mxu0 0.0
        %671 = vmatpush1.msra.mxu0 0.0
        %672 = vmatprep.subr.mxu0 0.0
        %673 = vmatpush1.msra.mxu0 0.0
        %674 = vmatprep.mubr.f32.mxu0 0.0
        %675 = vmatmul.mubr.f32.gmra.mrb[0].mxu0 %v587
        %v676 = vpop.f32.mrb[0].mxu0
        %v677 = vadd.f32 0.0, %v676
        %v678 = vpop.f32.mrb[0].mxu0
        %v679 = vadd.f32 0.0, %v678
        %680 = vmatprep.mubr.f32.mxu0 0.0
        %681 = vmatmul.mubr.f32.gmra.mrb[0].mxu0 %v590
        %v682 = vpop.f32.mrb[0].mxu0
        %v683 = vadd.f32 0.0, %v682
        %v684 = vpop.f32.mrb[0].mxu0
        %v685 = vadd.f32 0.0, %v684
        %686 = vmatprep.mubr.f32.mxu0 0.0
        %687 = vmatmul.mubr.f32.gmra.mrb[0].mxu0 %v593
        %v688 = vpop.f32.mrb[0].mxu0
        %v689 = vadd.f32 0.0, %v688
        %v690 = vpop.f32.mrb[0].mxu0
        %v691 = vadd.f32 0.0, %v690
        %692 = vmatprep.mubr.f32.mxu0 0.0
        %693 = vmatmul.mubr.f32.gmra.mrb[0].mxu0 %v596
        %v694 = vpop.f32.mrb[0].mxu0
        %v695 = vadd.f32 0.0, %v694
        %v696 = vpop.f32.mrb[0].mxu0
        %v697 = vadd.f32 0.0, %v696
        %698 = vmatprep.mubr.f32.mxu0 0.0
        %699 = vmatmul.mubr.f32.gmra.mrb[0].mxu0 %v599
        %v700 = vpop.f32.mrb[0].mxu0
        %v701 = vadd.f32 0.0, %v700
        %v702 = vpop.f32.mrb[0].mxu0
        %v703 = vadd.f32 0.0, %v702
        %704 = vmatprep.mubr.f32.mxu0 0.0
        %705 = vmatmul.mubr.f32.gmra.mrb[0].mxu0 %v602
        %v706 = vpop.f32.mrb[0].mxu0
        %v707 = vadd.f32 0.0, %v706
        %v708 = vpop.f32.mrb[0].mxu0
        %v709 = vadd.f32 0.0, %v708
        %710 = vmatprep.mubr.f32.mxu0 0.0
        %711 = vmatmul.mubr.f32.gmra.mrb[0].mxu0 %v605
        %v712 = vpop.f32.mrb[0].mxu0
        %v713 = vadd.f32 0.0, %v712
        %v714 = vpop.f32.mrb[0].mxu0
        %v715 = vadd.f32 0.0, %v714
        %716 = vmatprep.mubr.f32.mxu0 0.0
        %717 = vmatmul.mubr.f32.gmra.mrb[0].mxu0 %v608
        %v718 = vpop.f32.mrb[0].mxu0
        %v719 = vadd.f32 0.0, %v718
        %v720 = vpop.f32.mrb[0].mxu0
        %v721 = vadd.f32 0.0, %v720
        %722 = vdwg.mxu0
        %v723 = vld [vmem:[#allocation5] sm:$0xff]
        %v724 = vld [vmem:[#allocation5 + $0x8] sm:$0xff]
        %v725 = vld [vmem:[#allocation5 + $0x10] sm:$0xff]
        %v726 = vld [vmem:[#allocation5 + $0x18] sm:$0xff]
        %v727 = vld [vmem:[#allocation5 + $0x20] sm:$0xff]
        %v728 = vld [vmem:[#allocation5 + $0x28] sm:$0xff]
        %v729 = vld [vmem:[#allocation5 + $0x30] sm:$0xff]
        %v730 = vld [vmem:[#allocation5 + $0x38] sm:$0xff]
        %v731 = vld [vmem:[#allocation5 + $0x40] sm:$0xff]
        %v732 = vld [vmem:[#allocation5 + $0x48] sm:$0xff]
        %v733 = vld [vmem:[#allocation5 + $0x50] sm:$0xff]
        %v734 = vld [vmem:[#allocation5 + $0x58] sm:$0xff]
        %v735 = vld [vmem:[#allocation5 + $0x60] sm:$0xff]
        %v736 = vld [vmem:[#allocation5 + $0x68] sm:$0xff]
        %v737 = vld [vmem:[#allocation5 + $0x70] sm:$0xff]
        %v738 = vld [vmem:[#allocation5 + $0x78] sm:$0xff]
        %v739 = vld [vmem:[#allocation5 + $0x80] sm:$0xff]
        %v740 = vld [vmem:[#allocation5 + $0x88] sm:$0xff]
        %v741 = vld [vmem:[#allocation5 + $0x90] sm:$0xff]
        %v742 = vld [vmem:[#allocation5 + $0x98] sm:$0xff]
        %v743 = vld [vmem:[#allocation5 + $0xa0] sm:$0xff]
        %v744 = vld [vmem:[#allocation5 + $0xa8] sm:$0xff]
        %v745 = vld [vmem:[#allocation5 + $0xb0] sm:$0xff]
        %v746 = vld [vmem:[#allocation5 + $0xb8] sm:$0xff]
        %v747 = vld [vmem:[#allocation5 + $0xc0] sm:$0xff]
        %v748 = vld [vmem:[#allocation5 + $0xc8] sm:$0xff]
        %v749 = vld [vmem:[#allocation5 + $0xd0] sm:$0xff]
        %v750 = vld [vmem:[#allocation5 + $0xd8] sm:$0xff]
        %v751 = vld [vmem:[#allocation5 + $0xe0] sm:$0xff]
        %v752 = vld [vmem:[#allocation5 + $0xe8] sm:$0xff]
        %v753 = vld [vmem:[#allocation5 + $0xf0] sm:$0xff]
        %v754 = vld [vmem:[#allocation5 + $0xf8] sm:$0xff]
        %v755 = vld [vmem:[#allocation5 + $0x100] sm:$0xff]
        %v756 = vld [vmem:[#allocation5 + $0x108] sm:$0xff]
        %v757 = vld [vmem:[#allocation5 + $0x110] sm:$0xff]
        %v758 = vld [vmem:[#allocation5 + $0x118] sm:$0xff]
        %v759 = vld [vmem:[#allocation5 + $0x120] sm:$0xff]
        %v760 = vld [vmem:[#allocation5 + $0x128] sm:$0xff]
        %v761 = vld [vmem:[#allocation5 + $0x130] sm:$0xff]
        %v762 = vld [vmem:[#allocation5 + $0x138] sm:$0xff]
        %v763 = vld [vmem:[#allocation5 + $0x140] sm:$0xff]
        %v764 = vld [vmem:[#allocation5 + $0x148] sm:$0xff]
        %v765 = vld [vmem:[#allocation5 + $0x150] sm:$0xff]
        %v766 = vld [vmem:[#allocation5 + $0x158] sm:$0xff]
        %v767 = vld [vmem:[#allocation5 + $0x160] sm:$0xff]
        %v768 = vld [vmem:[#allocation5 + $0x168] sm:$0xff]
        %v769 = vld [vmem:[#allocation5 + $0x170] sm:$0xff]
        %v770 = vld [vmem:[#allocation5 + $0x178] sm:$0xff]
        %v771 = vld [vmem:[#allocation5 + $0x180] sm:$0xff]
        %v772 = vld [vmem:[#allocation5 + $0x188] sm:$0xff]
        %v773 = vld [vmem:[#allocation5 + $0x190] sm:$0xff]
        %v774 = vld [vmem:[#allocation5 + $0x198] sm:$0xff]
        %v775 = vld [vmem:[#allocation5 + $0x1a0] sm:$0xff]
        %v776 = vld [vmem:[#allocation5 + $0x1a8] sm:$0xff]
        %v777 = vld [vmem:[#allocation5 + $0x1b0] sm:$0xff]
        %v778 = vld [vmem:[#allocation5 + $0x1b8] sm:$0xff]
        %v779 = vld [vmem:[#allocation5 + $0x1c0] sm:$0xff]
        %v780 = vld [vmem:[#allocation5 + $0x1c8] sm:$0xff]
        %v781 = vld [vmem:[#allocation5 + $0x1d0] sm:$0xff]
        %v782 = vld [vmem:[#allocation5 + $0x1d8] sm:$0xff]
        %v783 = vld [vmem:[#allocation5 + $0x1e0] sm:$0xff]
        %v784 = vld [vmem:[#allocation5 + $0x1e8] sm:$0xff]
        %v785 = vld [vmem:[#allocation5 + $0x1f0] sm:$0xff]
        %v786 = vld [vmem:[#allocation5 + $0x1f8] sm:$0xff]
        %v787 = vld [vmem:[#allocation5 + $0x200] sm:$0xff]
        %v788 = vld [vmem:[#allocation5 + $0x208] sm:$0xff]
        %v789 = vld [vmem:[#allocation5 + $0x210] sm:$0xff]
        %v790 = vld [vmem:[#allocation5 + $0x218] sm:$0xff]
        %v791 = vld [vmem:[#allocation5 + $0x220] sm:$0xff]
        %v792 = vld [vmem:[#allocation5 + $0x228] sm:$0xff]
        %v793 = vld [vmem:[#allocation5 + $0x230] sm:$0xff]
        %v794 = vld [vmem:[#allocation5 + $0x238] sm:$0xff]
        %v795 = vld [vmem:[#allocation5 + $0x240] sm:$0xff]
        %v796 = vld [vmem:[#allocation5 + $0x248] sm:$0xff]
        %v797 = vld [vmem:[#allocation5 + $0x250] sm:$0xff]
        %v798 = vld [vmem:[#allocation5 + $0x258] sm:$0xff]
        %v799 = vld [vmem:[#allocation5 + $0x260] sm:$0xff]
        %v800 = vld [vmem:[#allocation5 + $0x268] sm:$0xff]
        %v801 = vld [vmem:[#allocation5 + $0x270] sm:$0xff]
        %v802 = vld [vmem:[#allocation5 + $0x278] sm:$0xff]
        %v803 = vld [vmem:[#allocation5 + $0x280] sm:$0xff]
        %v804 = vld [vmem:[#allocation5 + $0x288] sm:$0xff]
        %v805 = vld [vmem:[#allocation5 + $0x290] sm:$0xff]
        %v806 = vld [vmem:[#allocation5 + $0x298] sm:$0xff]
        %v807 = vld [vmem:[#allocation5 + $0x2a0] sm:$0xff]
        %v808 = vld [vmem:[#allocation5 + $0x2a8] sm:$0xff]
        %v809 = vld [vmem:[#allocation5 + $0x2b0] sm:$0xff]
        %v810 = vld [vmem:[#allocation5 + $0x2b8] sm:$0xff]
        %v811 = vld [vmem:[#allocation5 + $0x2c0] sm:$0xff]
        %v812 = vld [vmem:[#allocation5 + $0x2c8] sm:$0xff]
        %v813 = vld [vmem:[#allocation5 + $0x2d0] sm:$0xff]
        %v814 = vld [vmem:[#allocation5 + $0x2d8] sm:$0xff]
        %v815 = vld [vmem:[#allocation5 + $0x2e0] sm:$0xff]
        %v816 = vld [vmem:[#allocation5 + $0x2e8] sm:$0xff]
        %v817 = vld [vmem:[#allocation5 + $0x2f0] sm:$0xff]
        %v818 = vld [vmem:[#allocation5 + $0x2f8] sm:$0xff]
        %v819 = vld [vmem:[#allocation5 + $0x300] sm:$0xff]
        %v820 = vld [vmem:[#allocation5 + $0x308] sm:$0xff]
        %v821 = vld [vmem:[#allocation5 + $0x310] sm:$0xff]
        %v822 = vld [vmem:[#allocation5 + $0x318] sm:$0xff]
        %v823 = vld [vmem:[#allocation5 + $0x320] sm:$0xff]
        %v824 = vld [vmem:[#allocation5 + $0x328] sm:$0xff]
        %v825 = vld [vmem:[#allocation5 + $0x330] sm:$0xff]
        %v826 = vld [vmem:[#allocation5 + $0x338] sm:$0xff]
        %v827 = vld [vmem:[#allocation5 + $0x340] sm:$0xff]
        %v828 = vld [vmem:[#allocation5 + $0x348] sm:$0xff]
        %v829 = vld [vmem:[#allocation5 + $0x350] sm:$0xff]
        %v830 = vld [vmem:[#allocation5 + $0x358] sm:$0xff]
        %v831 = vld [vmem:[#allocation5 + $0x360] sm:$0xff]
        %v832 = vld [vmem:[#allocation5 + $0x368] sm:$0xff]
        %v833 = vld [vmem:[#allocation5 + $0x370] sm:$0xff]
        %v834 = vld [vmem:[#allocation5 + $0x378] sm:$0xff]
        %v835 = vld [vmem:[#allocation5 + $0x380] sm:$0xff]
        %v836 = vld [vmem:[#allocation5 + $0x388] sm:$0xff]
        %v837 = vld [vmem:[#allocation5 + $0x390] sm:$0xff]
        %v838 = vld [vmem:[#allocation5 + $0x398] sm:$0xff]
        %v839 = vld [vmem:[#allocation5 + $0x3a0] sm:$0xff]
        %v840 = vld [vmem:[#allocation5 + $0x3a8] sm:$0xff]
        %v841 = vld [vmem:[#allocation5 + $0x3b0] sm:$0xff]
        %v842 = vld [vmem:[#allocation5 + $0x3b8] sm:$0xff]
        %v843 = vld [vmem:[#allocation5 + $0x3c0] sm:$0xff]
        %v844 = vld [vmem:[#allocation5 + $0x3c8] sm:$0xff]
        %v845 = vld [vmem:[#allocation5 + $0x3d0] sm:$0xff]
        %v846 = vld [vmem:[#allocation5 + $0x3d8] sm:$0xff]
        %v847 = vld [vmem:[#allocation5 + $0x3e0] sm:$0xff]
        %v848 = vld [vmem:[#allocation5 + $0x3e8] sm:$0xff]
        %v849 = vld [vmem:[#allocation5 + $0x3f0] sm:$0xff]
        %v850 = vld [vmem:[#allocation5 + $0x3f8] sm:$0xff]
        %v851 = vld [vmem:[#allocation5 + $0x400] sm:$0xff]
        %v852 = vld [vmem:[#allocation5 + $0x408] sm:$0xff]
        %v853 = vld [vmem:[#allocation5 + $0x410] sm:$0xff]
        %v854 = vld [vmem:[#allocation5 + $0x418] sm:$0xff]
        %v855 = vld [vmem:[#allocation5 + $0x420] sm:$0xff]
        %v856 = vld [vmem:[#allocation5 + $0x428] sm:$0xff]
        %v857 = vld [vmem:[#allocation5 + $0x430] sm:$0xff]
        %v858 = vld [vmem:[#allocation5 + $0x438] sm:$0xff]
        %v859 = vld [vmem:[#allocation5 + $0x440] sm:$0xff]
        %v860 = vld [vmem:[#allocation5 + $0x448] sm:$0xff]
        %v861 = vld [vmem:[#allocation5 + $0x450] sm:$0xff]
        %v862 = vld [vmem:[#allocation5 + $0x458] sm:$0xff]
        %v863 = vld [vmem:[#allocation5 + $0x460] sm:$0xff]
        %v864 = vld [vmem:[#allocation5 + $0x468] sm:$0xff]
        %v865 = vld [vmem:[#allocation5 + $0x470] sm:$0xff]
        %v866 = vld [vmem:[#allocation5 + $0x478] sm:$0xff]
        %v867 = vld [vmem:[#allocation5 + $0x480] sm:$0xff]
        %v868 = vld [vmem:[#allocation5 + $0x488] sm:$0xff]
        %v869 = vld [vmem:[#allocation5 + $0x490] sm:$0xff]
        %v870 = vld [vmem:[#allocation5 + $0x498] sm:$0xff]
        %v871 = vld [vmem:[#allocation5 + $0x4a0] sm:$0xff]
        %v872 = vld [vmem:[#allocation5 + $0x4a8] sm:$0xff]
        %v873 = vld [vmem:[#allocation5 + $0x4b0] sm:$0xff]
        %v874 = vld [vmem:[#allocation5 + $0x4b8] sm:$0xff]
        %v875 = vld [vmem:[#allocation5 + $0x4c0] sm:$0xff]
        %v876 = vld [vmem:[#allocation5 + $0x4c8] sm:$0xff]
        %v877 = vld [vmem:[#allocation5 + $0x4d0] sm:$0xff]
        %v878 = vld [vmem:[#allocation5 + $0x4d8] sm:$0xff]
        %v879 = vld [vmem:[#allocation5 + $0x4e0] sm:$0xff]
        %v880 = vld [vmem:[#allocation5 + $0x4e8] sm:$0xff]
        %v881 = vld [vmem:[#allocation5 + $0x4f0] sm:$0xff]
        %v882 = vld [vmem:[#allocation5 + $0x4f8] sm:$0xff]
        %v883 = vld [vmem:[#allocation5 + $0x500] sm:$0xff]
        %v884 = vld [vmem:[#allocation5 + $0x508] sm:$0xff]
        %v885 = vld [vmem:[#allocation5 + $0x510] sm:$0xff]
        %v886 = vld [vmem:[#allocation5 + $0x518] sm:$0xff]
        %v887 = vld [vmem:[#allocation5 + $0x520] sm:$0xff]
        %v888 = vld [vmem:[#allocation5 + $0x528] sm:$0xff]
        %v889 = vld [vmem:[#allocation5 + $0x530] sm:$0xff]
        %v890 = vld [vmem:[#allocation5 + $0x538] sm:$0xff]
        %v891 = vld [vmem:[#allocation5 + $0x540] sm:$0xff]
        %v892 = vld [vmem:[#allocation5 + $0x548] sm:$0xff]
        %v893 = vld [vmem:[#allocation5 + $0x550] sm:$0xff]
        %v894 = vld [vmem:[#allocation5 + $0x558] sm:$0xff]
        %v895 = vld [vmem:[#allocation5 + $0x560] sm:$0xff]
        %v896 = vld [vmem:[#allocation5 + $0x568] sm:$0xff]
        %v897 = vld [vmem:[#allocation5 + $0x570] sm:$0xff]
        %v898 = vld [vmem:[#allocation5 + $0x578] sm:$0xff]
        %v899 = vld [vmem:[#allocation5 + $0x580] sm:$0xff]
        %v900 = vld [vmem:[#allocation5 + $0x588] sm:$0xff]
        %v901 = vld [vmem:[#allocation5 + $0x590] sm:$0xff]
        %v902 = vld [vmem:[#allocation5 + $0x598] sm:$0xff]
        %v903 = vld [vmem:[#allocation5 + $0x5a0] sm:$0xff]
        %v904 = vld [vmem:[#allocation5 + $0x5a8] sm:$0xff]
        %v905 = vld [vmem:[#allocation5 + $0x5b0] sm:$0xff]
        %v906 = vld [vmem:[#allocation5 + $0x5b8] sm:$0xff]
        %v907 = vld [vmem:[#allocation5 + $0x5c0] sm:$0xff]
        %v908 = vld [vmem:[#allocation5 + $0x5c8] sm:$0xff]
        %v909 = vld [vmem:[#allocation5 + $0x5d0] sm:$0xff]
        %v910 = vld [vmem:[#allocation5 + $0x5d8] sm:$0xff]
        %v911 = vld [vmem:[#allocation5 + $0x5e0] sm:$0xff]
        %v912 = vld [vmem:[#allocation5 + $0x5e8] sm:$0xff]
        %v913 = vld [vmem:[#allocation5 + $0x5f0] sm:$0xff]
        %v914 = vld [vmem:[#allocation5 + $0x5f8] sm:$0xff]
        %v915 = vld [vmem:[#allocation5 + $0x600] sm:$0xff]
        %v916 = vld [vmem:[#allocation5 + $0x608] sm:$0xff]
        %v917 = vld [vmem:[#allocation5 + $0x610] sm:$0xff]
        %v918 = vld [vmem:[#allocation5 + $0x618] sm:$0xff]
        %v919 = vld [vmem:[#allocation5 + $0x620] sm:$0xff]
        %v920 = vld [vmem:[#allocation5 + $0x628] sm:$0xff]
        %v921 = vld [vmem:[#allocation5 + $0x630] sm:$0xff]
        %v922 = vld [vmem:[#allocation5 + $0x638] sm:$0xff]
        %v923 = vld [vmem:[#allocation5 + $0x640] sm:$0xff]
        %v924 = vld [vmem:[#allocation5 + $0x648] sm:$0xff]
        %v925 = vld [vmem:[#allocation5 + $0x650] sm:$0xff]
        %v926 = vld [vmem:[#allocation5 + $0x658] sm:$0xff]
        %v927 = vld [vmem:[#allocation5 + $0x660] sm:$0xff]
        %v928 = vld [vmem:[#allocation5 + $0x668] sm:$0xff]
        %v929 = vld [vmem:[#allocation5 + $0x670] sm:$0xff]
        %v930 = vld [vmem:[#allocation5 + $0x678] sm:$0xff]
        %v931 = vld [vmem:[#allocation5 + $0x680] sm:$0xff]
        %v932 = vld [vmem:[#allocation5 + $0x688] sm:$0xff]
        %v933 = vld [vmem:[#allocation5 + $0x690] sm:$0xff]
        %v934 = vld [vmem:[#allocation5 + $0x698] sm:$0xff]
        %v935 = vld [vmem:[#allocation5 + $0x6a0] sm:$0xff]
        %v936 = vld [vmem:[#allocation5 + $0x6a8] sm:$0xff]
        %v937 = vld [vmem:[#allocation5 + $0x6b0] sm:$0xff]
        %v938 = vld [vmem:[#allocation5 + $0x6b8] sm:$0xff]
        %v939 = vld [vmem:[#allocation5 + $0x6c0] sm:$0xff]
        %v940 = vld [vmem:[#allocation5 + $0x6c8] sm:$0xff]
        %v941 = vld [vmem:[#allocation5 + $0x6d0] sm:$0xff]
        %v942 = vld [vmem:[#allocation5 + $0x6d8] sm:$0xff]
        %v943 = vld [vmem:[#allocation5 + $0x6e0] sm:$0xff]
        %v944 = vld [vmem:[#allocation5 + $0x6e8] sm:$0xff]
        %v945 = vld [vmem:[#allocation5 + $0x6f0] sm:$0xff]
        %v946 = vld [vmem:[#allocation5 + $0x6f8] sm:$0xff]
        %v947 = vld [vmem:[#allocation5 + $0x700] sm:$0xff]
        %v948 = vld [vmem:[#allocation5 + $0x708] sm:$0xff]
        %v949 = vld [vmem:[#allocation5 + $0x710] sm:$0xff]
        %v950 = vld [vmem:[#allocation5 + $0x718] sm:$0xff]
        %v951 = vld [vmem:[#allocation5 + $0x720] sm:$0xff]
        %v952 = vld [vmem:[#allocation5 + $0x728] sm:$0xff]
        %v953 = vld [vmem:[#allocation5 + $0x730] sm:$0xff]
        %v954 = vld [vmem:[#allocation5 + $0x738] sm:$0xff]
        %v955 = vld [vmem:[#allocation5 + $0x740] sm:$0xff]
        %v956 = vld [vmem:[#allocation5 + $0x748] sm:$0xff]
        %v957 = vld [vmem:[#allocation5 + $0x750] sm:$0xff]
        %v958 = vld [vmem:[#allocation5 + $0x758] sm:$0xff]
        %v959 = vld [vmem:[#allocation5 + $0x760] sm:$0xff]
        %v960 = vld [vmem:[#allocation5 + $0x768] sm:$0xff]
        %v961 = vld [vmem:[#allocation5 + $0x770] sm:$0xff]
        %v962 = vld [vmem:[#allocation5 + $0x778] sm:$0xff]
        %v963 = vld [vmem:[#allocation5 + $0x780] sm:$0xff]
        %v964 = vld [vmem:[#allocation5 + $0x788] sm:$0xff]
        %v965 = vld [vmem:[#allocation5 + $0x790] sm:$0xff]
        %v966 = vld [vmem:[#allocation5 + $0x798] sm:$0xff]
        %v967 = vld [vmem:[#allocation5 + $0x7a0] sm:$0xff]
        %v968 = vld [vmem:[#allocation5 + $0x7a8] sm:$0xff]
        %v969 = vld [vmem:[#allocation5 + $0x7b0] sm:$0xff]
        %v970 = vld [vmem:[#allocation5 + $0x7b8] sm:$0xff]
        %v971 = vld [vmem:[#allocation5 + $0x7c0] sm:$0xff]
        %v972 = vld [vmem:[#allocation5 + $0x7c8] sm:$0xff]
        %v973 = vld [vmem:[#allocation5 + $0x7d0] sm:$0xff]
        %v974 = vld [vmem:[#allocation5 + $0x7d8] sm:$0xff]
        %v975 = vld [vmem:[#allocation5 + $0x7e0] sm:$0xff]
        %v976 = vld [vmem:[#allocation5 + $0x7e8] sm:$0xff]
        %v977 = vld [vmem:[#allocation5 + $0x7f0] sm:$0xff]
        %v978 = vld [vmem:[#allocation5 + $0x7f8] sm:$0xff]
        %v979 = vld [vmem:[#allocation5 + $0x800] sm:$0xff]
        %v980 = vld [vmem:[#allocation5 + $0x808] sm:$0xff]
        %v981 = vld [vmem:[#allocation5 + $0x810] sm:$0xff]
        %v982 = vld [vmem:[#allocation5 + $0x818] sm:$0xff]
        %v983 = vld [vmem:[#allocation5 + $0x820] sm:$0xff]
        %v984 = vld [vmem:[#allocation5 + $0x828] sm:$0xff]
        %v985 = vld [vmem:[#allocation5 + $0x830] sm:$0xff]
        %v986 = vld [vmem:[#allocation5 + $0x838] sm:$0xff]
        %v987 = vld [vmem:[#allocation5 + $0x840] sm:$0xff]
        %v988 = vld [vmem:[#allocation5 + $0x848] sm:$0xff]
        %v989 = vld [vmem:[#allocation5 + $0x850] sm:$0xff]
        %v990 = vld [vmem:[#allocation5 + $0x858] sm:$0xff]
        %v991 = vld [vmem:[#allocation5 + $0x860] sm:$0xff]
        %v992 = vld [vmem:[#allocation5 + $0x868] sm:$0xff]
        %v993 = vld [vmem:[#allocation5 + $0x870] sm:$0xff]
        %v994 = vld [vmem:[#allocation5 + $0x878] sm:$0xff]
        %v995 = vld [vmem:[#allocation5 + $0x880] sm:$0xff]
        %v996 = vld [vmem:[#allocation5 + $0x888] sm:$0xff]
        %v997 = vld [vmem:[#allocation5 + $0x890] sm:$0xff]
        %v998 = vld [vmem:[#allocation5 + $0x898] sm:$0xff]
        %v999 = vld [vmem:[#allocation5 + $0x8a0] sm:$0xff]
        %v1000 = vld [vmem:[#allocation5 + $0x8a8] sm:$0xff]
        %v1001 = vld [vmem:[#allocation5 + $0x8b0] sm:$0xff]
        %v1002 = vld [vmem:[#allocation5 + $0x8b8] sm:$0xff]
        %v1003 = vld [vmem:[#allocation5 + $0x8c0] sm:$0xff]
        %v1004 = vld [vmem:[#allocation5 + $0x8c8] sm:$0xff]
        %v1005 = vld [vmem:[#allocation5 + $0x8d0] sm:$0xff]
        %v1006 = vld [vmem:[#allocation5 + $0x8d8] sm:$0xff]
        %v1007 = vld [vmem:[#allocation5 + $0x8e0] sm:$0xff]
        %v1008 = vld [vmem:[#allocation5 + $0x8e8] sm:$0xff]
        %v1009 = vld [vmem:[#allocation5 + $0x8f0] sm:$0xff]
        %v1010 = vld [vmem:[#allocation5 + $0x8f8] sm:$0xff]
        %v1011 = vld [vmem:[#allocation5 + $0x900] sm:$0xff]
        %v1012 = vld [vmem:[#allocation5 + $0x908] sm:$0xff]
        %v1013 = vld [vmem:[#allocation5 + $0x910] sm:$0xff]
        %v1014 = vld [vmem:[#allocation5 + $0x918] sm:$0xff]
        %v1015 = vld [vmem:[#allocation5 + $0x920] sm:$0xff]
        %v1016 = vld [vmem:[#allocation5 + $0x928] sm:$0xff]
        %v1017 = vld [vmem:[#allocation5 + $0x930] sm:$0xff]
        %v1018 = vld [vmem:[#allocation5 + $0x938] sm:$0xff]
        %v1019 = vld [vmem:[#allocation5 + $0x940] sm:$0xff]
        %v1020 = vld [vmem:[#allocation5 + $0x948] sm:$0xff]
        %v1021 = vld [vmem:[#allocation5 + $0x950] sm:$0xff]
        %v1022 = vld [vmem:[#allocation5 + $0x958] sm:$0xff]
        %v1023 = vld [vmem:[#allocation5 + $0x960] sm:$0xff]
        %v1024 = vld [vmem:[#allocation5 + $0x968] sm:$0xff]
        %v1025 = vld [vmem:[#allocation5 + $0x970] sm:$0xff]
        %v1026 = vld [vmem:[#allocation5 + $0x978] sm:$0xff]
        %v1027 = vld [vmem:[#allocation5 + $0x980] sm:$0xff]
        %v1028 = vld [vmem:[#allocation5 + $0x988] sm:$0xff]
        %v1029 = vld [vmem:[#allocation5 + $0x990] sm:$0xff]
        %v1030 = vld [vmem:[#allocation5 + $0x998] sm:$0xff]
        %v1031 = vld [vmem:[#allocation5 + $0x9a0] sm:$0xff]
        %v1032 = vld [vmem:[#allocation5 + $0x9a8] sm:$0xff]
        %v1033 = vld [vmem:[#allocation5 + $0x9b0] sm:$0xff]
        %v1034 = vld [vmem:[#allocation5 + $0x9b8] sm:$0xff]
        %v1035 = vld [vmem:[#allocation5 + $0x9c0] sm:$0xff]
        %v1036 = vld [vmem:[#allocation5 + $0x9c8] sm:$0xff]
        %v1037 = vld [vmem:[#allocation5 + $0x9d0] sm:$0xff]
        %v1038 = vld [vmem:[#allocation5 + $0x9d8] sm:$0xff]
        %v1039 = vld [vmem:[#allocation5 + $0x9e0] sm:$0xff]
        %v1040 = vld [vmem:[#allocation5 + $0x9e8] sm:$0xff]
        %v1041 = vld [vmem:[#allocation5 + $0x9f0] sm:$0xff]
        %v1042 = vld [vmem:[#allocation5 + $0x9f8] sm:$0xff]
        %v1043 = vld [vmem:[#allocation5 + $0xa00] sm:$0xff]
        %v1044 = vld [vmem:[#allocation5 + $0xa08] sm:$0xff]
        %v1045 = vld [vmem:[#allocation5 + $0xa10] sm:$0xff]
        %v1046 = vld [vmem:[#allocation5 + $0xa18] sm:$0xff]
        %v1047 = vld [vmem:[#allocation5 + $0xa20] sm:$0xff]
        %v1048 = vld [vmem:[#allocation5 + $0xa28] sm:$0xff]
        %v1049 = vld [vmem:[#allocation5 + $0xa30] sm:$0xff]
        %v1050 = vld [vmem:[#allocation5 + $0xa38] sm:$0xff]
        %v1051 = vld [vmem:[#allocation5 + $0xa40] sm:$0xff]
        %v1052 = vld [vmem:[#allocation5 + $0xa48] sm:$0xff]
        %v1053 = vld [vmem:[#allocation5 + $0xa50] sm:$0xff]
        %v1054 = vld [vmem:[#allocation5 + $0xa58] sm:$0xff]
        %v1055 = vld [vmem:[#allocation5 + $0xa60] sm:$0xff]
        %v1056 = vld [vmem:[#allocation5 + $0xa68] sm:$0xff]
        %v1057 = vld [vmem:[#allocation5 + $0xa70] sm:$0xff]
        %v1058 = vld [vmem:[#allocation5 + $0xa78] sm:$0xff]
        %v1059 = vld [vmem:[#allocation5 + $0xa80] sm:$0xff]
        %v1060 = vld [vmem:[#allocation5 + $0xa88] sm:$0xff]
        %v1061 = vld [vmem:[#allocation5 + $0xa90] sm:$0xff]
        %v1062 = vld [vmem:[#allocation5 + $0xa98] sm:$0xff]
        %v1063 = vld [vmem:[#allocation5 + $0xaa0] sm:$0xff]
        %v1064 = vld [vmem:[#allocation5 + $0xaa8] sm:$0xff]
        %v1065 = vld [vmem:[#allocation5 + $0xab0] sm:$0xff]
        %v1066 = vld [vmem:[#allocation5 + $0xab8] sm:$0xff]
        %v1067 = vld [vmem:[#allocation5 + $0xac0] sm:$0xff]
        %v1068 = vld [vmem:[#allocation5 + $0xac8] sm:$0xff]
        %v1069 = vld [vmem:[#allocation5 + $0xad0] sm:$0xff]
        %v1070 = vld [vmem:[#allocation5 + $0xad8] sm:$0xff]
        %v1071 = vld [vmem:[#allocation5 + $0xae0] sm:$0xff]
        %v1072 = vld [vmem:[#allocation5 + $0xae8] sm:$0xff]
        %v1073 = vld [vmem:[#allocation5 + $0xaf0] sm:$0xff]
        %v1074 = vld [vmem:[#allocation5 + $0xaf8] sm:$0xff]
        %v1075 = vld [vmem:[#allocation5 + $0xb00] sm:$0xff]
        %v1076 = vld [vmem:[#allocation5 + $0xb08] sm:$0xff]
        %v1077 = vld [vmem:[#allocation5 + $0xb10] sm:$0xff]
        %v1078 = vld [vmem:[#allocation5 + $0xb18] sm:$0xff]
        %v1079 = vld [vmem:[#allocation5 + $0xb20] sm:$0xff]
        %v1080 = vld [vmem:[#allocation5 + $0xb28] sm:$0xff]
        %v1081 = vld [vmem:[#allocation5 + $0xb30] sm:$0xff]
        %v1082 = vld [vmem:[#allocation5 + $0xb38] sm:$0xff]
        %v1083 = vld [vmem:[#allocation5 + $0xb40] sm:$0xff]
        %v1084 = vld [vmem:[#allocation5 + $0xb48] sm:$0xff]
        %v1085 = vld [vmem:[#allocation5 + $0xb50] sm:$0xff]
        %v1086 = vld [vmem:[#allocation5 + $0xb58] sm:$0xff]
        %v1087 = vld [vmem:[#allocation5 + $0xb60] sm:$0xff]
        %v1088 = vld [vmem:[#allocation5 + $0xb68] sm:$0xff]
        %v1089 = vld [vmem:[#allocation5 + $0xb70] sm:$0xff]
        %v1090 = vld [vmem:[#allocation5 + $0xb78] sm:$0xff]
        %v1091 = vld [vmem:[#allocation5 + $0xb80] sm:$0xff]
        %v1092 = vld [vmem:[#allocation5 + $0xb88] sm:$0xff]
        %v1093 = vld [vmem:[#allocation5 + $0xb90] sm:$0xff]
        %v1094 = vld [vmem:[#allocation5 + $0xb98] sm:$0xff]
        %v1095 = vld [vmem:[#allocation5 + $0xba0] sm:$0xff]
        %v1096 = vld [vmem:[#allocation5 + $0xba8] sm:$0xff]
        %v1097 = vld [vmem:[#allocation5 + $0xbb0] sm:$0xff]
        %v1098 = vld [vmem:[#allocation5 + $0xbb8] sm:$0xff]
        %v1099 = vld [vmem:[#allocation5 + $0xbc0] sm:$0xff]
        %v1100 = vld [vmem:[#allocation5 + $0xbc8] sm:$0xff]
        %v1101 = vld [vmem:[#allocation5 + $0xbd0] sm:$0xff]
        %v1102 = vld [vmem:[#allocation5 + $0xbd8] sm:$0xff]
        %v1103 = vld [vmem:[#allocation5 + $0xbe0] sm:$0xff]
        %v1104 = vld [vmem:[#allocation5 + $0xbe8] sm:$0xff]
        %v1105 = vld [vmem:[#allocation5 + $0xbf0] sm:$0xff]
        %v1106 = vld [vmem:[#allocation5 + $0xbf8] sm:$0xff]
        %vm1107 = vcmask 523264
        %v1109 = vsel %vm1107, %v679, 0
        %v1112 = vsel %vm1107, %v685, 0
        %v1115 = vsel %vm1107, %v691, 0
        %v1118 = vsel %vm1107, %v697, 0
        %v1121 = vsel %vm1107, %v703, 0
        %v1124 = vsel %vm1107, %v709, 0
        %v1127 = vsel %vm1107, %v715, 0
        %v1130 = vsel %vm1107, %v721, 0
        %1132 = vmatprep.subr.mxu0 %v724
        %1133 = vmatpush1.msra.mxu0 %v723
        %1134 = vmatprep.subr.mxu0 %v740
        %1135 = vmatpush1.msra.mxu0 %v739
        %1136 = vmatprep.subr.mxu0 %v756
        %1137 = vmatpush1.msra.mxu0 %v755
        %1138 = vmatprep.subr.mxu0 %v772
        %1139 = vmatpush1.msra.mxu0 %v771
        %1140 = vmatprep.subr.mxu0 %v788
        %1141 = vmatpush1.msra.mxu0 %v787
        %1142 = vmatprep.subr.mxu0 %v804
        %1143 = vmatpush1.msra.mxu0 %v803
        %1144 = vmatprep.subr.mxu0 %v820
        %1145 = vmatpush1.msra.mxu0 %v819
        %1146 = vmatprep.subr.mxu0 %v836
        %1147 = vmatpush1.msra.mxu0 %v835
        %1148 = vmatprep.subr.mxu0 %v852
        %1149 = vmatpush1.msra.mxu0 %v851
        %1150 = vmatprep.subr.mxu0 %v868
        %1151 = vmatpush1.msra.mxu0 %v867
        %1152 = vmatprep.subr.mxu0 %v884
        %1153 = vmatpush1.msra.mxu0 %v883
        %1154 = vmatprep.subr.mxu0 %v900
        %1155 = vmatpush1.msra.mxu0 %v899
        %1156 = vmatprep.subr.mxu0 %v916
        %1157 = vmatpush1.msra.mxu0 %v915
        %1158 = vmatprep.subr.mxu0 %v932
        %1159 = vmatpush1.msra.mxu0 %v931
        %1160 = vmatprep.subr.mxu0 %v948
        %1161 = vmatpush1.msra.mxu0 %v947
        %1162 = vmatprep.subr.mxu0 %v964
        %1163 = vmatpush1.msra.mxu0 %v963
        %1164 = vmatprep.subr.mxu0 %v980
        %1165 = vmatpush1.msra.mxu0 %v979
        %1166 = vmatprep.subr.mxu0 %v996
        %1167 = vmatpush1.msra.mxu0 %v995
        %1168 = vmatprep.subr.mxu0 %v1012
        %1169 = vmatpush1.msra.mxu0 %v1011
        %1170 = vmatprep.subr.mxu0 %v1028
        %1171 = vmatpush1.msra.mxu0 %v1027
        %1172 = vmatprep.subr.mxu0 %v1044
        %1173 = vmatpush1.msra.mxu0 %v1043
        %1174 = vmatprep.subr.mxu0 %v1060
        %1175 = vmatpush1.msra.mxu0 %v1059
        %1176 = vmatprep.subr.mxu0 %v1076
        %1177 = vmatpush1.msra.mxu0 %v1075
        %1178 = vmatprep.subr.mxu0 %v1092
        %1179 = vmatpush1.msra.mxu0 %v1091
        %1180 = vmatprep.subr.mxu0 0.0
        %1181 = vmatpush1.msra.mxu0 0.0
        %1182 = vmatprep.subr.mxu0 0.0
        %1183 = vmatpush1.msra.mxu0 0.0
        %1184 = vmatprep.subr.mxu0 0.0
        %1185 = vmatpush1.msra.mxu0 0.0
        %1186 = vmatprep.subr.mxu0 0.0
        %1187 = vmatpush1.msra.mxu0 0.0
        %1188 = vmatprep.subr.mxu0 0.0
        %1189 = vmatpush1.msra.mxu0 0.0
        %1190 = vmatprep.subr.mxu0 0.0
        %1191 = vmatpush1.msra.mxu0 0.0
        %1192 = vmatprep.subr.mxu0 0.0
        %1193 = vmatpush1.msra.mxu0 0.0
        %1194 = vmatprep.subr.mxu0 0.0
        %1195 = vmatpush1.msra.mxu0 0.0
        %1196 = vmatprep.mubr.f32.mxu0 %v1109
        %1197 = vmatmul.mubr.f32.gmra.mrb[0].mxu0 %v677
        %v1198 = vpop.f32.mrb[0].mxu0
        %v1199 = vadd.f32 0.0, %v1198
        %v1200 = vpop.f32.mrb[0].mxu0
        %v1201 = vadd.f32 0.0, %v1200
        %1202 = vmatprep.mubr.f32.mxu0 %v1112
        %1203 = vmatmul.mubr.f32.gmra.mrb[0].mxu0 %v683
        %v1204 = vpop.f32.mrb[0].mxu0
        %v1205 = vadd.f32 0.0, %v1204
        %v1206 = vpop.f32.mrb[0].mxu0
        %v1207 = vadd.f32 0.0, %v1206
        %1208 = vmatprep.mubr.f32.mxu0 %v1115
        %1209 = vmatmul.mubr.f32.gmra.mrb[0].mxu0 %v689
        %v1210 = vpop.f32.mrb[0].mxu0
        %v1211 = vadd.f32 0.0, %v1210
        %v1212 = vpop.f32.mrb[0].mxu0
        %v1213 = vadd.f32 0.0, %v1212
        %1214 = vmatprep.mubr.f32.mxu0 %v1118
        %1215 = vmatmul.mubr.f32.gmra.mrb[0].mxu0 %v695
        %v1216 = vpop.f32.mrb[0].mxu0
        %v1217 = vadd.f32 0.0, %v1216
        %v1218 = vpop.f32.mrb[0].mxu0
        %v1219 = vadd.f32 0.0, %v1218
        %1220 = vmatprep.mubr.f32.mxu0 %v1121
        %1221 = vmatmul.mubr.f32.gmra.mrb[0].mxu0 %v701
        %v1222 = vpop.f32.mrb[0].mxu0
        %v1223 = vadd.f32 0.0, %v1222
        %v1224 = vpop.f32.mrb[0].mxu0
        %v1225 = vadd.f32 0.0, %v1224
        %1226 = vmatprep.mubr.f32.mxu0 %v1124
        %1227 = vmatmul.mubr.f32.gmra.mrb[0].mxu0 %v707
        %v1228 = vpop.f32.mrb[0].mxu0
        %v1229 = vadd.f32 0.0, %v1228
        %v1230 = vpop.f32.mrb[0].mxu0
        %v1231 = vadd.f32 0.0, %v1230
        %1232 = vmatprep.mubr.f32.mxu0 %v1127
        %1233 = vmatmul.mubr.f32.gmra.mrb[0].mxu0 %v713
        %v1234 = vpop.f32.mrb[0].mxu0
        %v1235 = vadd.f32 0.0, %v1234
        %v1236 = vpop.f32.mrb[0].mxu0
        %v1237 = vadd.f32 0.0, %v1236
        %1238 = vmatprep.mubr.f32.mxu0 %v1130
        %1239 = vmatmul.mubr.f32.gmra.mrb[0].mxu0 %v719
        %v1240 = vpop.f32.mrb[0].mxu0
        %v1241 = vadd.f32 0.0, %v1240
        %v1242 = vpop.f32.mrb[0].mxu0
        %v1243 = vadd.f32 0.0, %v1242
        %1244 = vdwg.mxu0
        %1245 = vmatprep.subr.mxu0 %v726
        %1246 = vmatpush1.msra.mxu0 %v725
        %1247 = vmatprep.subr.mxu0 %v742
        %1248 = vmatpush1.msra.mxu0 %v741
        %1249 = vmatprep.subr.mxu0 %v758
        %1250 = vmatpush1.msra.mxu0 %v757
        %1251 = vmatprep.subr.mxu0 %v774
        %1252 = vmatpush1.msra.mxu0 %v773
        %1253 = vmatprep.subr.mxu0 %v790
        %1254 = vmatpush1.msra.mxu0 %v789
        %1255 = vmatprep.subr.mxu0 %v806
        %1256 = vmatpush1.msra.mxu0 %v805
        %1257 = vmatprep.subr.mxu0 %v822
        %1258 = vmatpush1.msra.mxu0 %v821
        %1259 = vmatprep.subr.mxu0 %v838
        %1260 = vmatpush1.msra.mxu0 %v837
        %1261 = vmatprep.subr.mxu0 %v854
        %1262 = vmatpush1.msra.mxu0 %v853
        %1263 = vmatprep.subr.mxu0 %v870
        %1264 = vmatpush1.msra.mxu0 %v869
        %1265 = vmatprep.subr.mxu0 %v886
        %1266 = vmatpush1.msra.mxu0 %v885
        %1267 = vmatprep.subr.mxu0 %v902
        %1268 = vmatpush1.msra.mxu0 %v901
        %1269 = vmatprep.subr.mxu0 %v918
        %1270 = vmatpush1.msra.mxu0 %v917
        %1271 = vmatprep.subr.mxu0 %v934
        %1272 = vmatpush1.msra.mxu0 %v933
        %1273 = vmatprep.subr.mxu0 %v950
        %1274 = vmatpush1.msra.mxu0 %v949
        %1275 = vmatprep.subr.mxu0 %v966
        %1276 = vmatpush1.msra.mxu0 %v965
        %1277 = vmatprep.subr.mxu0 %v982
        %1278 = vmatpush1.msra.mxu0 %v981
        %1279 = vmatprep.subr.mxu0 %v998
        %1280 = vmatpush1.msra.mxu0 %v997
        %1281 = vmatprep.subr.mxu0 %v1014
        %1282 = vmatpush1.msra.mxu0 %v1013
        %1283 = vmatprep.subr.mxu0 %v1030
        %1284 = vmatpush1.msra.mxu0 %v1029
        %1285 = vmatprep.subr.mxu0 %v1046
        %1286 = vmatpush1.msra.mxu0 %v1045
        %1287 = vmatprep.subr.mxu0 %v1062
        %1288 = vmatpush1.msra.mxu0 %v1061
        %1289 = vmatprep.subr.mxu0 %v1078
        %1290 = vmatpush1.msra.mxu0 %v1077
        %1291 = vmatprep.subr.mxu0 %v1094
        %1292 = vmatpush1.msra.mxu0 %v1093
        %1293 = vmatprep.subr.mxu0 0.0
        %1294 = vmatpush1.msra.mxu0 0.0
        %1295 = vmatprep.subr.mxu0 0.0
        %1296 = vmatpush1.msra.mxu0 0.0
        %1297 = vmatprep.subr.mxu0 0.0
        %1298 = vmatpush1.msra.mxu0 0.0
        %1299 = vmatprep.subr.mxu0 0.0
        %1300 = vmatpush1.msra.mxu0 0.0
        %1301 = vmatprep.subr.mxu0 0.0
        %1302 = vmatpush1.msra.mxu0 0.0
        %1303 = vmatprep.subr.mxu0 0.0
        %1304 = vmatpush1.msra.mxu0 0.0
        %1305 = vmatprep.subr.mxu0 0.0
        %1306 = vmatpush1.msra.mxu0 0.0
        %1307 = vmatprep.subr.mxu0 0.0
        %1308 = vmatpush1.msra.mxu0 0.0
        %1309 = vmatprep.mubr.f32.mxu0 %v1109
        %1310 = vmatmul.mubr.f32.gmra.mrb[0].mxu0 %v677
        %v1311 = vpop.f32.mrb[0].mxu0
        %v1312 = vadd.f32 0.0, %v1311
        %v1313 = vpop.f32.mrb[0].mxu0
        %v1314 = vadd.f32 0.0, %v1313
        %1315 = vmatprep.mubr.f32.mxu0 %v1112
        %1316 = vmatmul.mubr.f32.gmra.mrb[0].mxu0 %v683
        %v1317 = vpop.f32.mrb[0].mxu0
        %v1318 = vadd.f32 0.0, %v1317
        %v1319 = vpop.f32.mrb[0].mxu0
        %v1320 = vadd.f32 0.0, %v1319
        %1321 = vmatprep.mubr.f32.mxu0 %v1115
        %1322 = vmatmul.mubr.f32.gmra.mrb[0].mxu0 %v689
        %v1323 = vpop.f32.mrb[0].mxu0
        %v1324 = vadd.f32 0.0, %v1323
        %v1325 = vpop.f32.mrb[0].mxu0
        %v1326 = vadd.f32 0.0, %v1325
        %1327 = vmatprep.mubr.f32.mxu0 %v1118
        %1328 = vmatmul.mubr.f32.gmra.mrb[0].mxu0 %v695
        %v1329 = vpop.f32.mrb[0].mxu0
        %v1330 = vadd.f32 0.0, %v1329
        %v1331 = vpop.f32.mrb[0].mxu0
        %v1332 = vadd.f32 0.0, %v1331
        %1333 = vmatprep.mubr.f32.mxu0 %v1121
        %1334 = vmatmul.mubr.f32.gmra.mrb[0].mxu0 %v701
        %v1335 = vpop.f32.mrb[0].mxu0
        %v1336 = vadd.f32 0.0, %v1335
        %v1337 = vpop.f32.mrb[0].mxu0
        %v1338 = vadd.f32 0.0, %v1337
        %1339 = vmatprep.mubr.f32.mxu0 %v1124
        %1340 = vmatmul.mubr.f32.gmra.mrb[0].mxu0 %v707
        %v1341 = vpop.f32.mrb[0].mxu0
        %v1342 = vadd.f32 0.0, %v1341
        %v1343 = vpop.f32.mrb[0].mxu0
        %v1344 = vadd.f32 0.0, %v1343
        %1345 = vmatprep.mubr.f32.mxu0 %v1127
        %1346 = vmatmul.mubr.f32.gmra.mrb[0].mxu0 %v713
        %v1347 = vpop.f32.mrb[0].mxu0
        %v1348 = vadd.f32 0.0, %v1347
        %v1349 = vpop.f32.mrb[0].mxu0
        %v1350 = vadd.f32 0.0, %v1349
        %1351 = vmatprep.mubr.f32.mxu0 %v1130
        %1352 = vmatmul.mubr.f32.gmra.mrb[0].mxu0 %v719
        %v1353 = vpop.f32.mrb[0].mxu0
        %v1354 = vadd.f32 0.0, %v1353
        %v1355 = vpop.f32.mrb[0].mxu0
        %v1356 = vadd.f32 0.0, %v1355
        %1357 = vdwg.mxu0
        %1358 = vmatprep.subr.mxu0 %v728
        %1359 = vmatpush1.msra.mxu0 %v727
        %1360 = vmatprep.subr.mxu0 %v744
        %1361 = vmatpush1.msra.mxu0 %v743
        %1362 = vmatprep.subr.mxu0 %v760
        %1363 = vmatpush1.msra.mxu0 %v759
        %1364 = vmatprep.subr.mxu0 %v776
        %1365 = vmatpush1.msra.mxu0 %v775
        %1366 = vmatprep.subr.mxu0 %v792
        %1367 = vmatpush1.msra.mxu0 %v791
        %1368 = vmatprep.subr.mxu0 %v808
        %1369 = vmatpush1.msra.mxu0 %v807
        %1370 = vmatprep.subr.mxu0 %v824
        %1371 = vmatpush1.msra.mxu0 %v823
        %1372 = vmatprep.subr.mxu0 %v840
        %1373 = vmatpush1.msra.mxu0 %v839
        %1374 = vmatprep.subr.mxu0 %v856
        %1375 = vmatpush1.msra.mxu0 %v855
        %1376 = vmatprep.subr.mxu0 %v872
        %1377 = vmatpush1.msra.mxu0 %v871
        %1378 = vmatprep.subr.mxu0 %v888
        %1379 = vmatpush1.msra.mxu0 %v887
        %1380 = vmatprep.subr.mxu0 %v904
        %1381 = vmatpush1.msra.mxu0 %v903
        %1382 = vmatprep.subr.mxu0 %v920
        %1383 = vmatpush1.msra.mxu0 %v919
        %1384 = vmatprep.subr.mxu0 %v936
        %1385 = vmatpush1.msra.mxu0 %v935
        %1386 = vmatprep.subr.mxu0 %v952
        %1387 = vmatpush1.msra.mxu0 %v951
        %1388 = vmatprep.subr.mxu0 %v968
        %1389 = vmatpush1.msra.mxu0 %v967
        %1390 = vmatprep.subr.mxu0 %v984
        %1391 = vmatpush1.msra.mxu0 %v983
        %1392 = vmatprep.subr.mxu0 %v1000
        %1393 = vmatpush1.msra.mxu0 %v999
        %1394 = vmatprep.subr.mxu0 %v1016
        %1395 = vmatpush1.msra.mxu0 %v1015
        %1396 = vmatprep.subr.mxu0 %v1032
        %1397 = vmatpush1.msra.mxu0 %v1031
        %1398 = vmatprep.subr.mxu0 %v1048
        %1399 = vmatpush1.msra.mxu0 %v1047
        %1400 = vmatprep.subr.mxu0 %v1064
        %1401 = vmatpush1.msra.mxu0 %v1063
        %1402 = vmatprep.subr.mxu0 %v1080
        %1403 = vmatpush1.msra.mxu0 %v1079
        %1404 = vmatprep.subr.mxu0 %v1096
        %1405 = vmatpush1.msra.mxu0 %v1095
        %1406 = vmatprep.subr.mxu0 0.0
        %1407 = vmatpush1.msra.mxu0 0.0
        %1408 = vmatprep.subr.mxu0 0.0
        %1409 = vmatpush1.msra.mxu0 0.0
        %1410 = vmatprep.subr.mxu0 0.0
        %1411 = vmatpush1.msra.mxu0 0.0
        %1412 = vmatprep.subr.mxu0 0.0
        %1413 = vmatpush1.msra.mxu0 0.0
        %1414 = vmatprep.subr.mxu0 0.0
        %1415 = vmatpush1.msra.mxu0 0.0
        %1416 = vmatprep.subr.mxu0 0.0
        %1417 = vmatpush1.msra.mxu0 0.0
        %1418 = vmatprep.subr.mxu0 0.0
        %1419 = vmatpush1.msra.mxu0 0.0
        %1420 = vmatprep.subr.mxu0 0.0
        %1421 = vmatpush1.msra.mxu0 0.0
        %1422 = vmatprep.mubr.f32.mxu0 %v1109
        %1423 = vmatmul.mubr.f32.gmra.mrb[0].mxu0 %v677
        %v1424 = vpop.f32.mrb[0].mxu0
        %v1425 = vadd.f32 0.0, %v1424
        %v1426 = vpop.f32.mrb[0].mxu0
        %v1427 = vadd.f32 0.0, %v1426
        %1428 = vmatprep.mubr.f32.mxu0 %v1112
        %1429 = vmatmul.mubr.f32.gmra.mrb[0].mxu0 %v683
        %v1430 = vpop.f32.mrb[0].mxu0
        %v1431 = vadd.f32 0.0, %v1430
        %v1432 = vpop.f32.mrb[0].mxu0
        %v1433 = vadd.f32 0.0, %v1432
        %1434 = vmatprep.mubr.f32.mxu0 %v1115
        %1435 = vmatmul.mubr.f32.gmra.mrb[0].mxu0 %v689
        %v1436 = vpop.f32.mrb[0].mxu0
        %v1437 = vadd.f32 0.0, %v1436
        %v1438 = vpop.f32.mrb[0].mxu0
        %v1439 = vadd.f32 0.0, %v1438
        %1440 = vmatprep.mubr.f32.mxu0 %v1118
        %1441 = vmatmul.mubr.f32.gmra.mrb[0].mxu0 %v695
        %v1442 = vpop.f32.mrb[0].mxu0
        %v1443 = vadd.f32 0.0, %v1442
        %v1444 = vpop.f32.mrb[0].mxu0
        %v1445 = vadd.f32 0.0, %v1444
        %1446 = vmatprep.mubr.f32.mxu0 %v1121
        %1447 = vmatmul.mubr.f32.gmra.mrb[0].mxu0 %v701
        %v1448 = vpop.f32.mrb[0].mxu0
        %v1449 = vadd.f32 0.0, %v1448
        %v1450 = vpop.f32.mrb[0].mxu0
        %v1451 = vadd.f32 0.0, %v1450
        %1452 = vmatprep.mubr.f32.mxu0 %v1124
        %1453 = vmatmul.mubr.f32.gmra.mrb[0].mxu0 %v707
        %v1454 = vpop.f32.mrb[0].mxu0
        %v1455 = vadd.f32 0.0, %v1454
        %v1456 = vpop.f32.mrb[0].mxu0
        %v1457 = vadd.f32 0.0, %v1456
        %1458 = vmatprep.mubr.f32.mxu0 %v1127
        %1459 = vmatmul.mubr.f32.gmra.mrb[0].mxu0 %v713
        %v1460 = vpop.f32.mrb[0].mxu0
        %v1461 = vadd.f32 0.0, %v1460
        %v1462 = vpop.f32.mrb[0].mxu0
        %v1463 = vadd.f32 0.0, %v1462
        %1464 = vmatprep.mubr.f32.mxu0 %v1130
        %1465 = vmatmul.mubr.f32.gmra.mrb[0].mxu0 %v719
        %v1466 = vpop.f32.mrb[0].mxu0
        %v1467 = vadd.f32 0.0, %v1466
        %v1468 = vpop.f32.mrb[0].mxu0
        %v1469 = vadd.f32 0.0, %v1468
        %1470 = vdwg.mxu0
        %1471 = vmatprep.subr.mxu0 %v730
        %1472 = vmatpush1.msra.mxu0 %v729
        %1473 = vmatprep.subr.mxu0 %v746
        %1474 = vmatpush1.msra.mxu0 %v745
        %1475 = vmatprep.subr.mxu0 %v762
        %1476 = vmatpush1.msra.mxu0 %v761
        %1477 = vmatprep.subr.mxu0 %v778
        %1478 = vmatpush1.msra.mxu0 %v777
        %1479 = vmatprep.subr.mxu0 %v794
        %1480 = vmatpush1.msra.mxu0 %v793
        %1481 = vmatprep.subr.mxu0 %v810
        %1482 = vmatpush1.msra.mxu0 %v809
        %1483 = vmatprep.subr.mxu0 %v826
        %1484 = vmatpush1.msra.mxu0 %v825
        %1485 = vmatprep.subr.mxu0 %v842
        %1486 = vmatpush1.msra.mxu0 %v841
        %1487 = vmatprep.subr.mxu0 %v858
        %1488 = vmatpush1.msra.mxu0 %v857
        %1489 = vmatprep.subr.mxu0 %v874
        %1490 = vmatpush1.msra.mxu0 %v873
        %1491 = vmatprep.subr.mxu0 %v890
        %1492 = vmatpush1.msra.mxu0 %v889
        %1493 = vmatprep.subr.mxu0 %v906
        %1494 = vmatpush1.msra.mxu0 %v905
        %1495 = vmatprep.subr.mxu0 %v922
        %1496 = vmatpush1.msra.mxu0 %v921
        %1497 = vmatprep.subr.mxu0 %v938
        %1498 = vmatpush1.msra.mxu0 %v937
        %1499 = vmatprep.subr.mxu0 %v954
        %1500 = vmatpush1.msra.mxu0 %v953
        %1501 = vmatprep.subr.mxu0 %v970
        %1502 = vmatpush1.msra.mxu0 %v969
        %1503 = vmatprep.subr.mxu0 %v986
        %1504 = vmatpush1.msra.mxu0 %v985
        %1505 = vmatprep.subr.mxu0 %v1002
        %1506 = vmatpush1.msra.mxu0 %v1001
        %1507 = vmatprep.subr.mxu0 %v1018
        %1508 = vmatpush1.msra.mxu0 %v1017
        %1509 = vmatprep.subr.mxu0 %v1034
        %1510 = vmatpush1.msra.mxu0 %v1033
        %1511 = vmatprep.subr.mxu0 %v1050
        %1512 = vmatpush1.msra.mxu0 %v1049
        %1513 = vmatprep.subr.mxu0 %v1066
        %1514 = vmatpush1.msra.mxu0 %v1065
        %1515 = vmatprep.subr.mxu0 %v1082
        %1516 = vmatpush1.msra.mxu0 %v1081
        %1517 = vmatprep.subr.mxu0 %v1098
        %1518 = vmatpush1.msra.mxu0 %v1097
        %1519 = vmatprep.subr.mxu0 0.0
        %1520 = vmatpush1.msra.mxu0 0.0
        %1521 = vmatprep.subr.mxu0 0.0
        %1522 = vmatpush1.msra.mxu0 0.0
        %1523 = vmatprep.subr.mxu0 0.0
        %1524 = vmatpush1.msra.mxu0 0.0
        %1525 = vmatprep.subr.mxu0 0.0
        %1526 = vmatpush1.msra.mxu0 0.0
        %1527 = vmatprep.subr.mxu0 0.0
        %1528 = vmatpush1.msra.mxu0 0.0
        %1529 = vmatprep.subr.mxu0 0.0
        %1530 = vmatpush1.msra.mxu0 0.0
        %1531 = vmatprep.subr.mxu0 0.0
        %1532 = vmatpush1.msra.mxu0 0.0
        %1533 = vmatprep.subr.mxu0 0.0
        %1534 = vmatpush1.msra.mxu0 0.0
        %1535 = vmatprep.mubr.f32.mxu0 %v1109
        %1536 = vmatmul.mubr.f32.gmra.mrb[0].mxu0 %v677
        %v1537 = vpop.f32.mrb[0].mxu0
        %v1538 = vadd.f32 0.0, %v1537
        %v1539 = vpop.f32.mrb[0].mxu0
        %v1540 = vadd.f32 0.0, %v1539
        %1541 = vmatprep.mubr.f32.mxu0 %v1112
        %1542 = vmatmul.mubr.f32.gmra.mrb[0].mxu0 %v683
        %v1543 = vpop.f32.mrb[0].mxu0
        %v1544 = vadd.f32 0.0, %v1543
        %v1545 = vpop.f32.mrb[0].mxu0
        %v1546 = vadd.f32 0.0, %v1545
        %1547 = vmatprep.mubr.f32.mxu0 %v1115
        %1548 = vmatmul.mubr.f32.gmra.mrb[0].mxu0 %v689
        %v1549 = vpop.f32.mrb[0].mxu0
        %v1550 = vadd.f32 0.0, %v1549
        %v1551 = vpop.f32.mrb[0].mxu0
        %v1552 = vadd.f32 0.0, %v1551
        %1553 = vmatprep.mubr.f32.mxu0 %v1118
        %1554 = vmatmul.mubr.f32.gmra.mrb[0].mxu0 %v695
        %v1555 = vpop.f32.mrb[0].mxu0
        %v1556 = vadd.f32 0.0, %v1555
        %v1557 = vpop.f32.mrb[0].mxu0
        %v1558 = vadd.f32 0.0, %v1557
        %1559 = vmatprep.mubr.f32.mxu0 %v1121
        %1560 = vmatmul.mubr.f32.gmra.mrb[0].mxu0 %v701
        %v1561 = vpop.f32.mrb[0].mxu0
        %v1562 = vadd.f32 0.0, %v1561
        %v1563 = vpop.f32.mrb[0].mxu0
        %v1564 = vadd.f32 0.0, %v1563
        %1565 = vmatprep.mubr.f32.mxu0 %v1124
        %1566 = vmatmul.mubr.f32.gmra.mrb[0].mxu0 %v707
        %v1567 = vpop.f32.mrb[0].mxu0
        %v1568 = vadd.f32 0.0, %v1567
        %v1569 = vpop.f32.mrb[0].mxu0
        %v1570 = vadd.f32 0.0, %v1569
        %1571 = vmatprep.mubr.f32.mxu0 %v1127
        %1572 = vmatmul.mubr.f32.gmra.mrb[0].mxu0 %v713
        %v1573 = vpop.f32.mrb[0].mxu0
        %v1574 = vadd.f32 0.0, %v1573
        %v1575 = vpop.f32.mrb[0].mxu0
        %v1576 = vadd.f32 0.0, %v1575
        %1577 = vmatprep.mubr.f32.mxu0 %v1130
        %1578 = vmatmul.mubr.f32.gmra.mrb[0].mxu0 %v719
        %v1579 = vpop.f32.mrb[0].mxu0
        %v1580 = vadd.f32 0.0, %v1579
        %v1581 = vpop.f32.mrb[0].mxu0
        %v1582 = vadd.f32 0.0, %v1581
        %1583 = vdwg.mxu0
        %1584 = vmatprep.subr.mxu0 %v732
        %1585 = vmatpush1.msra.mxu0 %v731
        %1586 = vmatprep.subr.mxu0 %v748
        %1587 = vmatpush1.msra.mxu0 %v747
        %1588 = vmatprep.subr.mxu0 %v764
        %1589 = vmatpush1.msra.mxu0 %v763
        %1590 = vmatprep.subr.mxu0 %v780
        %1591 = vmatpush1.msra.mxu0 %v779
        %1592 = vmatprep.subr.mxu0 %v796
        %1593 = vmatpush1.msra.mxu0 %v795
        %1594 = vmatprep.subr.mxu0 %v812
        %1595 = vmatpush1.msra.mxu0 %v811
        %1596 = vmatprep.subr.mxu0 %v828
        %1597 = vmatpush1.msra.mxu0 %v827
        %1598 = vmatprep.subr.mxu0 %v844
        %1599 = vmatpush1.msra.mxu0 %v843
        %1600 = vmatprep.subr.mxu0 %v860
        %1601 = vmatpush1.msra.mxu0 %v859
        %1602 = vmatprep.subr.mxu0 %v876
        %1603 = vmatpush1.msra.mxu0 %v875
        %1604 = vmatprep.subr.mxu0 %v892
        %1605 = vmatpush1.msra.mxu0 %v891
        %1606 = vmatprep.subr.mxu0 %v908
        %1607 = vmatpush1.msra.mxu0 %v907
        %1608 = vmatprep.subr.mxu0 %v924
        %1609 = vmatpush1.msra.mxu0 %v923
        %1610 = vmatprep.subr.mxu0 %v940
        %1611 = vmatpush1.msra.mxu0 %v939
        %1612 = vmatprep.subr.mxu0 %v956
        %1613 = vmatpush1.msra.mxu0 %v955
        %1614 = vmatprep.subr.mxu0 %v972
        %1615 = vmatpush1.msra.mxu0 %v971
        %1616 = vmatprep.subr.mxu0 %v988
        %1617 = vmatpush1.msra.mxu0 %v987
        %1618 = vmatprep.subr.mxu0 %v1004
        %1619 = vmatpush1.msra.mxu0 %v1003
        %1620 = vmatprep.subr.mxu0 %v1020
        %1621 = vmatpush1.msra.mxu0 %v1019
        %1622 = vmatprep.subr.mxu0 %v1036
        %1623 = vmatpush1.msra.mxu0 %v1035
        %1624 = vmatprep.subr.mxu0 %v1052
        %1625 = vmatpush1.msra.mxu0 %v1051
        %1626 = vmatprep.subr.mxu0 %v1068
        %1627 = vmatpush1.msra.mxu0 %v1067
        %1628 = vmatprep.subr.mxu0 %v1084
        %1629 = vmatpush1.msra.mxu0 %v1083
        %1630 = vmatprep.subr.mxu0 %v1100
        %1631 = vmatpush1.msra.mxu0 %v1099
        %1632 = vmatprep.subr.mxu0 0.0
        %1633 = vmatpush1.msra.mxu0 0.0
        %1634 = vmatprep.subr.mxu0 0.0
        %1635 = vmatpush1.msra.mxu0 0.0
        %1636 = vmatprep.subr.mxu0 0.0
        %1637 = vmatpush1.msra.mxu0 0.0
        %1638 = vmatprep.subr.mxu0 0.0
        %1639 = vmatpush1.msra.mxu0 0.0
        %1640 = vmatprep.subr.mxu0 0.0
        %1641 = vmatpush1.msra.mxu0 0.0
        %1642 = vmatprep.subr.mxu0 0.0
        %1643 = vmatpush1.msra.mxu0 0.0
        %1644 = vmatprep.subr.mxu0 0.0
        %1645 = vmatpush1.msra.mxu0 0.0
        %1646 = vmatprep.subr.mxu0 0.0
        %1647 = vmatpush1.msra.mxu0 0.0
        %1648 = vmatprep.mubr.f32.mxu0 %v1109
        %1649 = vmatmul.mubr.f32.gmra.mrb[0].mxu0 %v677
        %v1650 = vpop.f32.mrb[0].mxu0
        %v1651 = vadd.f32 0.0, %v1650
        %v1652 = vpop.f32.mrb[0].mxu0
        %v1653 = vadd.f32 0.0, %v1652
        %1654 = vmatprep.mubr.f32.mxu0 %v1112
        %1655 = vmatmul.mubr.f32.gmra.mrb[0].mxu0 %v683
        %v1656 = vpop.f32.mrb[0].mxu0
        %v1657 = vadd.f32 0.0, %v1656
        %v1658 = vpop.f32.mrb[0].mxu0
        %v1659 = vadd.f32 0.0, %v1658
        %1660 = vmatprep.mubr.f32.mxu0 %v1115
        %1661 = vmatmul.mubr.f32.gmra.mrb[0].mxu0 %v689
        %v1662 = vpop.f32.mrb[0].mxu0
        %v1663 = vadd.f32 0.0, %v1662
        %v1664 = vpop.f32.mrb[0].mxu0
        %v1665 = vadd.f32 0.0, %v1664
        %1666 = vmatprep.mubr.f32.mxu0 %v1118
        %1667 = vmatmul.mubr.f32.gmra.mrb[0].mxu0 %v695
        %v1668 = vpop.f32.mrb[0].mxu0
        %v1669 = vadd.f32 0.0, %v1668
        %v1670 = vpop.f32.mrb[0].mxu0
        %v1671 = vadd.f32 0.0, %v1670
        %1672 = vmatprep.mubr.f32.mxu0 %v1121
        %1673 = vmatmul.mubr.f32.gmra.mrb[0].mxu0 %v701
        %v1674 = vpop.f32.mrb[0].mxu0
        %v1675 = vadd.f32 0.0, %v1674
        %v1676 = vpop.f32.mrb[0].mxu0
        %v1677 = vadd.f32 0.0, %v1676
        %1678 = vmatprep.mubr.f32.mxu0 %v1124
        %1679 = vmatmul.mubr.f32.gmra.mrb[0].mxu0 %v707
        %v1680 = vpop.f32.mrb[0].mxu0
        %v1681 = vadd.f32 0.0, %v1680
        %v1682 = vpop.f32.mrb[0].mxu0
        %v1683 = vadd.f32 0.0, %v1682
        %1684 = vmatprep.mubr.f32.mxu0 %v1127
        %1685 = vmatmul.mubr.f32.gmra.mrb[0].mxu0 %v713
        %v1686 = vpop.f32.mrb[0].mxu0
        %v1687 = vadd.f32 0.0, %v1686
        %v1688 = vpop.f32.mrb[0].mxu0
        %v1689 = vadd.f32 0.0, %v1688
        %1690 = vmatprep.mubr.f32.mxu0 %v1130
        %1691 = vmatmul.mubr.f32.gmra.mrb[0].mxu0 %v719
        %v1692 = vpop.f32.mrb[0].mxu0
        %v1693 = vadd.f32 0.0, %v1692
        %v1694 = vpop.f32.mrb[0].mxu0
        %v1695 = vadd.f32 0.0, %v1694
        %1696 = vdwg.mxu0
        %1697 = vmatprep.subr.mxu0 %v734
        %1698 = vmatpush1.msra.mxu0 %v733
        %1699 = vmatprep.subr.mxu0 %v750
        %1700 = vmatpush1.msra.mxu0 %v749
        %1701 = vmatprep.subr.mxu0 %v766
        %1702 = vmatpush1.msra.mxu0 %v765
        %1703 = vmatprep.subr.mxu0 %v782
        %1704 = vmatpush1.msra.mxu0 %v781
        %1705 = vmatprep.subr.mxu0 %v798
        %1706 = vmatpush1.msra.mxu0 %v797
        %1707 = vmatprep.subr.mxu0 %v814
        %1708 = vmatpush1.msra.mxu0 %v813
        %1709 = vmatprep.subr.mxu0 %v830
        %1710 = vmatpush1.msra.mxu0 %v829
        %1711 = vmatprep.subr.mxu0 %v846
        %1712 = vmatpush1.msra.mxu0 %v845
        %1713 = vmatprep.subr.mxu0 %v862
        %1714 = vmatpush1.msra.mxu0 %v861
        %1715 = vmatprep.subr.mxu0 %v878
        %1716 = vmatpush1.msra.mxu0 %v877
        %1717 = vmatprep.subr.mxu0 %v894
        %1718 = vmatpush1.msra.mxu0 %v893
        %1719 = vmatprep.subr.mxu0 %v910
        %1720 = vmatpush1.msra.mxu0 %v909
        %1721 = vmatprep.subr.mxu0 %v926
        %1722 = vmatpush1.msra.mxu0 %v925
        %1723 = vmatprep.subr.mxu0 %v942
        %1724 = vmatpush1.msra.mxu0 %v941
        %1725 = vmatprep.subr.mxu0 %v958
        %1726 = vmatpush1.msra.mxu0 %v957
        %1727 = vmatprep.subr.mxu0 %v974
        %1728 = vmatpush1.msra.mxu0 %v973
        %1729 = vmatprep.subr.mxu0 %v990
        %1730 = vmatpush1.msra.mxu0 %v989
        %1731 = vmatprep.subr.mxu0 %v1006
        %1732 = vmatpush1.msra.mxu0 %v1005
        %1733 = vmatprep.subr.mxu0 %v1022
        %1734 = vmatpush1.msra.mxu0 %v1021
        %1735 = vmatprep.subr.mxu0 %v1038
        %1736 = vmatpush1.msra.mxu0 %v1037
        %1737 = vmatprep.subr.mxu0 %v1054
        %1738 = vmatpush1.msra.mxu0 %v1053
        %1739 = vmatprep.subr.mxu0 %v1070
        %1740 = vmatpush1.msra.mxu0 %v1069
        %1741 = vmatprep.subr.mxu0 %v1086
        %1742 = vmatpush1.msra.mxu0 %v1085
        %1743 = vmatprep.subr.mxu0 %v1102
        %1744 = vmatpush1.msra.mxu0 %v1101
        %1745 = vmatprep.subr.mxu0 0.0
        %1746 = vmatpush1.msra.mxu0 0.0
        %1747 = vmatprep.subr.mxu0 0.0
        %1748 = vmatpush1.msra.mxu0 0.0
        %1749 = vmatprep.subr.mxu0 0.0
        %1750 = vmatpush1.msra.mxu0 0.0
        %1751 = vmatprep.subr.mxu0 0.0
        %1752 = vmatpush1.msra.mxu0 0.0
        %1753 = vmatprep.subr.mxu0 0.0
        %1754 = vmatpush1.msra.mxu0 0.0
        %1755 = vmatprep.subr.mxu0 0.0
        %1756 = vmatpush1.msra.mxu0 0.0
        %1757 = vmatprep.subr.mxu0 0.0
        %1758 = vmatpush1.msra.mxu0 0.0
        %1759 = vmatprep.subr.mxu0 0.0
        %1760 = vmatpush1.msra.mxu0 0.0
        %1761 = vmatprep.mubr.f32.mxu0 %v1109
        %1762 = vmatmul.mubr.f32.gmra.mrb[0].mxu0 %v677
        %v1763 = vpop.f32.mrb[0].mxu0
        %v1764 = vadd.f32 0.0, %v1763
        %v1765 = vpop.f32.mrb[0].mxu0
        %v1766 = vadd.f32 0.0, %v1765
        %1767 = vmatprep.mubr.f32.mxu0 %v1112
        %1768 = vmatmul.mubr.f32.gmra.mrb[0].mxu0 %v683
        %v1769 = vpop.f32.mrb[0].mxu0
        %v1770 = vadd.f32 0.0, %v1769
        %v1771 = vpop.f32.mrb[0].mxu0
        %v1772 = vadd.f32 0.0, %v1771
        %1773 = vmatprep.mubr.f32.mxu0 %v1115
        %1774 = vmatmul.mubr.f32.gmra.mrb[0].mxu0 %v689
        %v1775 = vpop.f32.mrb[0].mxu0
        %v1776 = vadd.f32 0.0, %v1775
        %v1777 = vpop.f32.mrb[0].mxu0
        %v1778 = vadd.f32 0.0, %v1777
        %1779 = vmatprep.mubr.f32.mxu0 %v1118
        %1780 = vmatmul.mubr.f32.gmra.mrb[0].mxu0 %v695
        %v1781 = vpop.f32.mrb[0].mxu0
        %v1782 = vadd.f32 0.0, %v1781
        %v1783 = vpop.f32.mrb[0].mxu0
        %v1784 = vadd.f32 0.0, %v1783
        %1785 = vmatprep.mubr.f32.mxu0 %v1121
        %1786 = vmatmul.mubr.f32.gmra.mrb[0].mxu0 %v701
        %v1787 = vpop.f32.mrb[0].mxu0
        %v1788 = vadd.f32 0.0, %v1787
        %v1789 = vpop.f32.mrb[0].mxu0
        %v1790 = vadd.f32 0.0, %v1789
        %1791 = vmatprep.mubr.f32.mxu0 %v1124
        %1792 = vmatmul.mubr.f32.gmra.mrb[0].mxu0 %v707
        %v1793 = vpop.f32.mrb[0].mxu0
        %v1794 = vadd.f32 0.0, %v1793
        %v1795 = vpop.f32.mrb[0].mxu0
        %v1796 = vadd.f32 0.0, %v1795
        %1797 = vmatprep.mubr.f32.mxu0 %v1127
        %1798 = vmatmul.mubr.f32.gmra.mrb[0].mxu0 %v713
        %v1799 = vpop.f32.mrb[0].mxu0
        %v1800 = vadd.f32 0.0, %v1799
        %v1801 = vpop.f32.mrb[0].mxu0
        %v1802 = vadd.f32 0.0, %v1801
        %1803 = vmatprep.mubr.f32.mxu0 %v1130
        %1804 = vmatmul.mubr.f32.gmra.mrb[0].mxu0 %v719
        %v1805 = vpop.f32.mrb[0].mxu0
        %v1806 = vadd.f32 0.0, %v1805
        %v1807 = vpop.f32.mrb[0].mxu0
        %v1808 = vadd.f32 0.0, %v1807
        %1809 = vdwg.mxu0
        %1810 = vmatprep.subr.mxu0 %v736
        %1811 = vmatpush1.msra.mxu0 %v735
        %1812 = vmatprep.subr.mxu0 %v752
        %1813 = vmatpush1.msra.mxu0 %v751
        %1814 = vmatprep.subr.mxu0 %v768
        %1815 = vmatpush1.msra.mxu0 %v767
        %1816 = vmatprep.subr.mxu0 %v784
        %1817 = vmatpush1.msra.mxu0 %v783
        %1818 = vmatprep.subr.mxu0 %v800
        %1819 = vmatpush1.msra.mxu0 %v799
        %1820 = vmatprep.subr.mxu0 %v816
        %1821 = vmatpush1.msra.mxu0 %v815
        %1822 = vmatprep.subr.mxu0 %v832
        %1823 = vmatpush1.msra.mxu0 %v831
        %1824 = vmatprep.subr.mxu0 %v848
        %1825 = vmatpush1.msra.mxu0 %v847
        %1826 = vmatprep.subr.mxu0 %v864
        %1827 = vmatpush1.msra.mxu0 %v863
        %1828 = vmatprep.subr.mxu0 %v880
        %1829 = vmatpush1.msra.mxu0 %v879
        %1830 = vmatprep.subr.mxu0 %v896
        %1831 = vmatpush1.msra.mxu0 %v895
        %1832 = vmatprep.subr.mxu0 %v912
        %1833 = vmatpush1.msra.mxu0 %v911
        %1834 = vmatprep.subr.mxu0 %v928
        %1835 = vmatpush1.msra.mxu0 %v927
        %1836 = vmatprep.subr.mxu0 %v944
        %1837 = vmatpush1.msra.mxu0 %v943
        %1838 = vmatprep.subr.mxu0 %v960
        %1839 = vmatpush1.msra.mxu0 %v959
        %1840 = vmatprep.subr.mxu0 %v976
        %1841 = vmatpush1.msra.mxu0 %v975
        %1842 = vmatprep.subr.mxu0 %v992
        %1843 = vmatpush1.msra.mxu0 %v991
        %1844 = vmatprep.subr.mxu0 %v1008
        %1845 = vmatpush1.msra.mxu0 %v1007
        %1846 = vmatprep.subr.mxu0 %v1024
        %1847 = vmatpush1.msra.mxu0 %v1023
        %1848 = vmatprep.subr.mxu0 %v1040
        %1849 = vmatpush1.msra.mxu0 %v1039
        %1850 = vmatprep.subr.mxu0 %v1056
        %1851 = vmatpush1.msra.mxu0 %v1055
        %1852 = vmatprep.subr.mxu0 %v1072
        %1853 = vmatpush1.msra.mxu0 %v1071
        %1854 = vmatprep.subr.mxu0 %v1088
        %1855 = vmatpush1.msra.mxu0 %v1087
        %1856 = vmatprep.subr.mxu0 %v1104
        %1857 = vmatpush1.msra.mxu0 %v1103
        %1858 = vmatprep.subr.mxu0 0.0
        %1859 = vmatpush1.msra.mxu0 0.0
        %1860 = vmatprep.subr.mxu0 0.0
        %1861 = vmatpush1.msra.mxu0 0.0
        %1862 = vmatprep.subr.mxu0 0.0
        %1863 = vmatpush1.msra.mxu0 0.0
        %1864 = vmatprep.subr.mxu0 0.0
        %1865 = vmatpush1.msra.mxu0 0.0
        %1866 = vmatprep.subr.mxu0 0.0
        %1867 = vmatpush1.msra.mxu0 0.0
        %1868 = vmatprep.subr.mxu0 0.0
        %1869 = vmatpush1.msra.mxu0 0.0
        %1870 = vmatprep.subr.mxu0 0.0
        %1871 = vmatpush1.msra.mxu0 0.0
        %1872 = vmatprep.subr.mxu0 0.0
        %1873 = vmatpush1.msra.mxu0 0.0
        %1874 = vmatprep.mubr.f32.mxu0 %v1109
        %1875 = vmatmul.mubr.f32.gmra.mrb[0].mxu0 %v677
        %v1876 = vpop.f32.mrb[0].mxu0
        %v1877 = vadd.f32 0.0, %v1876
        %v1878 = vpop.f32.mrb[0].mxu0
        %v1879 = vadd.f32 0.0, %v1878
        %1880 = vmatprep.mubr.f32.mxu0 %v1112
        %1881 = vmatmul.mubr.f32.gmra.mrb[0].mxu0 %v683
        %v1882 = vpop.f32.mrb[0].mxu0
        %v1883 = vadd.f32 0.0, %v1882
        %v1884 = vpop.f32.mrb[0].mxu0
        %v1885 = vadd.f32 0.0, %v1884
        %1886 = vmatprep.mubr.f32.mxu0 %v1115
        %1887 = vmatmul.mubr.f32.gmra.mrb[0].mxu0 %v689
        %v1888 = vpop.f32.mrb[0].mxu0
        %v1889 = vadd.f32 0.0, %v1888
        %v1890 = vpop.f32.mrb[0].mxu0
        %v1891 = vadd.f32 0.0, %v1890
        %1892 = vmatprep.mubr.f32.mxu0 %v1118
        %1893 = vmatmul.mubr.f32.gmra.mrb[0].mxu0 %v695
        %v1894 = vpop.f32.mrb[0].mxu0
        %v1895 = vadd.f32 0.0, %v1894
        %v1896 = vpop.f32.mrb[0].mxu0
        %v1897 = vadd.f32 0.0, %v1896
        %1898 = vmatprep.mubr.f32.mxu0 %v1121
        %1899 = vmatmul.mubr.f32.gmra.mrb[0].mxu0 %v701
        %v1900 = vpop.f32.mrb[0].mxu0
        %v1901 = vadd.f32 0.0, %v1900
        %v1902 = vpop.f32.mrb[0].mxu0
        %v1903 = vadd.f32 0.0, %v1902
        %1904 = vmatprep.mubr.f32.mxu0 %v1124
        %1905 = vmatmul.mubr.f32.gmra.mrb[0].mxu0 %v707
        %v1906 = vpop.f32.mrb[0].mxu0
        %v1907 = vadd.f32 0.0, %v1906
        %v1908 = vpop.f32.mrb[0].mxu0
        %v1909 = vadd.f32 0.0, %v1908
        %1910 = vmatprep.mubr.f32.mxu0 %v1127
        %1911 = vmatmul.mubr.f32.gmra.mrb[0].mxu0 %v713
        %v1912 = vpop.f32.mrb[0].mxu0
        %v1913 = vadd.f32 0.0, %v1912
        %v1914 = vpop.f32.mrb[0].mxu0
        %v1915 = vadd.f32 0.0, %v1914
        %1916 = vmatprep.mubr.f32.mxu0 %v1130
        %1917 = vmatmul.mubr.f32.gmra.mrb[0].mxu0 %v719
        %v1918 = vpop.f32.mrb[0].mxu0
        %v1919 = vadd.f32 0.0, %v1918
        %v1920 = vpop.f32.mrb[0].mxu0
        %v1921 = vadd.f32 0.0, %v1920
        %1922 = vdwg.mxu0
        %1923 = vmatprep.subr.mxu0 %v738
        %1924 = vmatpush1.msra.mxu0 %v737
        %1925 = vmatprep.subr.mxu0 %v754
        %1926 = vmatpush1.msra.mxu0 %v753
        %1927 = vmatprep.subr.mxu0 %v770
        %1928 = vmatpush1.msra.mxu0 %v769
        %1929 = vmatprep.subr.mxu0 %v786
        %1930 = vmatpush1.msra.mxu0 %v785
        %1931 = vmatprep.subr.mxu0 %v802
        %1932 = vmatpush1.msra.mxu0 %v801
        %1933 = vmatprep.subr.mxu0 %v818
        %1934 = vmatpush1.msra.mxu0 %v817
        %1935 = vmatprep.subr.mxu0 %v834
        %1936 = vmatpush1.msra.mxu0 %v833
        %1937 = vmatprep.subr.mxu0 %v850
        %1938 = vmatpush1.msra.mxu0 %v849
        %1939 = vmatprep.subr.mxu0 %v866
        %1940 = vmatpush1.msra.mxu0 %v865
        %1941 = vmatprep.subr.mxu0 %v882
        %1942 = vmatpush1.msra.mxu0 %v881
        %1943 = vmatprep.subr.mxu0 %v898
        %1944 = vmatpush1.msra.mxu0 %v897
        %1945 = vmatprep.subr.mxu0 %v914
        %1946 = vmatpush1.msra.mxu0 %v913
        %1947 = vmatprep.subr.mxu0 %v930
        %1948 = vmatpush1.msra.mxu0 %v929
        %1949 = vmatprep.subr.mxu0 %v946
        %1950 = vmatpush1.msra.mxu0 %v945
        %1951 = vmatprep.subr.mxu0 %v962
        %1952 = vmatpush1.msra.mxu0 %v961
        %1953 = vmatprep.subr.mxu0 %v978
        %1954 = vmatpush1.msra.mxu0 %v977
        %1955 = vmatprep.subr.mxu0 %v994
        %1956 = vmatpush1.msra.mxu0 %v993
        %1957 = vmatprep.subr.mxu0 %v1010
        %1958 = vmatpush1.msra.mxu0 %v1009
        %1959 = vmatprep.subr.mxu0 %v1026
        %1960 = vmatpush1.msra.mxu0 %v1025
        %1961 = vmatprep.subr.mxu0 %v1042
        %1962 = vmatpush1.msra.mxu0 %v1041
        %1963 = vmatprep.subr.mxu0 %v1058
        %1964 = vmatpush1.msra.mxu0 %v1057
        %1965 = vmatprep.subr.mxu0 %v1074
        %1966 = vmatpush1.msra.mxu0 %v1073
        %1967 = vmatprep.subr.mxu0 %v1090
        %1968 = vmatpush1.msra.mxu0 %v1089
        %1969 = vmatprep.subr.mxu0 %v1106
        %1970 = vmatpush1.msra.mxu0 %v1105
        %1971 = vmatprep.subr.mxu0 0.0
        %1972 = vmatpush1.msra.mxu0 0.0
        %1973 = vmatprep.subr.mxu0 0.0
        %1974 = vmatpush1.msra.mxu0 0.0
        %1975 = vmatprep.subr.mxu0 0.0
        %1976 = vmatpush1.msra.mxu0 0.0
        %1977 = vmatprep.subr.mxu0 0.0
        %1978 = vmatpush1.msra.mxu0 0.0
        %1979 = vmatprep.subr.mxu0 0.0
        %1980 = vmatpush1.msra.mxu0 0.0
        %1981 = vmatprep.subr.mxu0 0.0
        %1982 = vmatpush1.msra.mxu0 0.0
        %1983 = vmatprep.subr.mxu0 0.0
        %1984 = vmatpush1.msra.mxu0 0.0
        %1985 = vmatprep.subr.mxu0 0.0
        %1986 = vmatpush1.msra.mxu0 0.0
        %1987 = vmatprep.mubr.f32.mxu0 %v1109
        %1988 = vmatmul.mubr.f32.gmra.mrb[0].mxu0 %v677
        %v1989 = vpop.f32.mrb[0].mxu0
        %v1990 = vadd.f32 0.0, %v1989
        %v1991 = vpop.f32.mrb[0].mxu0
        %v1992 = vadd.f32 0.0, %v1991
        %1993 = vmatprep.mubr.f32.mxu0 %v1112
        %1994 = vmatmul.mubr.f32.gmra.mrb[0].mxu0 %v683
        %v1995 = vpop.f32.mrb[0].mxu0
        %v1996 = vadd.f32 0.0, %v1995
        %v1997 = vpop.f32.mrb[0].mxu0
        %v1998 = vadd.f32 0.0, %v1997
        %1999 = vmatprep.mubr.f32.mxu0 %v1115
        %2000 = vmatmul.mubr.f32.gmra.mrb[0].mxu0 %v689
        %v2001 = vpop.f32.mrb[0].mxu0
        %v2002 = vadd.f32 0.0, %v2001
        %v2003 = vpop.f32.mrb[0].mxu0
        %v2004 = vadd.f32 0.0, %v2003
        %2005 = vmatprep.mubr.f32.mxu0 %v1118
        %2006 = vmatmul.mubr.f32.gmra.mrb[0].mxu0 %v695
        %v2007 = vpop.f32.mrb[0].mxu0
        %v2008 = vadd.f32 0.0, %v2007
        %v2009 = vpop.f32.mrb[0].mxu0
        %v2010 = vadd.f32 0.0, %v2009
        %2011 = vmatprep.mubr.f32.mxu0 %v1121
        %2012 = vmatmul.mubr.f32.gmra.mrb[0].mxu0 %v701
        %v2013 = vpop.f32.mrb[0].mxu0
        %v2014 = vadd.f32 0.0, %v2013
        %v2015 = vpop.f32.mrb[0].mxu0
        %v2016 = vadd.f32 0.0, %v2015
        %2017 = vmatprep.mubr.f32.mxu0 %v1124
        %2018 = vmatmul.mubr.f32.gmra.mrb[0].mxu0 %v707
        %v2019 = vpop.f32.mrb[0].mxu0
        %v2020 = vadd.f32 0.0, %v2019
        %v2021 = vpop.f32.mrb[0].mxu0
        %v2022 = vadd.f32 0.0, %v2021
        %2023 = vmatprep.mubr.f32.mxu0 %v1127
        %2024 = vmatmul.mubr.f32.gmra.mrb[0].mxu0 %v713
        %v2025 = vpop.f32.mrb[0].mxu0
        %v2026 = vadd.f32 0.0, %v2025
        %v2027 = vpop.f32.mrb[0].mxu0
        %v2028 = vadd.f32 0.0, %v2027
        %2029 = vmatprep.mubr.f32.mxu0 %v1130
        %2030 = vmatmul.mubr.f32.gmra.mrb[0].mxu0 %v719
        %v2031 = vpop.f32.mrb[0].mxu0
        %v2032 = vadd.f32 0.0, %v2031
        %v2033 = vpop.f32.mrb[0].mxu0
        %v2034 = vadd.f32 0.0, %v2033
        %2035 = vdwg.mxu0
        %v2036 = vld [vmem:[%s3] sm:$0xff]
        %v2037 = vld [vmem:[%s3 + $0x8] sm:$0xff]
        %v2038 = vld [vmem:[%s3 + $0x10] sm:$0xff]
        %v2039 = vld [vmem:[%s3 + $0x18] sm:$0xff]
        %v2040 = vld [vmem:[%s3 + $0x20] sm:$0xff]
        %v2041 = vld [vmem:[%s3 + $0x28] sm:$0xff]
        %v2042 = vld [vmem:[%s3 + $0x30] sm:$0xff]
        %v2043 = vld [vmem:[%s3 + $0x38] sm:$0xff]
        %2045 = vset.pattern.permute.xlu0 0
        %2046 = vperm.xlu0 %2045, %v2036
        %v2047 = vpop.permute.xlu0 %2046
        %2050 = vset.pattern.permute.xlu0 0
        %2051 = vperm.xlu0 %2050, %v2037
        %v2052 = vpop.permute.xlu0 %2051
        %2055 = vset.pattern.permute.xlu0 0
        %2056 = vperm.xlu0 %2055, %v2038
        %v2057 = vpop.permute.xlu0 %2056
        %2060 = vset.pattern.permute.xlu0 0
        %2061 = vperm.xlu0 %2060, %v2039
        %v2062 = vpop.permute.xlu0 %2061
        %2065 = vset.pattern.permute.xlu0 0
        %2066 = vperm.xlu0 %2065, %v2040
        %v2067 = vpop.permute.xlu0 %2066
        %2070 = vset.pattern.permute.xlu0 0
        %2071 = vperm.xlu0 %2070, %v2041
        %v2072 = vpop.permute.xlu0 %2071
        %2075 = vset.pattern.permute.xlu0 0
        %2076 = vperm.xlu0 %2075, %v2042
        %v2077 = vpop.permute.xlu0 %2076
        %2080 = vset.pattern.permute.xlu0 0
        %2081 = vperm.xlu0 %2080, %v2043
        %v2082 = vpop.permute.xlu0 %2081
        %v2084 = vmul.f32 %v2047, %v1199
        %v2085 = vmul.f32 %v2047, %v1201
        %v2086 = vmul.f32 %v2052, %v1205
        %v2087 = vmul.f32 %v2052, %v1207
        %v2088 = vmul.f32 %v2057, %v1211
        %v2089 = vmul.f32 %v2057, %v1213
        %v2090 = vmul.f32 %v2062, %v1217
        %v2091 = vmul.f32 %v2062, %v1219
        %v2092 = vmul.f32 %v2067, %v1223
        %v2093 = vmul.f32 %v2067, %v1225
        %v2094 = vmul.f32 %v2072, %v1229
        %v2095 = vmul.f32 %v2072, %v1231
        %v2096 = vmul.f32 %v2077, %v1235
        %v2097 = vmul.f32 %v2077, %v1237
        %v2098 = vmul.f32 %v2082, %v1241
        %v2099 = vmul.f32 %v2082, %v1243
        %2100 = vset.pattern.permute.xlu0 1
        %2101 = vperm.xlu0 %2100, %v2036
        %v2102 = vpop.permute.xlu0 %2101
        %2104 = vset.pattern.permute.xlu0 1
        %2105 = vperm.xlu0 %2104, %v2037
        %v2106 = vpop.permute.xlu0 %2105
        %2108 = vset.pattern.permute.xlu0 1
        %2109 = vperm.xlu0 %2108, %v2038
        %v2110 = vpop.permute.xlu0 %2109
        %2112 = vset.pattern.permute.xlu0 1
        %2113 = vperm.xlu0 %2112, %v2039
        %v2114 = vpop.permute.xlu0 %2113
        %2116 = vset.pattern.permute.xlu0 1
        %2117 = vperm.xlu0 %2116, %v2040
        %v2118 = vpop.permute.xlu0 %2117
        %2120 = vset.pattern.permute.xlu0 1
        %2121 = vperm.xlu0 %2120, %v2041
        %v2122 = vpop.permute.xlu0 %2121
        %2124 = vset.pattern.permute.xlu0 1
        %2125 = vperm.xlu0 %2124, %v2042
        %v2126 = vpop.permute.xlu0 %2125
        %2128 = vset.pattern.permute.xlu0 1
        %2129 = vperm.xlu0 %2128, %v2043
        %v2130 = vpop.permute.xlu0 %2129
        %v2132 = vmul.f32 %v2102, %v1312
        %v2133 = vmul.f32 %v2102, %v1314
        %v2134 = vmul.f32 %v2106, %v1318
        %v2135 = vmul.f32 %v2106, %v1320
        %v2136 = vmul.f32 %v2110, %v1324
        %v2137 = vmul.f32 %v2110, %v1326
        %v2138 = vmul.f32 %v2114, %v1330
        %v2139 = vmul.f32 %v2114, %v1332
        %v2140 = vmul.f32 %v2118, %v1336
        %v2141 = vmul.f32 %v2118, %v1338
        %v2142 = vmul.f32 %v2122, %v1342
        %v2143 = vmul.f32 %v2122, %v1344
        %v2144 = vmul.f32 %v2126, %v1348
        %v2145 = vmul.f32 %v2126, %v1350
        %v2146 = vmul.f32 %v2130, %v1354
        %v2147 = vmul.f32 %v2130, %v1356
        %v2148 = vadd.f32 %v2084, %v2132
        %v2149 = vadd.f32 %v2085, %v2133
        %v2150 = vadd.f32 %v2086, %v2134
        %v2151 = vadd.f32 %v2087, %v2135
        %v2152 = vadd.f32 %v2088, %v2136
        %v2153 = vadd.f32 %v2089, %v2137
        %v2154 = vadd.f32 %v2090, %v2138
        %v2155 = vadd.f32 %v2091, %v2139
        %v2156 = vadd.f32 %v2092, %v2140
        %v2157 = vadd.f32 %v2093, %v2141
        %v2158 = vadd.f32 %v2094, %v2142
        %v2159 = vadd.f32 %v2095, %v2143
        %v2160 = vadd.f32 %v2096, %v2144
        %v2161 = vadd.f32 %v2097, %v2145
        %v2162 = vadd.f32 %v2098, %v2146
        %v2163 = vadd.f32 %v2099, %v2147
        %2164 = vset.pattern.permute.xlu0 2
        %2165 = vperm.xlu0 %2164, %v2036
        %v2166 = vpop.permute.xlu0 %2165
        %2168 = vset.pattern.permute.xlu0 2
        %2169 = vperm.xlu0 %2168, %v2037
        %v2170 = vpop.permute.xlu0 %2169
        %2172 = vset.pattern.permute.xlu0 2
        %2173 = vperm.xlu0 %2172, %v2038
        %v2174 = vpop.permute.xlu0 %2173
        %2176 = vset.pattern.permute.xlu0 2
        %2177 = vperm.xlu0 %2176, %v2039
        %v2178 = vpop.permute.xlu0 %2177
        %2180 = vset.pattern.permute.xlu0 2
        %2181 = vperm.xlu0 %2180, %v2040
        %v2182 = vpop.permute.xlu0 %2181
        %2184 = vset.pattern.permute.xlu0 2
        %2185 = vperm.xlu0 %2184, %v2041
        %v2186 = vpop.permute.xlu0 %2185
        %2188 = vset.pattern.permute.xlu0 2
        %2189 = vperm.xlu0 %2188, %v2042
        %v2190 = vpop.permute.xlu0 %2189
        %2192 = vset.pattern.permute.xlu0 2
        %2193 = vperm.xlu0 %2192, %v2043
        %v2194 = vpop.permute.xlu0 %2193
        %v2196 = vmul.f32 %v2166, %v1425
        %v2197 = vmul.f32 %v2166, %v1427
        %v2198 = vmul.f32 %v2170, %v1431
        %v2199 = vmul.f32 %v2170, %v1433
        %v2200 = vmul.f32 %v2174, %v1437
        %v2201 = vmul.f32 %v2174, %v1439
        %v2202 = vmul.f32 %v2178, %v1443
        %v2203 = vmul.f32 %v2178, %v1445
        %v2204 = vmul.f32 %v2182, %v1449
        %v2205 = vmul.f32 %v2182, %v1451
        %v2206 = vmul.f32 %v2186, %v1455
        %v2207 = vmul.f32 %v2186, %v1457
        %v2208 = vmul.f32 %v2190, %v1461
        %v2209 = vmul.f32 %v2190, %v1463
        %v2210 = vmul.f32 %v2194, %v1467
        %v2211 = vmul.f32 %v2194, %v1469
        %v2212 = vadd.f32 %v2148, %v2196
        %v2213 = vadd.f32 %v2149, %v2197
        %v2214 = vadd.f32 %v2150, %v2198
        %v2215 = vadd.f32 %v2151, %v2199
        %v2216 = vadd.f32 %v2152, %v2200
        %v2217 = vadd.f32 %v2153, %v2201
        %v2218 = vadd.f32 %v2154, %v2202
        %v2219 = vadd.f32 %v2155, %v2203
        %v2220 = vadd.f32 %v2156, %v2204
        %v2221 = vadd.f32 %v2157, %v2205
        %v2222 = vadd.f32 %v2158, %v2206
        %v2223 = vadd.f32 %v2159, %v2207
        %v2224 = vadd.f32 %v2160, %v2208
        %v2225 = vadd.f32 %v2161, %v2209
        %v2226 = vadd.f32 %v2162, %v2210
        %v2227 = vadd.f32 %v2163, %v2211
        %2228 = vset.pattern.permute.xlu0 3
        %2229 = vperm.xlu0 %2228, %v2036
        %v2230 = vpop.permute.xlu0 %2229
        %2232 = vset.pattern.permute.xlu0 3
        %2233 = vperm.xlu0 %2232, %v2037
        %v2234 = vpop.permute.xlu0 %2233
        %2236 = vset.pattern.permute.xlu0 3
        %2237 = vperm.xlu0 %2236, %v2038
        %v2238 = vpop.permute.xlu0 %2237
        %2240 = vset.pattern.permute.xlu0 3
        %2241 = vperm.xlu0 %2240, %v2039
        %v2242 = vpop.permute.xlu0 %2241
        %2244 = vset.pattern.permute.xlu0 3
        %2245 = vperm.xlu0 %2244, %v2040
        %v2246 = vpop.permute.xlu0 %2245
        %2248 = vset.pattern.permute.xlu0 3
        %2249 = vperm.xlu0 %2248, %v2041
        %v2250 = vpop.permute.xlu0 %2249
        %2252 = vset.pattern.permute.xlu0 3
        %2253 = vperm.xlu0 %2252, %v2042
        %v2254 = vpop.permute.xlu0 %2253
        %2256 = vset.pattern.permute.xlu0 3
        %2257 = vperm.xlu0 %2256, %v2043
        %v2258 = vpop.permute.xlu0 %2257
        %v2260 = vmul.f32 %v2230, %v1538
        %v2261 = vmul.f32 %v2230, %v1540
        %v2262 = vmul.f32 %v2234, %v1544
        %v2263 = vmul.f32 %v2234, %v1546
        %v2264 = vmul.f32 %v2238, %v1550
        %v2265 = vmul.f32 %v2238, %v1552
        %v2266 = vmul.f32 %v2242, %v1556
        %v2267 = vmul.f32 %v2242, %v1558
        %v2268 = vmul.f32 %v2246, %v1562
        %v2269 = vmul.f32 %v2246, %v1564
        %v2270 = vmul.f32 %v2250, %v1568
        %v2271 = vmul.f32 %v2250, %v1570
        %v2272 = vmul.f32 %v2254, %v1574
        %v2273 = vmul.f32 %v2254, %v1576
        %v2274 = vmul.f32 %v2258, %v1580
        %v2275 = vmul.f32 %v2258, %v1582
        %v2276 = vadd.f32 %v2212, %v2260
        %v2277 = vadd.f32 %v2213, %v2261
        %v2278 = vadd.f32 %v2214, %v2262
        %v2279 = vadd.f32 %v2215, %v2263
        %v2280 = vadd.f32 %v2216, %v2264
        %v2281 = vadd.f32 %v2217, %v2265
        %v2282 = vadd.f32 %v2218, %v2266
        %v2283 = vadd.f32 %v2219, %v2267
        %v2284 = vadd.f32 %v2220, %v2268
        %v2285 = vadd.f32 %v2221, %v2269
        %v2286 = vadd.f32 %v2222, %v2270
        %v2287 = vadd.f32 %v2223, %v2271
        %v2288 = vadd.f32 %v2224, %v2272
        %v2289 = vadd.f32 %v2225, %v2273
        %v2290 = vadd.f32 %v2226, %v2274
        %v2291 = vadd.f32 %v2227, %v2275
        %2292 = vset.pattern.permute.xlu0 4
        %2293 = vperm.xlu0 %2292, %v2036
        %v2294 = vpop.permute.xlu0 %2293
        %2296 = vset.pattern.permute.xlu0 4
        %2297 = vperm.xlu0 %2296, %v2037
        %v2298 = vpop.permute.xlu0 %2297
        %2300 = vset.pattern.permute.xlu0 4
        %2301 = vperm.xlu0 %2300, %v2038
        %v2302 = vpop.permute.xlu0 %2301
        %2304 = vset.pattern.permute.xlu0 4
        %2305 = vperm.xlu0 %2304, %v2039
        %v2306 = vpop.permute.xlu0 %2305
        %2308 = vset.pattern.permute.xlu0 4
        %2309 = vperm.xlu0 %2308, %v2040
        %v2310 = vpop.permute.xlu0 %2309
        %2312 = vset.pattern.permute.xlu0 4
        %2313 = vperm.xlu0 %2312, %v2041
        %v2314 = vpop.permute.xlu0 %2313
        %2316 = vset.pattern.permute.xlu0 4
        %2317 = vperm.xlu0 %2316, %v2042
        %v2318 = vpop.permute.xlu0 %2317
        %2320 = vset.pattern.permute.xlu0 4
        %2321 = vperm.xlu0 %2320, %v2043
        %v2322 = vpop.permute.xlu0 %2321
        %v2324 = vmul.f32 %v2294, %v1651
        %v2325 = vmul.f32 %v2294, %v1653
        %v2326 = vmul.f32 %v2298, %v1657
        %v2327 = vmul.f32 %v2298, %v1659
        %v2328 = vmul.f32 %v2302, %v1663
        %v2329 = vmul.f32 %v2302, %v1665
        %v2330 = vmul.f32 %v2306, %v1669
        %v2331 = vmul.f32 %v2306, %v1671
        %v2332 = vmul.f32 %v2310, %v1675
        %v2333 = vmul.f32 %v2310, %v1677
        %v2334 = vmul.f32 %v2314, %v1681
        %v2335 = vmul.f32 %v2314, %v1683
        %v2336 = vmul.f32 %v2318, %v1687
        %v2337 = vmul.f32 %v2318, %v1689
        %v2338 = vmul.f32 %v2322, %v1693
        %v2339 = vmul.f32 %v2322, %v1695
        %v2340 = vadd.f32 %v2276, %v2324
        %v2341 = vadd.f32 %v2277, %v2325
        %v2342 = vadd.f32 %v2278, %v2326
        %v2343 = vadd.f32 %v2279, %v2327
        %v2344 = vadd.f32 %v2280, %v2328
        %v2345 = vadd.f32 %v2281, %v2329
        %v2346 = vadd.f32 %v2282, %v2330
        %v2347 = vadd.f32 %v2283, %v2331
        %v2348 = vadd.f32 %v2284, %v2332
        %v2349 = vadd.f32 %v2285, %v2333
        %v2350 = vadd.f32 %v2286, %v2334
        %v2351 = vadd.f32 %v2287, %v2335
        %v2352 = vadd.f32 %v2288, %v2336
        %v2353 = vadd.f32 %v2289, %v2337
        %v2354 = vadd.f32 %v2290, %v2338
        %v2355 = vadd.f32 %v2291, %v2339
        %2356 = vset.pattern.permute.xlu0 5
        %2357 = vperm.xlu0 %2356, %v2036
        %v2358 = vpop.permute.xlu0 %2357
        %2360 = vset.pattern.permute.xlu0 5
        %2361 = vperm.xlu0 %2360, %v2037
        %v2362 = vpop.permute.xlu0 %2361
        %2364 = vset.pattern.permute.xlu0 5
        %2365 = vperm.xlu0 %2364, %v2038
        %v2366 = vpop.permute.xlu0 %2365
        %2368 = vset.pattern.permute.xlu0 5
        %2369 = vperm.xlu0 %2368, %v2039
        %v2370 = vpop.permute.xlu0 %2369
        %2372 = vset.pattern.permute.xlu0 5
        %2373 = vperm.xlu0 %2372, %v2040
        %v2374 = vpop.permute.xlu0 %2373
        %2376 = vset.pattern.permute.xlu0 5
        %2377 = vperm.xlu0 %2376, %v2041
        %v2378 = vpop.permute.xlu0 %2377
        %2380 = vset.pattern.permute.xlu0 5
        %2381 = vperm.xlu0 %2380, %v2042
        %v2382 = vpop.permute.xlu0 %2381
        %2384 = vset.pattern.permute.xlu0 5
        %2385 = vperm.xlu0 %2384, %v2043
        %v2386 = vpop.permute.xlu0 %2385
        %v2388 = vmul.f32 %v2358, %v1764
        %v2389 = vmul.f32 %v2358, %v1766
        %v2390 = vmul.f32 %v2362, %v1770
        %v2391 = vmul.f32 %v2362, %v1772
        %v2392 = vmul.f32 %v2366, %v1776
        %v2393 = vmul.f32 %v2366, %v1778
        %v2394 = vmul.f32 %v2370, %v1782
        %v2395 = vmul.f32 %v2370, %v1784
        %v2396 = vmul.f32 %v2374, %v1788
        %v2397 = vmul.f32 %v2374, %v1790
        %v2398 = vmul.f32 %v2378, %v1794
        %v2399 = vmul.f32 %v2378, %v1796
        %v2400 = vmul.f32 %v2382, %v1800
        %v2401 = vmul.f32 %v2382, %v1802
        %v2402 = vmul.f32 %v2386, %v1806
        %v2403 = vmul.f32 %v2386, %v1808
        %v2404 = vadd.f32 %v2340, %v2388
        %v2405 = vadd.f32 %v2341, %v2389
        %v2406 = vadd.f32 %v2342, %v2390
        %v2407 = vadd.f32 %v2343, %v2391
        %v2408 = vadd.f32 %v2344, %v2392
        %v2409 = vadd.f32 %v2345, %v2393
        %v2410 = vadd.f32 %v2346, %v2394
        %v2411 = vadd.f32 %v2347, %v2395
        %v2412 = vadd.f32 %v2348, %v2396
        %v2413 = vadd.f32 %v2349, %v2397
        %v2414 = vadd.f32 %v2350, %v2398
        %v2415 = vadd.f32 %v2351, %v2399
        %v2416 = vadd.f32 %v2352, %v2400
        %v2417 = vadd.f32 %v2353, %v2401
        %v2418 = vadd.f32 %v2354, %v2402
        %v2419 = vadd.f32 %v2355, %v2403
        %2420 = vset.pattern.permute.xlu0 6
        %2421 = vperm.xlu0 %2420, %v2036
        %v2422 = vpop.permute.xlu0 %2421
        %2424 = vset.pattern.permute.xlu0 6
        %2425 = vperm.xlu0 %2424, %v2037
        %v2426 = vpop.permute.xlu0 %2425
        %2428 = vset.pattern.permute.xlu0 6
        %2429 = vperm.xlu0 %2428, %v2038
        %v2430 = vpop.permute.xlu0 %2429
        %2432 = vset.pattern.permute.xlu0 6
        %2433 = vperm.xlu0 %2432, %v2039
        %v2434 = vpop.permute.xlu0 %2433
        %2436 = vset.pattern.permute.xlu0 6
        %2437 = vperm.xlu0 %2436, %v2040
        %v2438 = vpop.permute.xlu0 %2437
        %2440 = vset.pattern.permute.xlu0 6
        %2441 = vperm.xlu0 %2440, %v2041
        %v2442 = vpop.permute.xlu0 %2441
        %2444 = vset.pattern.permute.xlu0 6
        %2445 = vperm.xlu0 %2444, %v2042
        %v2446 = vpop.permute.xlu0 %2445
        %2448 = vset.pattern.permute.xlu0 6
        %2449 = vperm.xlu0 %2448, %v2043
        %v2450 = vpop.permute.xlu0 %2449
        %v2452 = vmul.f32 %v2422, %v1877
        %v2453 = vmul.f32 %v2422, %v1879
        %v2454 = vmul.f32 %v2426, %v1883
        %v2455 = vmul.f32 %v2426, %v1885
        %v2456 = vmul.f32 %v2430, %v1889
        %v2457 = vmul.f32 %v2430, %v1891
        %v2458 = vmul.f32 %v2434, %v1895
        %v2459 = vmul.f32 %v2434, %v1897
        %v2460 = vmul.f32 %v2438, %v1901
        %v2461 = vmul.f32 %v2438, %v1903
        %v2462 = vmul.f32 %v2442, %v1907
        %v2463 = vmul.f32 %v2442, %v1909
        %v2464 = vmul.f32 %v2446, %v1913
        %v2465 = vmul.f32 %v2446, %v1915
        %v2466 = vmul.f32 %v2450, %v1919
        %v2467 = vmul.f32 %v2450, %v1921
        %v2468 = vadd.f32 %v2404, %v2452
        %v2469 = vadd.f32 %v2405, %v2453
        %v2470 = vadd.f32 %v2406, %v2454
        %v2471 = vadd.f32 %v2407, %v2455
        %v2472 = vadd.f32 %v2408, %v2456
        %v2473 = vadd.f32 %v2409, %v2457
        %v2474 = vadd.f32 %v2410, %v2458
        %v2475 = vadd.f32 %v2411, %v2459
        %v2476 = vadd.f32 %v2412, %v2460
        %v2477 = vadd.f32 %v2413, %v2461
        %v2478 = vadd.f32 %v2414, %v2462
        %v2479 = vadd.f32 %v2415, %v2463
        %v2480 = vadd.f32 %v2416, %v2464
        %v2481 = vadd.f32 %v2417, %v2465
        %v2482 = vadd.f32 %v2418, %v2466
        %v2483 = vadd.f32 %v2419, %v2467
        %2484 = vset.pattern.permute.xlu0 7
        %2485 = vperm.xlu0 %2484, %v2036
        %v2486 = vpop.permute.xlu0 %2485
        %2488 = vset.pattern.permute.xlu0 7
        %2489 = vperm.xlu0 %2488, %v2037
        %v2490 = vpop.permute.xlu0 %2489
        %2492 = vset.pattern.permute.xlu0 7
        %2493 = vperm.xlu0 %2492, %v2038
        %v2494 = vpop.permute.xlu0 %2493
        %2496 = vset.pattern.permute.xlu0 7
        %2497 = vperm.xlu0 %2496, %v2039
        %v2498 = vpop.permute.xlu0 %2497
        %2500 = vset.pattern.permute.xlu0 7
        %2501 = vperm.xlu0 %2500, %v2040
        %v2502 = vpop.permute.xlu0 %2501
        %2504 = vset.pattern.permute.xlu0 7
        %2505 = vperm.xlu0 %2504, %v2041
        %v2506 = vpop.permute.xlu0 %2505
        %2508 = vset.pattern.permute.xlu0 7
        %2509 = vperm.xlu0 %2508, %v2042
        %v2510 = vpop.permute.xlu0 %2509
        %2512 = vset.pattern.permute.xlu0 7
        %2513 = vperm.xlu0 %2512, %v2043
        %v2514 = vpop.permute.xlu0 %2513
        %v2516 = vmul.f32 %v2486, %v1990
        %v2517 = vmul.f32 %v2486, %v1992
        %v2518 = vmul.f32 %v2490, %v1996
        %v2519 = vmul.f32 %v2490, %v1998
        %v2520 = vmul.f32 %v2494, %v2002
        %v2521 = vmul.f32 %v2494, %v2004
        %v2522 = vmul.f32 %v2498, %v2008
        %v2523 = vmul.f32 %v2498, %v2010
        %v2524 = vmul.f32 %v2502, %v2014
        %v2525 = vmul.f32 %v2502, %v2016
        %v2526 = vmul.f32 %v2506, %v2020
        %v2527 = vmul.f32 %v2506, %v2022
        %v2528 = vmul.f32 %v2510, %v2026
        %v2529 = vmul.f32 %v2510, %v2028
        %v2530 = vmul.f32 %v2514, %v2032
        %v2531 = vmul.f32 %v2514, %v2034
        %v2532 = vadd.f32 %v2468, %v2516
        %v2533 = vadd.f32 %v2469, %v2517
        %v2534 = vadd.f32 %v2470, %v2518
        %v2535 = vadd.f32 %v2471, %v2519
        %v2536 = vadd.f32 %v2472, %v2520
        %v2537 = vadd.f32 %v2473, %v2521
        %v2538 = vadd.f32 %v2474, %v2522
        %v2539 = vadd.f32 %v2475, %v2523
        %v2540 = vadd.f32 %v2476, %v2524
        %v2541 = vadd.f32 %v2477, %v2525
        %v2542 = vadd.f32 %v2478, %v2526
        %v2543 = vadd.f32 %v2479, %v2527
        %v2544 = vadd.f32 %v2480, %v2528
        %v2545 = vadd.f32 %v2481, %v2529
        %v2546 = vadd.f32 %v2482, %v2530
        %v2547 = vadd.f32 %v2483, %v2531
        %v2548 = vld [vmem:[%s4] sm:$0xff]
        %v2549 = vld [vmem:[%s4 + $0x8] sm:$0xff]
        %v2550 = vld [vmem:[%s4 + $0x10] sm:$0xff]
        %v2551 = vld [vmem:[%s4 + $0x18] sm:$0xff]
        %v2552 = vld [vmem:[%s4 + $0x20] sm:$0xff]
        %v2553 = vld [vmem:[%s4 + $0x28] sm:$0xff]
        %v2554 = vld [vmem:[%s4 + $0x30] sm:$0xff]
        %v2555 = vld [vmem:[%s4 + $0x38] sm:$0xff]
        %2557 = vset.pattern.permute.xlu0 0
        %2558 = vperm.xlu0 %2557, %v2548
        %v2559 = vpop.permute.xlu0 %2558
        %2562 = vset.pattern.permute.xlu0 0
        %2563 = vperm.xlu0 %2562, %v2549
        %v2564 = vpop.permute.xlu0 %2563
        %2567 = vset.pattern.permute.xlu0 0
        %2568 = vperm.xlu0 %2567, %v2550
        %v2569 = vpop.permute.xlu0 %2568
        %2572 = vset.pattern.permute.xlu0 0
        %2573 = vperm.xlu0 %2572, %v2551
        %v2574 = vpop.permute.xlu0 %2573
        %2577 = vset.pattern.permute.xlu0 0
        %2578 = vperm.xlu0 %2577, %v2552
        %v2579 = vpop.permute.xlu0 %2578
        %2582 = vset.pattern.permute.xlu0 0
        %2583 = vperm.xlu0 %2582, %v2553
        %v2584 = vpop.permute.xlu0 %2583
        %2587 = vset.pattern.permute.xlu0 0
        %2588 = vperm.xlu0 %2587, %v2554
        %v2589 = vpop.permute.xlu0 %2588
        %2592 = vset.pattern.permute.xlu0 0
        %2593 = vperm.xlu0 %2592, %v2555
        %v2594 = vpop.permute.xlu0 %2593
        %v2596 = vadd.f32 %v2532, %v2559
        %v2597 = vadd.f32 %v2533, %v2559
        %v2598 = vadd.f32 %v2534, %v2564
        %v2599 = vadd.f32 %v2535, %v2564
        %v2600 = vadd.f32 %v2536, %v2569
        %v2601 = vadd.f32 %v2537, %v2569
        %v2602 = vadd.f32 %v2538, %v2574
        %v2603 = vadd.f32 %v2539, %v2574
        %v2604 = vadd.f32 %v2540, %v2579
        %v2605 = vadd.f32 %v2541, %v2579
        %v2606 = vadd.f32 %v2542, %v2584
        %v2607 = vadd.f32 %v2543, %v2584
        %v2608 = vadd.f32 %v2544, %v2589
        %v2609 = vadd.f32 %v2545, %v2589
        %v2610 = vadd.f32 %v2546, %v2594
        %v2611 = vadd.f32 %v2547, %v2594
        %vm2612 = vcmp.gt.f32.partialorder %v2596, 0.0
        %vm2613 = vcmp.gt.f32.partialorder %v2597, 0.0
        %vm2614 = vcmp.gt.f32.partialorder %v2598, 0.0
        %vm2615 = vcmp.gt.f32.partialorder %v2599, 0.0
        %vm2616 = vcmp.gt.f32.partialorder %v2600, 0.0
        %vm2617 = vcmp.gt.f32.partialorder %v2601, 0.0
        %vm2618 = vcmp.gt.f32.partialorder %v2602, 0.0
        %vm2619 = vcmp.gt.f32.partialorder %v2603, 0.0
        %vm2620 = vcmp.gt.f32.partialorder %v2604, 0.0
        %vm2621 = vcmp.gt.f32.partialorder %v2605, 0.0
        %vm2622 = vcmp.gt.f32.partialorder %v2606, 0.0
        %vm2623 = vcmp.gt.f32.partialorder %v2607, 0.0
        %vm2624 = vcmp.gt.f32.partialorder %v2608, 0.0
        %vm2625 = vcmp.gt.f32.partialorder %v2609, 0.0
        %vm2626 = vcmp.gt.f32.partialorder %v2610, 0.0
        %vm2627 = vcmp.gt.f32.partialorder %v2611, 0.0
        %v2628 = vmin.f32 %v2596, 0.0
        %v2629 = vmin.f32 %v2597, 0.0
        %v2630 = vmin.f32 %v2598, 0.0
        %v2631 = vmin.f32 %v2599, 0.0
        %v2632 = vmin.f32 %v2600, 0.0
        %v2633 = vmin.f32 %v2601, 0.0
        %v2634 = vmin.f32 %v2602, 0.0
        %v2635 = vmin.f32 %v2603, 0.0
        %v2636 = vmin.f32 %v2604, 0.0
        %v2637 = vmin.f32 %v2605, 0.0
        %v2638 = vmin.f32 %v2606, 0.0
        %v2639 = vmin.f32 %v2607, 0.0
        %v2640 = vmin.f32 %v2608, 0.0
        %v2641 = vmin.f32 %v2609, 0.0
        %v2642 = vmin.f32 %v2610, 0.0
        %v2643 = vmin.f32 %v2611, 0.0
        %v2644 = vmul.f32 %v2628, 1.442695
        %v2645 = vpow.pop %v2644
        %v2646 = vmul.f32 %v2629, 1.442695
        %v2647 = vpow.pop %v2646
        %v2648 = vmul.f32 %v2630, 1.442695
        %v2649 = vpow.pop %v2648
        %v2650 = vmul.f32 %v2631, 1.442695
        %v2651 = vpow.pop %v2650
        %v2652 = vmul.f32 %v2632, 1.442695
        %v2653 = vpow.pop %v2652
        %v2654 = vmul.f32 %v2633, 1.442695
        %v2655 = vpow.pop %v2654
        %v2656 = vmul.f32 %v2634, 1.442695
        %v2657 = vpow.pop %v2656
        %v2658 = vmul.f32 %v2635, 1.442695
        %v2659 = vpow.pop %v2658
        %v2660 = vmul.f32 %v2636, 1.442695
        %v2661 = vpow.pop %v2660
        %v2662 = vmul.f32 %v2637, 1.442695
        %v2663 = vpow.pop %v2662
        %v2664 = vmul.f32 %v2638, 1.442695
        %v2665 = vpow.pop %v2664
        %v2666 = vmul.f32 %v2639, 1.442695
        %v2667 = vpow.pop %v2666
        %v2668 = vmul.f32 %v2640, 1.442695
        %v2669 = vpow.pop %v2668
        %v2670 = vmul.f32 %v2641, 1.442695
        %v2671 = vpow.pop %v2670
        %v2672 = vmul.f32 %v2642, 1.442695
        %v2673 = vpow.pop %v2672
        %v2674 = vmul.f32 %v2643, 1.442695
        %v2675 = vpow.pop %v2674
        %v2676 = vsub.f32 %v2645, 1.0
        %v2677 = vsub.f32 %v2647, 1.0
        %v2678 = vsub.f32 %v2649, 1.0
        %v2679 = vsub.f32 %v2651, 1.0
        %v2680 = vsub.f32 %v2653, 1.0
        %v2681 = vsub.f32 %v2655, 1.0
        %v2682 = vsub.f32 %v2657, 1.0
        %v2683 = vsub.f32 %v2659, 1.0
        %v2684 = vsub.f32 %v2661, 1.0
        %v2685 = vsub.f32 %v2663, 1.0
        %v2686 = vsub.f32 %v2665, 1.0
        %v2687 = vsub.f32 %v2667, 1.0
        %v2688 = vsub.f32 %v2669, 1.0
        %v2689 = vsub.f32 %v2671, 1.0
        %v2690 = vsub.f32 %v2673, 1.0
        %v2691 = vsub.f32 %v2675, 1.0
        %v2692 = vsel %vm2612, %v2596, %v2676
        %v2693 = vsel %vm2613, %v2597, %v2677
        %v2694 = vsel %vm2614, %v2598, %v2678
        %v2695 = vsel %vm2615, %v2599, %v2679
        %v2696 = vsel %vm2616, %v2600, %v2680
        %v2697 = vsel %vm2617, %v2601, %v2681
        %v2698 = vsel %vm2618, %v2602, %v2682
        %v2699 = vsel %vm2619, %v2603, %v2683
        %v2700 = vsel %vm2620, %v2604, %v2684
        %v2701 = vsel %vm2621, %v2605, %v2685
        %v2702 = vsel %vm2622, %v2606, %v2686
        %v2703 = vsel %vm2623, %v2607, %v2687
        %v2704 = vsel %vm2624, %v2608, %v2688
        %v2705 = vsel %vm2625, %v2609, %v2689
        %v2706 = vsel %vm2626, %v2610, %v2690
        %v2707 = vsel %vm2627, %v2611, %v2691
        %v2708 = vld [vmem:[%s5] sm:$0xff]
        %v2709 = vld [vmem:[%s5 + $0x8] sm:$0xff]
        %v2710 = vld [vmem:[%s5 + $0x10] sm:$0xff]
        %v2711 = vld [vmem:[%s5 + $0x18] sm:$0xff]
        %v2712 = vld [vmem:[%s5 + $0x20] sm:$0xff]
        %v2713 = vld [vmem:[%s5 + $0x28] sm:$0xff]
        %v2714 = vld [vmem:[%s5 + $0x30] sm:$0xff]
        %v2715 = vld [vmem:[%s5 + $0x38] sm:$0xff]
        %v2716 = vld [vmem:[%s5 + $0x40] sm:$0xff]
        %v2717 = vld [vmem:[%s5 + $0x48] sm:$0xff]
        %v2718 = vld [vmem:[%s5 + $0x50] sm:$0xff]
        %v2719 = vld [vmem:[%s5 + $0x58] sm:$0xff]
        %v2720 = vld [vmem:[%s5 + $0x60] sm:$0xff]
        %v2721 = vld [vmem:[%s5 + $0x68] sm:$0xff]
        %v2722 = vld [vmem:[%s5 + $0x70] sm:$0xff]
        %v2723 = vld [vmem:[%s5 + $0x78] sm:$0xff]
        %v2724 = vld [vmem:[%s5 + $0x80] sm:$0xff]
        %v2725 = vld [vmem:[%s5 + $0x88] sm:$0xff]
        %v2726 = vld [vmem:[%s5 + $0x90] sm:$0xff]
        %v2727 = vld [vmem:[%s5 + $0x98] sm:$0xff]
        %v2728 = vld [vmem:[%s5 + $0xa0] sm:$0xff]
        %v2729 = vld [vmem:[%s5 + $0xa8] sm:$0xff]
        %v2730 = vld [vmem:[%s5 + $0xb0] sm:$0xff]
        %v2731 = vld [vmem:[%s5 + $0xb8] sm:$0xff]
        %v2732 = vld [vmem:[%s5 + $0xc0] sm:$0xff]
        %v2733 = vld [vmem:[%s5 + $0xc8] sm:$0xff]
        %v2734 = vld [vmem:[%s5 + $0xd0] sm:$0xff]
        %v2735 = vld [vmem:[%s5 + $0xd8] sm:$0xff]
        %v2736 = vld [vmem:[%s5 + $0xe0] sm:$0xff]
        %v2737 = vld [vmem:[%s5 + $0xe8] sm:$0xff]
        %v2738 = vld [vmem:[%s5 + $0xf0] sm:$0xff]
        %v2739 = vld [vmem:[%s5 + $0xf8] sm:$0xff]
        %2740 = vmatprep.subr.mxu0 0.0
        %2741 = vmatpush1.msra.mxu0 %v2708
        %2742 = vmatprep.subr.mxu0 0.0
        %2743 = vmatpush1.msra.mxu0 %v2709
        %2744 = vmatprep.subr.mxu0 0.0
        %2745 = vmatpush1.msra.mxu0 %v2710
        %2746 = vmatprep.subr.mxu0 0.0
        %2747 = vmatpush1.msra.mxu0 %v2711
        %2748 = vmatprep.subr.mxu0 0.0
        %2749 = vmatpush1.msra.mxu0 %v2712
        %2750 = vmatprep.subr.mxu0 0.0
        %2751 = vmatpush1.msra.mxu0 %v2713
        %2752 = vmatprep.subr.mxu0 0.0
        %2753 = vmatpush1.msra.mxu0 %v2714
        %2754 = vmatprep.subr.mxu0 0.0
        %2755 = vmatpush1.msra.mxu0 %v2715
        %2756 = vmatprep.subr.mxu0 0.0
        %2757 = vmatpush1.msra.mxu0 %v2716
        %2758 = vmatprep.subr.mxu0 0.0
        %2759 = vmatpush1.msra.mxu0 %v2717
        %2760 = vmatprep.subr.mxu0 0.0
        %2761 = vmatpush1.msra.mxu0 %v2718
        %2762 = vmatprep.subr.mxu0 0.0
        %2763 = vmatpush1.msra.mxu0 %v2719
        %2764 = vmatprep.subr.mxu0 0.0
        %2765 = vmatpush1.msra.mxu0 %v2720
        %2766 = vmatprep.subr.mxu0 0.0
        %2767 = vmatpush1.msra.mxu0 %v2721
        %2768 = vmatprep.subr.mxu0 0.0
        %2769 = vmatpush1.msra.mxu0 %v2722
        %2770 = vmatprep.subr.mxu0 0.0
        %2771 = vmatpush1.msra.mxu0 %v2723
        %2772 = vmatprep.subr.mxu0 0.0
        %2773 = vmatpush1.msra.mxu0 %v2724
        %2774 = vmatprep.subr.mxu0 0.0
        %2775 = vmatpush1.msra.mxu0 %v2725
        %2776 = vmatprep.subr.mxu0 0.0
        %2777 = vmatpush1.msra.mxu0 %v2726
        %2778 = vmatprep.subr.mxu0 0.0
        %2779 = vmatpush1.msra.mxu0 %v2727
        %2780 = vmatprep.subr.mxu0 0.0
        %2781 = vmatpush1.msra.mxu0 %v2728
        %2782 = vmatprep.subr.mxu0 0.0
        %2783 = vmatpush1.msra.mxu0 %v2729
        %2784 = vmatprep.subr.mxu0 0.0
        %2785 = vmatpush1.msra.mxu0 %v2730
        %2786 = vmatprep.subr.mxu0 0.0
        %2787 = vmatpush1.msra.mxu0 %v2731
        %2788 = vmatprep.subr.mxu0 0.0
        %2789 = vmatpush1.msra.mxu0 %v2732
        %2790 = vmatprep.subr.mxu0 0.0
        %2791 = vmatpush1.msra.mxu0 %v2733
        %2792 = vmatprep.subr.mxu0 0.0
        %2793 = vmatpush1.msra.mxu0 %v2734
        %2794 = vmatprep.subr.mxu0 0.0
        %2795 = vmatpush1.msra.mxu0 %v2735
        %2796 = vmatprep.subr.mxu0 0.0
        %2797 = vmatpush1.msra.mxu0 %v2736
        %2798 = vmatprep.subr.mxu0 0.0
        %2799 = vmatpush1.msra.mxu0 %v2737
        %2800 = vmatprep.subr.mxu0 0.0
        %2801 = vmatpush1.msra.mxu0 %v2738
        %2802 = vmatprep.subr.mxu0 0.0
        %2803 = vmatpush1.msra.mxu0 %v2739
        %2804 = vmatprep.mubr.f32.mxu0 %v2693
        %2805 = vmatmul.mubr.f32.gmra.mrb[0].mxu0 %v2692
        %v2806 = vpop.f32.mrb[0].mxu0
        %v2807 = vadd.f32 0.0, %v2806
        %v2808 = vpop.f32.mrb[0].mxu0
        %2809 = vmatprep.mubr.f32.mxu0 %v2695
        %2810 = vmatmul.mubr.f32.gmra.mrb[0].mxu0 %v2694
        %v2811 = vpop.f32.mrb[0].mxu0
        %v2812 = vadd.f32 0.0, %v2811
        %v2813 = vpop.f32.mrb[0].mxu0
        %2814 = vmatprep.mubr.f32.mxu0 %v2697
        %2815 = vmatmul.mubr.f32.gmra.mrb[0].mxu0 %v2696
        %v2816 = vpop.f32.mrb[0].mxu0
        %v2817 = vadd.f32 0.0, %v2816
        %v2818 = vpop.f32.mrb[0].mxu0
        %2819 = vmatprep.mubr.f32.mxu0 %v2699
        %2820 = vmatmul.mubr.f32.gmra.mrb[0].mxu0 %v2698
        %v2821 = vpop.f32.mrb[0].mxu0
        %v2822 = vadd.f32 0.0, %v2821
        %v2823 = vpop.f32.mrb[0].mxu0
        %2824 = vmatprep.mubr.f32.mxu0 %v2701
        %2825 = vmatmul.mubr.f32.gmra.mrb[0].mxu0 %v2700
        %v2826 = vpop.f32.mrb[0].mxu0
        %v2827 = vadd.f32 0.0, %v2826
        %v2828 = vpop.f32.mrb[0].mxu0
        %2829 = vmatprep.mubr.f32.mxu0 %v2703
        %2830 = vmatmul.mubr.f32.gmra.mrb[0].mxu0 %v2702
        %v2831 = vpop.f32.mrb[0].mxu0
        %v2832 = vadd.f32 0.0, %v2831
        %v2833 = vpop.f32.mrb[0].mxu0
        %2834 = vmatprep.mubr.f32.mxu0 %v2705
        %2835 = vmatmul.mubr.f32.gmra.mrb[0].mxu0 %v2704
        %v2836 = vpop.f32.mrb[0].mxu0
        %v2837 = vadd.f32 0.0, %v2836
        %v2838 = vpop.f32.mrb[0].mxu0
        %2839 = vmatprep.mubr.f32.mxu0 %v2707
        %2840 = vmatmul.mubr.f32.gmra.mrb[0].mxu0 %v2706
        %v2841 = vpop.f32.mrb[0].mxu0
        %v2842 = vadd.f32 0.0, %v2841
        %v2843 = vpop.f32.mrb[0].mxu0
        %2844 = vdwg.mxu0
        %2853 = vrot.lane.b32.xlu0 %v2807, 127
        %v2854 = vpop.permute.xlu0 %2853
        %2855 = vrot.lane.b32.xlu0 %v2812, 127
        %v2856 = vpop.permute.xlu0 %2855
        %2857 = vrot.lane.b32.xlu0 %v2817, 127
        %v2858 = vpop.permute.xlu0 %2857
        %2859 = vrot.lane.b32.xlu0 %v2822, 127
        %v2860 = vpop.permute.xlu0 %2859
        %2861 = vrot.lane.b32.xlu0 %v2827, 127
        %v2862 = vpop.permute.xlu0 %2861
        %2863 = vrot.lane.b32.xlu0 %v2832, 127
        %v2864 = vpop.permute.xlu0 %2863
        %2865 = vrot.lane.b32.xlu0 %v2837, 127
        %v2866 = vpop.permute.xlu0 %2865
        %2867 = vrot.lane.b32.xlu0 %v2842, 127
        %v2868 = vpop.permute.xlu0 %2867
        %2877 = vrot.lane.b32.xlu0 %v2807, 126
        %v2878 = vpop.permute.xlu0 %2877
        %2879 = vrot.lane.b32.xlu0 %v2812, 126
        %v2880 = vpop.permute.xlu0 %2879
        %2881 = vrot.lane.b32.xlu0 %v2817, 126
        %v2882 = vpop.permute.xlu0 %2881
        %2883 = vrot.lane.b32.xlu0 %v2822, 126
        %v2884 = vpop.permute.xlu0 %2883
        %2885 = vrot.lane.b32.xlu0 %v2827, 126
        %v2886 = vpop.permute.xlu0 %2885
        %2887 = vrot.lane.b32.xlu0 %v2832, 126
        %v2888 = vpop.permute.xlu0 %2887
        %2889 = vrot.lane.b32.xlu0 %v2837, 126
        %v2890 = vpop.permute.xlu0 %2889
        %2891 = vrot.lane.b32.xlu0 %v2842, 126
        %v2892 = vpop.permute.xlu0 %2891
        %2901 = vrot.lane.b32.xlu0 %v2807, 125
        %v2902 = vpop.permute.xlu0 %2901
        %2903 = vrot.lane.b32.xlu0 %v2812, 125
        %v2904 = vpop.permute.xlu0 %2903
        %2905 = vrot.lane.b32.xlu0 %v2817, 125
        %v2906 = vpop.permute.xlu0 %2905
        %2907 = vrot.lane.b32.xlu0 %v2822, 125
        %v2908 = vpop.permute.xlu0 %2907
        %2909 = vrot.lane.b32.xlu0 %v2827, 125
        %v2910 = vpop.permute.xlu0 %2909
        %2911 = vrot.lane.b32.xlu0 %v2832, 125
        %v2912 = vpop.permute.xlu0 %2911
        %2913 = vrot.lane.b32.xlu0 %v2837, 125
        %v2914 = vpop.permute.xlu0 %2913
        %2915 = vrot.lane.b32.xlu0 %v2842, 125
        %v2916 = vpop.permute.xlu0 %2915
        %2925 = vrot.lane.b32.xlu0 %v2807, 124
        %v2926 = vpop.permute.xlu0 %2925
        %2927 = vrot.lane.b32.xlu0 %v2812, 124
        %v2928 = vpop.permute.xlu0 %2927
        %2929 = vrot.lane.b32.xlu0 %v2817, 124
        %v2930 = vpop.permute.xlu0 %2929
        %2931 = vrot.lane.b32.xlu0 %v2822, 124
        %v2932 = vpop.permute.xlu0 %2931
        %2933 = vrot.lane.b32.xlu0 %v2827, 124
        %v2934 = vpop.permute.xlu0 %2933
        %2935 = vrot.lane.b32.xlu0 %v2832, 124
        %v2936 = vpop.permute.xlu0 %2935
        %2937 = vrot.lane.b32.xlu0 %v2837, 124
        %v2938 = vpop.permute.xlu0 %2937
        %2939 = vrot.lane.b32.xlu0 %v2842, 124
        %v2940 = vpop.permute.xlu0 %2939
        %2949 = vrot.lane.b32.xlu0 %v2807, 123
        %v2950 = vpop.permute.xlu0 %2949
        %2951 = vrot.lane.b32.xlu0 %v2812, 123
        %v2952 = vpop.permute.xlu0 %2951
        %2953 = vrot.lane.b32.xlu0 %v2817, 123
        %v2954 = vpop.permute.xlu0 %2953
        %2955 = vrot.lane.b32.xlu0 %v2822, 123
        %v2956 = vpop.permute.xlu0 %2955
        %2957 = vrot.lane.b32.xlu0 %v2827, 123
        %v2958 = vpop.permute.xlu0 %2957
        %2959 = vrot.lane.b32.xlu0 %v2832, 123
        %v2960 = vpop.permute.xlu0 %2959
        %2961 = vrot.lane.b32.xlu0 %v2837, 123
        %v2962 = vpop.permute.xlu0 %2961
        %2963 = vrot.lane.b32.xlu0 %v2842, 123
        %v2964 = vpop.permute.xlu0 %2963
        %2973 = vrot.lane.b32.xlu0 %v2807, 122
        %v2974 = vpop.permute.xlu0 %2973
        %2975 = vrot.lane.b32.xlu0 %v2812, 122
        %v2976 = vpop.permute.xlu0 %2975
        %2977 = vrot.lane.b32.xlu0 %v2817, 122
        %v2978 = vpop.permute.xlu0 %2977
        %2979 = vrot.lane.b32.xlu0 %v2822, 122
        %v2980 = vpop.permute.xlu0 %2979
        %2981 = vrot.lane.b32.xlu0 %v2827, 122
        %v2982 = vpop.permute.xlu0 %2981
        %2983 = vrot.lane.b32.xlu0 %v2832, 122
        %v2984 = vpop.permute.xlu0 %2983
        %2985 = vrot.lane.b32.xlu0 %v2837, 122
        %v2986 = vpop.permute.xlu0 %2985
        %2987 = vrot.lane.b32.xlu0 %v2842, 122
        %v2988 = vpop.permute.xlu0 %2987
        %2997 = vrot.lane.b32.xlu0 %v2807, 121
        %v2998 = vpop.permute.xlu0 %2997
        %2999 = vrot.lane.b32.xlu0 %v2812, 121
        %v3000 = vpop.permute.xlu0 %2999
        %3001 = vrot.lane.b32.xlu0 %v2817, 121
        %v3002 = vpop.permute.xlu0 %3001
        %3003 = vrot.lane.b32.xlu0 %v2822, 121
        %v3004 = vpop.permute.xlu0 %3003
        %3005 = vrot.lane.b32.xlu0 %v2827, 121
        %v3006 = vpop.permute.xlu0 %3005
        %3007 = vrot.lane.b32.xlu0 %v2832, 121
        %v3008 = vpop.permute.xlu0 %3007
        %3009 = vrot.lane.b32.xlu0 %v2837, 121
        %v3010 = vpop.permute.xlu0 %3009
        %3011 = vrot.lane.b32.xlu0 %v2842, 121
        %v3012 = vpop.permute.xlu0 %3011
        %3021 = vrot.lane.b32.xlu0 %v2807, 120
        %v3022 = vpop.permute.xlu0 %3021
        %3023 = vrot.lane.b32.xlu0 %v2812, 120
        %v3024 = vpop.permute.xlu0 %3023
        %3025 = vrot.lane.b32.xlu0 %v2817, 120
        %v3026 = vpop.permute.xlu0 %3025
        %3027 = vrot.lane.b32.xlu0 %v2822, 120
        %v3028 = vpop.permute.xlu0 %3027
        %3029 = vrot.lane.b32.xlu0 %v2827, 120
        %v3030 = vpop.permute.xlu0 %3029
        %3031 = vrot.lane.b32.xlu0 %v2832, 120
        %v3032 = vpop.permute.xlu0 %3031
        %3033 = vrot.lane.b32.xlu0 %v2837, 120
        %v3034 = vpop.permute.xlu0 %3033
        %3035 = vrot.lane.b32.xlu0 %v2842, 120
        %v3036 = vpop.permute.xlu0 %3035
        %3045 = vrot.lane.b32.xlu0 %v2807, 119
        %v3046 = vpop.permute.xlu0 %3045
        %3047 = vrot.lane.b32.xlu0 %v2812, 119
        %v3048 = vpop.permute.xlu0 %3047
        %3049 = vrot.lane.b32.xlu0 %v2817, 119
        %v3050 = vpop.permute.xlu0 %3049
        %3051 = vrot.lane.b32.xlu0 %v2822, 119
        %v3052 = vpop.permute.xlu0 %3051
        %3053 = vrot.lane.b32.xlu0 %v2827, 119
        %v3054 = vpop.permute.xlu0 %3053
        %3055 = vrot.lane.b32.xlu0 %v2832, 119
        %v3056 = vpop.permute.xlu0 %3055
        %3057 = vrot.lane.b32.xlu0 %v2837, 119
        %v3058 = vpop.permute.xlu0 %3057
        %3059 = vrot.lane.b32.xlu0 %v2842, 119
        %v3060 = vpop.permute.xlu0 %3059
        %3069 = vrot.lane.b32.xlu0 %v2807, 118
        %v3070 = vpop.permute.xlu0 %3069
        %3071 = vrot.lane.b32.xlu0 %v2812, 118
        %v3072 = vpop.permute.xlu0 %3071
        %3073 = vrot.lane.b32.xlu0 %v2817, 118
        %v3074 = vpop.permute.xlu0 %3073
        %3075 = vrot.lane.b32.xlu0 %v2822, 118
        %v3076 = vpop.permute.xlu0 %3075
        %3077 = vrot.lane.b32.xlu0 %v2827, 118
        %v3078 = vpop.permute.xlu0 %3077
        %3079 = vrot.lane.b32.xlu0 %v2832, 118
        %v3080 = vpop.permute.xlu0 %3079
        %3081 = vrot.lane.b32.xlu0 %v2837, 118
        %v3082 = vpop.permute.xlu0 %3081
        %3083 = vrot.lane.b32.xlu0 %v2842, 118
        %v3084 = vpop.permute.xlu0 %3083
        %3093 = vrot.lane.b32.xlu0 %v2807, 117
        %v3094 = vpop.permute.xlu0 %3093
        %3095 = vrot.lane.b32.xlu0 %v2812, 117
        %v3096 = vpop.permute.xlu0 %3095
        %3097 = vrot.lane.b32.xlu0 %v2817, 117
        %v3098 = vpop.permute.xlu0 %3097
        %3099 = vrot.lane.b32.xlu0 %v2822, 117
        %v3100 = vpop.permute.xlu0 %3099
        %3101 = vrot.lane.b32.xlu0 %v2827, 117
        %v3102 = vpop.permute.xlu0 %3101
        %3103 = vrot.lane.b32.xlu0 %v2832, 117
        %v3104 = vpop.permute.xlu0 %3103
        %3105 = vrot.lane.b32.xlu0 %v2837, 117
        %v3106 = vpop.permute.xlu0 %3105
        %3107 = vrot.lane.b32.xlu0 %v2842, 117
        %v3108 = vpop.permute.xlu0 %3107
        %3117 = vrot.lane.b32.xlu0 %v2807, 116
        %v3118 = vpop.permute.xlu0 %3117
        %3119 = vrot.lane.b32.xlu0 %v2812, 116
        %v3120 = vpop.permute.xlu0 %3119
        %3121 = vrot.lane.b32.xlu0 %v2817, 116
        %v3122 = vpop.permute.xlu0 %3121
        %3123 = vrot.lane.b32.xlu0 %v2822, 116
        %v3124 = vpop.permute.xlu0 %3123
        %3125 = vrot.lane.b32.xlu0 %v2827, 116
        %v3126 = vpop.permute.xlu0 %3125
        %3127 = vrot.lane.b32.xlu0 %v2832, 116
        %v3128 = vpop.permute.xlu0 %3127
        %3129 = vrot.lane.b32.xlu0 %v2837, 116
        %v3130 = vpop.permute.xlu0 %3129
        %3131 = vrot.lane.b32.xlu0 %v2842, 116
        %v3132 = vpop.permute.xlu0 %3131
        %3141 = vrot.lane.b32.xlu0 %v2807, 115
        %v3142 = vpop.permute.xlu0 %3141
        %3143 = vrot.lane.b32.xlu0 %v2812, 115
        %v3144 = vpop.permute.xlu0 %3143
        %3145 = vrot.lane.b32.xlu0 %v2817, 115
        %v3146 = vpop.permute.xlu0 %3145
        %3147 = vrot.lane.b32.xlu0 %v2822, 115
        %v3148 = vpop.permute.xlu0 %3147
        %3149 = vrot.lane.b32.xlu0 %v2827, 115
        %v3150 = vpop.permute.xlu0 %3149
        %3151 = vrot.lane.b32.xlu0 %v2832, 115
        %v3152 = vpop.permute.xlu0 %3151
        %3153 = vrot.lane.b32.xlu0 %v2837, 115
        %v3154 = vpop.permute.xlu0 %3153
        %3155 = vrot.lane.b32.xlu0 %v2842, 115
        %v3156 = vpop.permute.xlu0 %3155
        %3165 = vrot.lane.b32.xlu0 %v2807, 114
        %v3166 = vpop.permute.xlu0 %3165
        %3167 = vrot.lane.b32.xlu0 %v2812, 114
        %v3168 = vpop.permute.xlu0 %3167
        %3169 = vrot.lane.b32.xlu0 %v2817, 114
        %v3170 = vpop.permute.xlu0 %3169
        %3171 = vrot.lane.b32.xlu0 %v2822, 114
        %v3172 = vpop.permute.xlu0 %3171
        %3173 = vrot.lane.b32.xlu0 %v2827, 114
        %v3174 = vpop.permute.xlu0 %3173
        %3175 = vrot.lane.b32.xlu0 %v2832, 114
        %v3176 = vpop.permute.xlu0 %3175
        %3177 = vrot.lane.b32.xlu0 %v2837, 114
        %v3178 = vpop.permute.xlu0 %3177
        %3179 = vrot.lane.b32.xlu0 %v2842, 114
        %v3180 = vpop.permute.xlu0 %3179
        %3189 = vrot.lane.b32.xlu0 %v2807, 113
        %v3190 = vpop.permute.xlu0 %3189
        %3191 = vrot.lane.b32.xlu0 %v2812, 113
        %v3192 = vpop.permute.xlu0 %3191
        %3193 = vrot.lane.b32.xlu0 %v2817, 113
        %v3194 = vpop.permute.xlu0 %3193
        %3195 = vrot.lane.b32.xlu0 %v2822, 113
        %v3196 = vpop.permute.xlu0 %3195
        %3197 = vrot.lane.b32.xlu0 %v2827, 113
        %v3198 = vpop.permute.xlu0 %3197
        %3199 = vrot.lane.b32.xlu0 %v2832, 113
        %v3200 = vpop.permute.xlu0 %3199
        %3201 = vrot.lane.b32.xlu0 %v2837, 113
        %v3202 = vpop.permute.xlu0 %3201
        %3203 = vrot.lane.b32.xlu0 %v2842, 113
        %v3204 = vpop.permute.xlu0 %3203
        %v3213 = vld [vmem:[#allocation7] sm:$0xff]
        %v3214 = vld [vmem:[#allocation7 + $0x8] sm:$0xff]
        %v3215 = vld [vmem:[#allocation7 + $0x10] sm:$0xff]
        %v3216 = vld [vmem:[#allocation7 + $0x18] sm:$0xff]
        %v3217 = vld [vmem:[#allocation7 + $0x20] sm:$0xff]
        %v3218 = vld [vmem:[#allocation7 + $0x28] sm:$0xff]
        %v3219 = vld [vmem:[#allocation7 + $0x30] sm:$0xff]
        %v3220 = vld [vmem:[#allocation7 + $0x38] sm:$0xff]
        %v3221 = vld [vmem:[#allocation7 + $0x40] sm:$0xff]
        %v3222 = vld [vmem:[#allocation7 + $0x48] sm:$0xff]
        %v3223 = vld [vmem:[#allocation7 + $0x50] sm:$0xff]
        %v3224 = vld [vmem:[#allocation7 + $0x58] sm:$0xff]
        %v3225 = vld [vmem:[#allocation7 + $0x60] sm:$0xff]
        %v3226 = vld [vmem:[#allocation7 + $0x68] sm:$0xff]
        %v3227 = vld [vmem:[#allocation7 + $0x70] sm:$0xff]
        %v3228 = vld [vmem:[#allocation7 + $0x78] sm:$0xff]
        %v3229 = vld [vmem:[#allocation7 + $0x80] sm:$0xff]
        %v3230 = vld [vmem:[#allocation7 + $0x88] sm:$0xff]
        %v3231 = vld [vmem:[#allocation7 + $0x90] sm:$0xff]
        %v3232 = vld [vmem:[#allocation7 + $0x98] sm:$0xff]
        %v3233 = vld [vmem:[#allocation7 + $0xa0] sm:$0xff]
        %v3234 = vld [vmem:[#allocation7 + $0xa8] sm:$0xff]
        %v3235 = vld [vmem:[#allocation7 + $0xb0] sm:$0xff]
        %v3236 = vld [vmem:[#allocation7 + $0xb8] sm:$0xff]
        %v3237 = vld [vmem:[#allocation7 + $0xc0] sm:$0xff]
        %v3238 = vld [vmem:[#allocation7 + $0xc8] sm:$0xff]
        %v3239 = vld [vmem:[#allocation7 + $0xd0] sm:$0xff]
        %v3240 = vld [vmem:[#allocation7 + $0xd8] sm:$0xff]
        %v3241 = vld [vmem:[#allocation7 + $0xe0] sm:$0xff]
        %v3242 = vld [vmem:[#allocation7 + $0xe8] sm:$0xff]
        %v3243 = vld [vmem:[#allocation7 + $0xf0] sm:$0xff]
        %v3244 = vld [vmem:[#allocation7 + $0xf8] sm:$0xff]
        %v3245 = vld [vmem:[#allocation7 + $0x100] sm:$0xff]
        %v3246 = vld [vmem:[#allocation7 + $0x108] sm:$0xff]
        %v3247 = vld [vmem:[#allocation7 + $0x110] sm:$0xff]
        %v3248 = vld [vmem:[#allocation7 + $0x118] sm:$0xff]
        %v3249 = vld [vmem:[#allocation7 + $0x120] sm:$0xff]
        %v3250 = vld [vmem:[#allocation7 + $0x128] sm:$0xff]
        %v3251 = vld [vmem:[#allocation7 + $0x130] sm:$0xff]
        %v3252 = vld [vmem:[#allocation7 + $0x138] sm:$0xff]
        %v3253 = vld [vmem:[#allocation7 + $0x140] sm:$0xff]
        %v3254 = vld [vmem:[#allocation7 + $0x148] sm:$0xff]
        %v3255 = vld [vmem:[#allocation7 + $0x150] sm:$0xff]
        %v3256 = vld [vmem:[#allocation7 + $0x158] sm:$0xff]
        %v3257 = vld [vmem:[#allocation7 + $0x160] sm:$0xff]
        %v3258 = vld [vmem:[#allocation7 + $0x168] sm:$0xff]
        %v3259 = vld [vmem:[#allocation7 + $0x170] sm:$0xff]
        %v3260 = vld [vmem:[#allocation7 + $0x178] sm:$0xff]
        %v3261 = vld [vmem:[#allocation7 + $0x180] sm:$0xff]
        %v3262 = vld [vmem:[#allocation7 + $0x188] sm:$0xff]
        %v3263 = vld [vmem:[#allocation7 + $0x190] sm:$0xff]
        %v3264 = vld [vmem:[#allocation7 + $0x198] sm:$0xff]
        %v3265 = vld [vmem:[#allocation7 + $0x1a0] sm:$0xff]
        %v3266 = vld [vmem:[#allocation7 + $0x1a8] sm:$0xff]
        %v3267 = vld [vmem:[#allocation7 + $0x1b0] sm:$0xff]
        %v3268 = vld [vmem:[#allocation7 + $0x1b8] sm:$0xff]
        %v3269 = vld [vmem:[#allocation7 + $0x1c0] sm:$0xff]
        %v3270 = vld [vmem:[#allocation7 + $0x1c8] sm:$0xff]
        %v3271 = vld [vmem:[#allocation7 + $0x1d0] sm:$0xff]
        %v3272 = vld [vmem:[#allocation7 + $0x1d8] sm:$0xff]
        %v3273 = vld [vmem:[#allocation7 + $0x1e0] sm:$0xff]
        %v3274 = vld [vmem:[#allocation7 + $0x1e8] sm:$0xff]
        %v3275 = vld [vmem:[#allocation7 + $0x1f0] sm:$0xff]
        %v3276 = vld [vmem:[#allocation7 + $0x1f8] sm:$0xff]
        %3277 = vmatprep.subr.mxu0 0.0
        %3278 = vmatpush1.msra.mxu0 %v2807
        %3279 = vmatprep.subr.mxu0 0.0
        %3280 = vmatpush1.msra.mxu0 %v2812
        %3281 = vmatprep.subr.mxu0 0.0
        %3282 = vmatpush1.msra.mxu0 %v2817
        %3283 = vmatprep.subr.mxu0 0.0
        %3284 = vmatpush1.msra.mxu0 %v2822
        %3285 = vmatprep.subr.mxu0 0.0
        %3286 = vmatpush1.msra.mxu0 %v2827
        %3287 = vmatprep.subr.mxu0 0.0
        %3288 = vmatpush1.msra.mxu0 %v2832
        %3289 = vmatprep.subr.mxu0 0.0
        %3290 = vmatpush1.msra.mxu0 %v2837
        %3291 = vmatprep.subr.mxu0 0.0
        %3292 = vmatpush1.msra.mxu0 %v2842
        %3293 = vmatprep.subr.mxu0 0.0
        %3294 = vmatpush1.msra.mxu0 %v2854
        %3295 = vmatprep.subr.mxu0 0.0
        %3296 = vmatpush1.msra.mxu0 %v2856
        %3297 = vmatprep.subr.mxu0 0.0
        %3298 = vmatpush1.msra.mxu0 %v2858
        %3299 = vmatprep.subr.mxu0 0.0
        %3300 = vmatpush1.msra.mxu0 %v2860
        %3301 = vmatprep.subr.mxu0 0.0
        %3302 = vmatpush1.msra.mxu0 %v2862
        %3303 = vmatprep.subr.mxu0 0.0
        %3304 = vmatpush1.msra.mxu0 %v2864
        %3305 = vmatprep.subr.mxu0 0.0
        %3306 = vmatpush1.msra.mxu0 %v2866
        %3307 = vmatprep.subr.mxu0 0.0
        %3308 = vmatpush1.msra.mxu0 %v2868
        %3309 = vmatprep.subr.mxu0 0.0
        %3310 = vmatpush1.msra.mxu0 %v2878
        %3311 = vmatprep.subr.mxu0 0.0
        %3312 = vmatpush1.msra.mxu0 %v2880
        %3313 = vmatprep.subr.mxu0 0.0
        %3314 = vmatpush1.msra.mxu0 %v2882
        %3315 = vmatprep.subr.mxu0 0.0
        %3316 = vmatpush1.msra.mxu0 %v2884
        %3317 = vmatprep.subr.mxu0 0.0
        %3318 = vmatpush1.msra.mxu0 %v2886
        %3319 = vmatprep.subr.mxu0 0.0
        %3320 = vmatpush1.msra.mxu0 %v2888
        %3321 = vmatprep.subr.mxu0 0.0
        %3322 = vmatpush1.msra.mxu0 %v2890
        %3323 = vmatprep.subr.mxu0 0.0
        %3324 = vmatpush1.msra.mxu0 %v2892
        %3325 = vmatprep.subr.mxu0 0.0
        %3326 = vmatpush1.msra.mxu0 %v2902
        %3327 = vmatprep.subr.mxu0 0.0
        %3328 = vmatpush1.msra.mxu0 %v2904
        %3329 = vmatprep.subr.mxu0 0.0
        %3330 = vmatpush1.msra.mxu0 %v2906
        %3331 = vmatprep.subr.mxu0 0.0
        %3332 = vmatpush1.msra.mxu0 %v2908
        %3333 = vmatprep.subr.mxu0 0.0
        %3334 = vmatpush1.msra.mxu0 %v2910
        %3335 = vmatprep.subr.mxu0 0.0
        %3336 = vmatpush1.msra.mxu0 %v2912
        %3337 = vmatprep.subr.mxu0 0.0
        %3338 = vmatpush1.msra.mxu0 %v2914
        %3339 = vmatprep.subr.mxu0 0.0
        %3340 = vmatpush1.msra.mxu0 %v2916
        %3341 = vmatprep.mubr.f32.mxu0 %v3214
        %3342 = vmatmul.mubr.f32.gmra.mrb[0].mxu0 %v3213
        %v3343 = vpop.f32.mrb[0].mxu0
        %v3344 = vadd.f32 0.0, %v3343
        %v3345 = vpop.f32.mrb[0].mxu0
        %3346 = vmatprep.mubr.f32.mxu0 %v3222
        %3347 = vmatmul.mubr.f32.gmra.mrb[0].mxu0 %v3221
        %v3348 = vpop.f32.mrb[0].mxu0
        %v3349 = vadd.f32 0.0, %v3348
        %v3350 = vpop.f32.mrb[0].mxu0
        %3351 = vmatprep.mubr.f32.mxu0 %v3230
        %3352 = vmatmul.mubr.f32.gmra.mrb[0].mxu0 %v3229
        %v3353 = vpop.f32.mrb[0].mxu0
        %v3354 = vadd.f32 0.0, %v3353
        %v3355 = vpop.f32.mrb[0].mxu0
        %3356 = vmatprep.mubr.f32.mxu0 %v3238
        %3357 = vmatmul.mubr.f32.gmra.mrb[0].mxu0 %v3237
        %v3358 = vpop.f32.mrb[0].mxu0
        %v3359 = vadd.f32 0.0, %v3358
        %v3360 = vpop.f32.mrb[0].mxu0
        %3361 = vmatprep.mubr.f32.mxu0 %v3246
        %3362 = vmatmul.mubr.f32.gmra.mrb[0].mxu0 %v3245
        %v3363 = vpop.f32.mrb[0].mxu0
        %v3364 = vadd.f32 0.0, %v3363
        %v3365 = vpop.f32.mrb[0].mxu0
        %3366 = vmatprep.mubr.f32.mxu0 %v3254
        %3367 = vmatmul.mubr.f32.gmra.mrb[0].mxu0 %v3253
        %v3368 = vpop.f32.mrb[0].mxu0
        %v3369 = vadd.f32 0.0, %v3368
        %v3370 = vpop.f32.mrb[0].mxu0
        %3371 = vmatprep.mubr.f32.mxu0 %v3262
        %3372 = vmatmul.mubr.f32.gmra.mrb[0].mxu0 %v3261
        %v3373 = vpop.f32.mrb[0].mxu0
        %v3374 = vadd.f32 0.0, %v3373
        %v3375 = vpop.f32.mrb[0].mxu0
        %3376 = vmatprep.mubr.f32.mxu0 %v3270
        %3377 = vmatmul.mubr.f32.gmra.mrb[0].mxu0 %v3269
        %v3378 = vpop.f32.mrb[0].mxu0
        %v3379 = vadd.f32 0.0, %v3378
        %v3380 = vpop.f32.mrb[0].mxu0
        %3381 = vdwg.mxu0
        %3382 = vmatprep.subr.mxu0 0.0
        %3383 = vmatpush1.msra.mxu0 %v2926
        %3384 = vmatprep.subr.mxu0 0.0
        %3385 = vmatpush1.msra.mxu0 %v2928
        %3386 = vmatprep.subr.mxu0 0.0
        %3387 = vmatpush1.msra.mxu0 %v2930
        %3388 = vmatprep.subr.mxu0 0.0
        %3389 = vmatpush1.msra.mxu0 %v2932
        %3390 = vmatprep.subr.mxu0 0.0
        %3391 = vmatpush1.msra.mxu0 %v2934
        %3392 = vmatprep.subr.mxu0 0.0
        %3393 = vmatpush1.msra.mxu0 %v2936
        %3394 = vmatprep.subr.mxu0 0.0
        %3395 = vmatpush1.msra.mxu0 %v2938
        %3396 = vmatprep.subr.mxu0 0.0
        %3397 = vmatpush1.msra.mxu0 %v2940
        %3398 = vmatprep.subr.mxu0 0.0
        %3399 = vmatpush1.msra.mxu0 %v2950
        %3400 = vmatprep.subr.mxu0 0.0
        %3401 = vmatpush1.msra.mxu0 %v2952
        %3402 = vmatprep.subr.mxu0 0.0
        %3403 = vmatpush1.msra.mxu0 %v2954
        %3404 = vmatprep.subr.mxu0 0.0
        %3405 = vmatpush1.msra.mxu0 %v2956
        %3406 = vmatprep.subr.mxu0 0.0
        %3407 = vmatpush1.msra.mxu0 %v2958
        %3408 = vmatprep.subr.mxu0 0.0
        %3409 = vmatpush1.msra.mxu0 %v2960
        %3410 = vmatprep.subr.mxu0 0.0
        %3411 = vmatpush1.msra.mxu0 %v2962
        %3412 = vmatprep.subr.mxu0 0.0
        %3413 = vmatpush1.msra.mxu0 %v2964
        %3414 = vmatprep.subr.mxu0 0.0
        %3415 = vmatpush1.msra.mxu0 %v2974
        %3416 = vmatprep.subr.mxu0 0.0
        %3417 = vmatpush1.msra.mxu0 %v2976
        %3418 = vmatprep.subr.mxu0 0.0
        %3419 = vmatpush1.msra.mxu0 %v2978
        %3420 = vmatprep.subr.mxu0 0.0
        %3421 = vmatpush1.msra.mxu0 %v2980
        %3422 = vmatprep.subr.mxu0 0.0
        %3423 = vmatpush1.msra.mxu0 %v2982
        %3424 = vmatprep.subr.mxu0 0.0
        %3425 = vmatpush1.msra.mxu0 %v2984
        %3426 = vmatprep.subr.mxu0 0.0
        %3427 = vmatpush1.msra.mxu0 %v2986
        %3428 = vmatprep.subr.mxu0 0.0
        %3429 = vmatpush1.msra.mxu0 %v2988
        %3430 = vmatprep.subr.mxu0 0.0
        %3431 = vmatpush1.msra.mxu0 %v2998
        %3432 = vmatprep.subr.mxu0 0.0
        %3433 = vmatpush1.msra.mxu0 %v3000
        %3434 = vmatprep.subr.mxu0 0.0
        %3435 = vmatpush1.msra.mxu0 %v3002
        %3436 = vmatprep.subr.mxu0 0.0
        %3437 = vmatpush1.msra.mxu0 %v3004
        %3438 = vmatprep.subr.mxu0 0.0
        %3439 = vmatpush1.msra.mxu0 %v3006
        %3440 = vmatprep.subr.mxu0 0.0
        %3441 = vmatpush1.msra.mxu0 %v3008
        %3442 = vmatprep.subr.mxu0 0.0
        %3443 = vmatpush1.msra.mxu0 %v3010
        %3444 = vmatprep.subr.mxu0 0.0
        %3445 = vmatpush1.msra.mxu0 %v3012
        %3446 = vmatprep.mubr.f32.mxu0 %v3216
        %3447 = vmatmul.mubr.f32.gmra.mrb[0].mxu0 %v3215
        %v3448 = vpop.f32.mrb[0].mxu0
        %v3449 = vadd.f32 %v3344, %v3448
        %v3450 = vpop.f32.mrb[0].mxu0
        %3451 = vmatprep.mubr.f32.mxu0 %v3224
        %3452 = vmatmul.mubr.f32.gmra.mrb[0].mxu0 %v3223
        %v3453 = vpop.f32.mrb[0].mxu0
        %v3454 = vadd.f32 %v3349, %v3453
        %v3455 = vpop.f32.mrb[0].mxu0
        %3456 = vmatprep.mubr.f32.mxu0 %v3232
        %3457 = vmatmul.mubr.f32.gmra.mrb[0].mxu0 %v3231
        %v3458 = vpop.f32.mrb[0].mxu0
        %v3459 = vadd.f32 %v3354, %v3458
        %v3460 = vpop.f32.mrb[0].mxu0
        %3461 = vmatprep.mubr.f32.mxu0 %v3240
        %3462 = vmatmul.mubr.f32.gmra.mrb[0].mxu0 %v3239
        %v3463 = vpop.f32.mrb[0].mxu0
        %v3464 = vadd.f32 %v3359, %v3463
        %v3465 = vpop.f32.mrb[0].mxu0
        %3466 = vmatprep.mubr.f32.mxu0 %v3248
        %3467 = vmatmul.mubr.f32.gmra.mrb[0].mxu0 %v3247
        %v3468 = vpop.f32.mrb[0].mxu0
        %v3469 = vadd.f32 %v3364, %v3468
        %v3470 = vpop.f32.mrb[0].mxu0
        %3471 = vmatprep.mubr.f32.mxu0 %v3256
        %3472 = vmatmul.mubr.f32.gmra.mrb[0].mxu0 %v3255
        %v3473 = vpop.f32.mrb[0].mxu0
        %v3474 = vadd.f32 %v3369, %v3473
        %v3475 = vpop.f32.mrb[0].mxu0
        %3476 = vmatprep.mubr.f32.mxu0 %v3264
        %3477 = vmatmul.mubr.f32.gmra.mrb[0].mxu0 %v3263
        %v3478 = vpop.f32.mrb[0].mxu0
        %v3479 = vadd.f32 %v3374, %v3478
        %v3480 = vpop.f32.mrb[0].mxu0
        %3481 = vmatprep.mubr.f32.mxu0 %v3272
        %3482 = vmatmul.mubr.f32.gmra.mrb[0].mxu0 %v3271
        %v3483 = vpop.f32.mrb[0].mxu0
        %v3484 = vadd.f32 %v3379, %v3483
        %v3485 = vpop.f32.mrb[0].mxu0
        %3486 = vdwg.mxu0
        %3487 = vmatprep.subr.mxu0 0.0
        %3488 = vmatpush1.msra.mxu0 %v3022
        %3489 = vmatprep.subr.mxu0 0.0
        %3490 = vmatpush1.msra.mxu0 %v3024
        %3491 = vmatprep.subr.mxu0 0.0
        %3492 = vmatpush1.msra.mxu0 %v3026
        %3493 = vmatprep.subr.mxu0 0.0
        %3494 = vmatpush1.msra.mxu0 %v3028
        %3495 = vmatprep.subr.mxu0 0.0
        %3496 = vmatpush1.msra.mxu0 %v3030
        %3497 = vmatprep.subr.mxu0 0.0
        %3498 = vmatpush1.msra.mxu0 %v3032
        %3499 = vmatprep.subr.mxu0 0.0
        %3500 = vmatpush1.msra.mxu0 %v3034
        %3501 = vmatprep.subr.mxu0 0.0
        %3502 = vmatpush1.msra.mxu0 %v3036
        %3503 = vmatprep.subr.mxu0 0.0
        %3504 = vmatpush1.msra.mxu0 %v3046
        %3505 = vmatprep.subr.mxu0 0.0
        %3506 = vmatpush1.msra.mxu0 %v3048
        %3507 = vmatprep.subr.mxu0 0.0
        %3508 = vmatpush1.msra.mxu0 %v3050
        %3509 = vmatprep.subr.mxu0 0.0
        %3510 = vmatpush1.msra.mxu0 %v3052
        %3511 = vmatprep.subr.mxu0 0.0
        %3512 = vmatpush1.msra.mxu0 %v3054
        %3513 = vmatprep.subr.mxu0 0.0
        %3514 = vmatpush1.msra.mxu0 %v3056
        %3515 = vmatprep.subr.mxu0 0.0
        %3516 = vmatpush1.msra.mxu0 %v3058
        %3517 = vmatprep.subr.mxu0 0.0
        %3518 = vmatpush1.msra.mxu0 %v3060
        %3519 = vmatprep.subr.mxu0 0.0
        %3520 = vmatpush1.msra.mxu0 %v3070
        %3521 = vmatprep.subr.mxu0 0.0
        %3522 = vmatpush1.msra.mxu0 %v3072
        %3523 = vmatprep.subr.mxu0 0.0
        %3524 = vmatpush1.msra.mxu0 %v3074
        %3525 = vmatprep.subr.mxu0 0.0
        %3526 = vmatpush1.msra.mxu0 %v3076
        %3527 = vmatprep.subr.mxu0 0.0
        %3528 = vmatpush1.msra.mxu0 %v3078
        %3529 = vmatprep.subr.mxu0 0.0
        %3530 = vmatpush1.msra.mxu0 %v3080
        %3531 = vmatprep.subr.mxu0 0.0
        %3532 = vmatpush1.msra.mxu0 %v3082
        %3533 = vmatprep.subr.mxu0 0.0
        %3534 = vmatpush1.msra.mxu0 %v3084
        %3535 = vmatprep.subr.mxu0 0.0
        %3536 = vmatpush1.msra.mxu0 %v3094
        %3537 = vmatprep.subr.mxu0 0.0
        %3538 = vmatpush1.msra.mxu0 %v3096
        %3539 = vmatprep.subr.mxu0 0.0
        %3540 = vmatpush1.msra.mxu0 %v3098
        %3541 = vmatprep.subr.mxu0 0.0
        %3542 = vmatpush1.msra.mxu0 %v3100
        %3543 = vmatprep.subr.mxu0 0.0
        %3544 = vmatpush1.msra.mxu0 %v3102
        %3545 = vmatprep.subr.mxu0 0.0
        %3546 = vmatpush1.msra.mxu0 %v3104
        %3547 = vmatprep.subr.mxu0 0.0
        %3548 = vmatpush1.msra.mxu0 %v3106
        %3549 = vmatprep.subr.mxu0 0.0
        %3550 = vmatpush1.msra.mxu0 %v3108
        %3551 = vmatprep.mubr.f32.mxu0 %v3218
        %3552 = vmatmul.mubr.f32.gmra.mrb[0].mxu0 %v3217
        %v3553 = vpop.f32.mrb[0].mxu0
        %v3554 = vadd.f32 %v3449, %v3553
        %v3555 = vpop.f32.mrb[0].mxu0
        %3556 = vmatprep.mubr.f32.mxu0 %v3226
        %3557 = vmatmul.mubr.f32.gmra.mrb[0].mxu0 %v3225
        %v3558 = vpop.f32.mrb[0].mxu0
        %v3559 = vadd.f32 %v3454, %v3558
        %v3560 = vpop.f32.mrb[0].mxu0
        %3561 = vmatprep.mubr.f32.mxu0 %v3234
        %3562 = vmatmul.mubr.f32.gmra.mrb[0].mxu0 %v3233
        %v3563 = vpop.f32.mrb[0].mxu0
        %v3564 = vadd.f32 %v3459, %v3563
        %v3565 = vpop.f32.mrb[0].mxu0
        %3566 = vmatprep.mubr.f32.mxu0 %v3242
        %3567 = vmatmul.mubr.f32.gmra.mrb[0].mxu0 %v3241
        %v3568 = vpop.f32.mrb[0].mxu0
        %v3569 = vadd.f32 %v3464, %v3568
        %v3570 = vpop.f32.mrb[0].mxu0
        %3571 = vmatprep.mubr.f32.mxu0 %v3250
        %3572 = vmatmul.mubr.f32.gmra.mrb[0].mxu0 %v3249
        %v3573 = vpop.f32.mrb[0].mxu0
        %v3574 = vadd.f32 %v3469, %v3573
        %v3575 = vpop.f32.mrb[0].mxu0
        %3576 = vmatprep.mubr.f32.mxu0 %v3258
        %3577 = vmatmul.mubr.f32.gmra.mrb[0].mxu0 %v3257
        %v3578 = vpop.f32.mrb[0].mxu0
        %v3579 = vadd.f32 %v3474, %v3578
        %v3580 = vpop.f32.mrb[0].mxu0
        %3581 = vmatprep.mubr.f32.mxu0 %v3266
        %3582 = vmatmul.mubr.f32.gmra.mrb[0].mxu0 %v3265
        %v3583 = vpop.f32.mrb[0].mxu0
        %v3584 = vadd.f32 %v3479, %v3583
        %v3585 = vpop.f32.mrb[0].mxu0
        %3586 = vmatprep.mubr.f32.mxu0 %v3274
        %3587 = vmatmul.mubr.f32.gmra.mrb[0].mxu0 %v3273
        %v3588 = vpop.f32.mrb[0].mxu0
        %v3589 = vadd.f32 %v3484, %v3588
        %v3590 = vpop.f32.mrb[0].mxu0
        %3591 = vdwg.mxu0
        %3592 = vmatprep.subr.mxu0 0.0
        %3593 = vmatpush1.msra.mxu0 %v3118
        %3594 = vmatprep.subr.mxu0 0.0
        %3595 = vmatpush1.msra.mxu0 %v3120
        %3596 = vmatprep.subr.mxu0 0.0
        %3597 = vmatpush1.msra.mxu0 %v3122
        %3598 = vmatprep.subr.mxu0 0.0
        %3599 = vmatpush1.msra.mxu0 %v3124
        %3600 = vmatprep.subr.mxu0 0.0
        %3601 = vmatpush1.msra.mxu0 %v3126
        %3602 = vmatprep.subr.mxu0 0.0
        %3603 = vmatpush1.msra.mxu0 %v3128
        %3604 = vmatprep.subr.mxu0 0.0
        %3605 = vmatpush1.msra.mxu0 %v3130
        %3606 = vmatprep.subr.mxu0 0.0
        %3607 = vmatpush1.msra.mxu0 %v3132
        %3608 = vmatprep.subr.mxu0 0.0
        %3609 = vmatpush1.msra.mxu0 %v3142
        %3610 = vmatprep.subr.mxu0 0.0
        %3611 = vmatpush1.msra.mxu0 %v3144
        %3612 = vmatprep.subr.mxu0 0.0
        %3613 = vmatpush1.msra.mxu0 %v3146
        %3614 = vmatprep.subr.mxu0 0.0
        %3615 = vmatpush1.msra.mxu0 %v3148
        %3616 = vmatprep.subr.mxu0 0.0
        %3617 = vmatpush1.msra.mxu0 %v3150
        %3618 = vmatprep.subr.mxu0 0.0
        %3619 = vmatpush1.msra.mxu0 %v3152
        %3620 = vmatprep.subr.mxu0 0.0
        %3621 = vmatpush1.msra.mxu0 %v3154
        %3622 = vmatprep.subr.mxu0 0.0
        %3623 = vmatpush1.msra.mxu0 %v3156
        %3624 = vmatprep.subr.mxu0 0.0
        %3625 = vmatpush1.msra.mxu0 %v3166
        %3626 = vmatprep.subr.mxu0 0.0
        %3627 = vmatpush1.msra.mxu0 %v3168
        %3628 = vmatprep.subr.mxu0 0.0
        %3629 = vmatpush1.msra.mxu0 %v3170
        %3630 = vmatprep.subr.mxu0 0.0
        %3631 = vmatpush1.msra.mxu0 %v3172
        %3632 = vmatprep.subr.mxu0 0.0
        %3633 = vmatpush1.msra.mxu0 %v3174
        %3634 = vmatprep.subr.mxu0 0.0
        %3635 = vmatpush1.msra.mxu0 %v3176
        %3636 = vmatprep.subr.mxu0 0.0
        %3637 = vmatpush1.msra.mxu0 %v3178
        %3638 = vmatprep.subr.mxu0 0.0
        %3639 = vmatpush1.msra.mxu0 %v3180
        %3640 = vmatprep.subr.mxu0 0.0
        %3641 = vmatpush1.msra.mxu0 %v3190
        %3642 = vmatprep.subr.mxu0 0.0
        %3643 = vmatpush1.msra.mxu0 %v3192
        %3644 = vmatprep.subr.mxu0 0.0
        %3645 = vmatpush1.msra.mxu0 %v3194
        %3646 = vmatprep.subr.mxu0 0.0
        %3647 = vmatpush1.msra.mxu0 %v3196
        %3648 = vmatprep.subr.mxu0 0.0
        %3649 = vmatpush1.msra.mxu0 %v3198
        %3650 = vmatprep.subr.mxu0 0.0
        %3651 = vmatpush1.msra.mxu0 %v3200
        %3652 = vmatprep.subr.mxu0 0.0
        %3653 = vmatpush1.msra.mxu0 %v3202
        %3654 = vmatprep.subr.mxu0 0.0
        %3655 = vmatpush1.msra.mxu0 %v3204
        %3656 = vmatprep.mubr.f32.mxu0 %v3220
        %3657 = vmatmul.mubr.f32.gmra.mrb[0].mxu0 %v3219
        %v3658 = vpop.f32.mrb[0].mxu0
        %v3659 = vadd.f32 %v3554, %v3658
        %v3660 = vpop.f32.mrb[0].mxu0
        %3661 = vmatprep.mubr.f32.mxu0 %v3228
        %3662 = vmatmul.mubr.f32.gmra.mrb[0].mxu0 %v3227
        %v3663 = vpop.f32.mrb[0].mxu0
        %v3664 = vadd.f32 %v3559, %v3663
        %v3665 = vpop.f32.mrb[0].mxu0
        %3666 = vmatprep.mubr.f32.mxu0 %v3236
        %3667 = vmatmul.mubr.f32.gmra.mrb[0].mxu0 %v3235
        %v3668 = vpop.f32.mrb[0].mxu0
        %v3669 = vadd.f32 %v3564, %v3668
        %v3670 = vpop.f32.mrb[0].mxu0
        %3671 = vmatprep.mubr.f32.mxu0 %v3244
        %3672 = vmatmul.mubr.f32.gmra.mrb[0].mxu0 %v3243
        %v3673 = vpop.f32.mrb[0].mxu0
        %v3674 = vadd.f32 %v3569, %v3673
        %v3675 = vpop.f32.mrb[0].mxu0
        %3676 = vmatprep.mubr.f32.mxu0 %v3252
        %3677 = vmatmul.mubr.f32.gmra.mrb[0].mxu0 %v3251
        %v3678 = vpop.f32.mrb[0].mxu0
        %v3679 = vadd.f32 %v3574, %v3678
        %v3680 = vpop.f32.mrb[0].mxu0
        %3681 = vmatprep.mubr.f32.mxu0 %v3260
        %3682 = vmatmul.mubr.f32.gmra.mrb[0].mxu0 %v3259
        %v3683 = vpop.f32.mrb[0].mxu0
        %v3684 = vadd.f32 %v3579, %v3683
        %v3685 = vpop.f32.mrb[0].mxu0
        %3686 = vmatprep.mubr.f32.mxu0 %v3268
        %3687 = vmatmul.mubr.f32.gmra.mrb[0].mxu0 %v3267
        %v3688 = vpop.f32.mrb[0].mxu0
        %v3689 = vadd.f32 %v3584, %v3688
        %v3690 = vpop.f32.mrb[0].mxu0
        %3691 = vmatprep.mubr.f32.mxu0 %v3276
        %3692 = vmatmul.mubr.f32.gmra.mrb[0].mxu0 %v3275
        %v3693 = vpop.f32.mrb[0].mxu0
        %v3694 = vadd.f32 %v3589, %v3693
        %v3695 = vpop.f32.mrb[0].mxu0
        %3696 = vdwg.mxu0
        %v3697 = vld [vmem:[%s7] sm:$0xff]
        %v3698 = vld [vmem:[%s7 + $0x8] sm:$0xff]
        %v3699 = vld [vmem:[%s7 + $0x10] sm:$0xff]
        %v3700 = vld [vmem:[%s7 + $0x18] sm:$0xff]
        %v3701 = vld [vmem:[%s7 + $0x20] sm:$0xff]
        %v3702 = vld [vmem:[%s7 + $0x28] sm:$0xff]
        %v3703 = vld [vmem:[%s7 + $0x30] sm:$0xff]
        %v3704 = vld [vmem:[%s7 + $0x38] sm:$0xff]
        %3706 = vset.pattern.permute.xlu0 0
        %3707 = vperm.xlu0 %3706, %v3697
        %v3708 = vpop.permute.xlu0 %3707
        %3711 = vset.pattern.permute.xlu0 0
        %3712 = vperm.xlu0 %3711, %v3698
        %v3713 = vpop.permute.xlu0 %3712
        %3716 = vset.pattern.permute.xlu0 0
        %3717 = vperm.xlu0 %3716, %v3699
        %v3718 = vpop.permute.xlu0 %3717
        %3721 = vset.pattern.permute.xlu0 0
        %3722 = vperm.xlu0 %3721, %v3700
        %v3723 = vpop.permute.xlu0 %3722
        %3726 = vset.pattern.permute.xlu0 0
        %3727 = vperm.xlu0 %3726, %v3701
        %v3728 = vpop.permute.xlu0 %3727
        %3731 = vset.pattern.permute.xlu0 0
        %3732 = vperm.xlu0 %3731, %v3702
        %v3733 = vpop.permute.xlu0 %3732
        %3736 = vset.pattern.permute.xlu0 0
        %3737 = vperm.xlu0 %3736, %v3703
        %v3738 = vpop.permute.xlu0 %3737
        %3741 = vset.pattern.permute.xlu0 0
        %3742 = vperm.xlu0 %3741, %v3704
        %v3743 = vpop.permute.xlu0 %3742
        %v3745 = vmul.f32 %v3659, %v3708
        %v3746 = vmul.f32 %v3664, %v3713
        %v3747 = vmul.f32 %v3669, %v3718
        %v3748 = vmul.f32 %v3674, %v3723
        %v3749 = vmul.f32 %v3679, %v3728
        %v3750 = vmul.f32 %v3684, %v3733
        %v3751 = vmul.f32 %v3689, %v3738
        %v3752 = vmul.f32 %v3694, %v3743
        %v3753 = vld [vmem:[%s8] sm:$0xff]
        %v3754 = vld [vmem:[%s8 + $0x8] sm:$0xff]
        %v3755 = vld [vmem:[%s8 + $0x10] sm:$0xff]
        %v3756 = vld [vmem:[%s8 + $0x18] sm:$0xff]
        %v3757 = vld [vmem:[%s8 + $0x20] sm:$0xff]
        %v3758 = vld [vmem:[%s8 + $0x28] sm:$0xff]
        %v3759 = vld [vmem:[%s8 + $0x30] sm:$0xff]
        %v3760 = vld [vmem:[%s8 + $0x38] sm:$0xff]
        %3762 = vset.pattern.permute.xlu0 0
        %3763 = vperm.xlu0 %3762, %v3753
        %v3764 = vpop.permute.xlu0 %3763
        %3767 = vset.pattern.permute.xlu0 0
        %3768 = vperm.xlu0 %3767, %v3754
        %v3769 = vpop.permute.xlu0 %3768
        %3772 = vset.pattern.permute.xlu0 0
        %3773 = vperm.xlu0 %3772, %v3755
        %v3774 = vpop.permute.xlu0 %3773
        %3777 = vset.pattern.permute.xlu0 0
        %3778 = vperm.xlu0 %3777, %v3756
        %v3779 = vpop.permute.xlu0 %3778
        %3782 = vset.pattern.permute.xlu0 0
        %3783 = vperm.xlu0 %3782, %v3757
        %v3784 = vpop.permute.xlu0 %3783
        %3787 = vset.pattern.permute.xlu0 0
        %3788 = vperm.xlu0 %3787, %v3758
        %v3789 = vpop.permute.xlu0 %3788
        %3792 = vset.pattern.permute.xlu0 0
        %3793 = vperm.xlu0 %3792, %v3759
        %v3794 = vpop.permute.xlu0 %3793
        %3797 = vset.pattern.permute.xlu0 0
        %3798 = vperm.xlu0 %3797, %v3760
        %v3799 = vpop.permute.xlu0 %3798
        %v3801 = vadd.f32 %v3745, %v3764
        %v3802 = vadd.f32 %v3746, %v3769
        %v3803 = vadd.f32 %v3747, %v3774
        %v3804 = vadd.f32 %v3748, %v3779
        %v3805 = vadd.f32 %v3749, %v3784
        %v3806 = vadd.f32 %v3750, %v3789
        %v3807 = vadd.f32 %v3751, %v3794
        %v3808 = vadd.f32 %v3752, %v3799
        %vm3809 = vcmp.gt.f32.partialorder %v3801, 0.0
        %vm3810 = vcmp.gt.f32.partialorder %v3802, 0.0
        %vm3811 = vcmp.gt.f32.partialorder %v3803, 0.0
        %vm3812 = vcmp.gt.f32.partialorder %v3804, 0.0
        %vm3813 = vcmp.gt.f32.partialorder %v3805, 0.0
        %vm3814 = vcmp.gt.f32.partialorder %v3806, 0.0
        %vm3815 = vcmp.gt.f32.partialorder %v3807, 0.0
        %vm3816 = vcmp.gt.f32.partialorder %v3808, 0.0
        %v3817 = vmin.f32 %v3801, 0.0
        %v3818 = vmin.f32 %v3802, 0.0
        %v3819 = vmin.f32 %v3803, 0.0
        %v3820 = vmin.f32 %v3804, 0.0
        %v3821 = vmin.f32 %v3805, 0.0
        %v3822 = vmin.f32 %v3806, 0.0
        %v3823 = vmin.f32 %v3807, 0.0
        %v3824 = vmin.f32 %v3808, 0.0
        %v3825 = vmul.f32 %v3817, 1.442695
        %v3826 = vpow.pop %v3825
        %v3827 = vmul.f32 %v3818, 1.442695
        %v3828 = vpow.pop %v3827
        %v3829 = vmul.f32 %v3819, 1.442695
        %v3830 = vpow.pop %v3829
        %v3831 = vmul.f32 %v3820, 1.442695
        %v3832 = vpow.pop %v3831
        %v3833 = vmul.f32 %v3821, 1.442695
        %v3834 = vpow.pop %v3833
        %v3835 = vmul.f32 %v3822, 1.442695
        %v3836 = vpow.pop %v3835
        %v3837 = vmul.f32 %v3823, 1.442695
        %v3838 = vpow.pop %v3837
        %v3839 = vmul.f32 %v3824, 1.442695
        %v3840 = vpow.pop %v3839
        %v3841 = vsub.f32 %v3826, 1.0
        %v3842 = vsub.f32 %v3828, 1.0
        %v3843 = vsub.f32 %v3830, 1.0
        %v3844 = vsub.f32 %v3832, 1.0
        %v3845 = vsub.f32 %v3834, 1.0
        %v3846 = vsub.f32 %v3836, 1.0
        %v3847 = vsub.f32 %v3838, 1.0
        %v3848 = vsub.f32 %v3840, 1.0
        %v3849 = vsel %vm3809, %v3801, %v3841
        %v3850 = vsel %vm3810, %v3802, %v3842
        %v3851 = vsel %vm3811, %v3803, %v3843
        %v3852 = vsel %vm3812, %v3804, %v3844
        %v3853 = vsel %vm3813, %v3805, %v3845
        %v3854 = vsel %vm3814, %v3806, %v3846
        %v3855 = vsel %vm3815, %v3807, %v3847
        %v3856 = vsel %vm3816, %v3808, %v3848
        %v3857 = vld [vmem:[#allocation8] sm:$0xff]
        %v3858 = vld [vmem:[#allocation8 + $0x8] sm:$0xff]
        %v3859 = vld [vmem:[#allocation8 + $0x10] sm:$0xff]
        %v3860 = vld [vmem:[#allocation8 + $0x18] sm:$0xff]
        %v3861 = vld [vmem:[#allocation8 + $0x20] sm:$0x1]
        %vm3862 = vcmask 269312
        %v3864 = vsel %vm3862, %v3849, 0
        %v3867 = vsel %vm3862, %v3850, 0
        %v3870 = vsel %vm3862, %v3851, 0
        %v3873 = vsel %vm3862, %v3852, 0
        %v3876 = vsel %vm3862, %v3853, 0
        %v3879 = vsel %vm3862, %v3854, 0
        %v3882 = vsel %vm3862, %v3855, 0
        %v3885 = vsel %vm3862, %v3856, 0
        %vm3887 = vcmask 1040384
        %v3889 = vsel %vm3887, %v3861, 0
        %3891 = vmatprep.subr.mxu0 0.0
        %3892 = vmatpush1.msra.mxu0 %v3857
        %3893 = vmatprep.subr.mxu0 0.0
        %3894 = vmatpush1.msra.mxu0 %v3858
        %3895 = vmatprep.subr.mxu0 0.0
        %3896 = vmatpush1.msra.mxu0 %v3859
        %3897 = vmatprep.subr.mxu0 0.0
        %3898 = vmatpush1.msra.mxu0 %v3860
        %3899 = vmatprep.subr.mxu0 0.0
        %3900 = vmatpush1.msra.mxu0 %v3889
        %3901 = vmatprep.subr.mxu0 0.0
        %3902 = vmatpush1.msra.mxu0 0.0
        %3903 = vmatprep.subr.mxu0 0.0
        %3904 = vmatpush1.msra.mxu0 0.0
        %3905 = vmatprep.subr.mxu0 0.0
        %3906 = vmatpush1.msra.mxu0 0.0
        %3907 = vmatprep.subr.mxu0 0.0
        %3908 = vmatpush1.msra.mxu0 0.0
        %3909 = vmatprep.subr.mxu0 0.0
        %3910 = vmatpush1.msra.mxu0 0.0
        %3911 = vmatprep.subr.mxu0 0.0
        %3912 = vmatpush1.msra.mxu0 0.0
        %3913 = vmatprep.subr.mxu0 0.0
        %3914 = vmatpush1.msra.mxu0 0.0
        %3915 = vmatprep.subr.mxu0 0.0
        %3916 = vmatpush1.msra.mxu0 0.0
        %3917 = vmatprep.subr.mxu0 0.0
        %3918 = vmatpush1.msra.mxu0 0.0
        %3919 = vmatprep.subr.mxu0 0.0
        %3920 = vmatpush1.msra.mxu0 0.0
        %3921 = vmatprep.subr.mxu0 0.0
        %3922 = vmatpush1.msra.mxu0 0.0
        %3923 = vmatprep.subr.mxu0 0.0
        %3924 = vmatpush1.msra.mxu0 0.0
        %3925 = vmatprep.subr.mxu0 0.0
        %3926 = vmatpush1.msra.mxu0 0.0
        %3927 = vmatprep.subr.mxu0 0.0
        %3928 = vmatpush1.msra.mxu0 0.0
        %3929 = vmatprep.subr.mxu0 0.0
        %3930 = vmatpush1.msra.mxu0 0.0
        %3931 = vmatprep.subr.mxu0 0.0
        %3932 = vmatpush1.msra.mxu0 0.0
        %3933 = vmatprep.subr.mxu0 0.0
        %3934 = vmatpush1.msra.mxu0 0.0
        %3935 = vmatprep.subr.mxu0 0.0
        %3936 = vmatpush1.msra.mxu0 0.0
        %3937 = vmatprep.subr.mxu0 0.0
        %3938 = vmatpush1.msra.mxu0 0.0
        %3939 = vmatprep.subr.mxu0 0.0
        %3940 = vmatpush1.msra.mxu0 0.0
        %3941 = vmatprep.subr.mxu0 0.0
        %3942 = vmatpush1.msra.mxu0 0.0
        %3943 = vmatprep.subr.mxu0 0.0
        %3944 = vmatpush1.msra.mxu0 0.0
        %3945 = vmatprep.subr.mxu0 0.0
        %3946 = vmatpush1.msra.mxu0 0.0
        %3947 = vmatprep.subr.mxu0 0.0
        %3948 = vmatpush1.msra.mxu0 0.0
        %3949 = vmatprep.subr.mxu0 0.0
        %3950 = vmatpush1.msra.mxu0 0.0
        %3951 = vmatprep.subr.mxu0 0.0
        %3952 = vmatpush1.msra.mxu0 0.0
        %3953 = vmatprep.subr.mxu0 0.0
        %3954 = vmatpush1.msra.mxu0 0.0
        %3955 = vmatprep.mubr.f32.mxu0 0.0
        %3956 = vmatmul.mubr.f32.gmra.mrb[0].mxu0 %v3864
        %v3957 = vpop.f32.mrb[0].mxu0
        %v3958 = vadd.f32 0.0, %v3957
        %v3959 = vpop.f32.mrb[0].mxu0
        %3960 = vmatprep.mubr.f32.mxu0 0.0
        %3961 = vmatmul.mubr.f32.gmra.mrb[0].mxu0 %v3867
        %v3962 = vpop.f32.mrb[0].mxu0
        %v3963 = vadd.f32 0.0, %v3962
        %v3964 = vpop.f32.mrb[0].mxu0
        %3965 = vmatprep.mubr.f32.mxu0 0.0
        %3966 = vmatmul.mubr.f32.gmra.mrb[0].mxu0 %v3870
        %v3967 = vpop.f32.mrb[0].mxu0
        %v3968 = vadd.f32 0.0, %v3967
        %v3969 = vpop.f32.mrb[0].mxu0
        %3970 = vmatprep.mubr.f32.mxu0 0.0
        %3971 = vmatmul.mubr.f32.gmra.mrb[0].mxu0 %v3873
        %v3972 = vpop.f32.mrb[0].mxu0
        %v3973 = vadd.f32 0.0, %v3972
        %v3974 = vpop.f32.mrb[0].mxu0
        %3975 = vmatprep.mubr.f32.mxu0 0.0
        %3976 = vmatmul.mubr.f32.gmra.mrb[0].mxu0 %v3876
        %v3977 = vpop.f32.mrb[0].mxu0
        %v3978 = vadd.f32 0.0, %v3977
        %v3979 = vpop.f32.mrb[0].mxu0
        %3980 = vmatprep.mubr.f32.mxu0 0.0
        %3981 = vmatmul.mubr.f32.gmra.mrb[0].mxu0 %v3879
        %v3982 = vpop.f32.mrb[0].mxu0
        %v3983 = vadd.f32 0.0, %v3982
        %v3984 = vpop.f32.mrb[0].mxu0
        %3985 = vmatprep.mubr.f32.mxu0 0.0
        %3986 = vmatmul.mubr.f32.gmra.mrb[0].mxu0 %v3882
        %v3987 = vpop.f32.mrb[0].mxu0
        %v3988 = vadd.f32 0.0, %v3987
        %v3989 = vpop.f32.mrb[0].mxu0
        %3990 = vmatprep.mubr.f32.mxu0 0.0
        %3991 = vmatmul.mubr.f32.gmra.mrb[0].mxu0 %v3885
        %v3992 = vpop.f32.mrb[0].mxu0
        %v3993 = vadd.f32 0.0, %v3992
        %v3994 = vpop.f32.mrb[0].mxu0
        %3995 = vdwg.mxu0
        %v3996 = vld [vmem:[#allocation10] sm:$0xff]
        %v3997 = vld [vmem:[#allocation10 + $0x8] sm:$0xff]
        %v3998 = vld [vmem:[#allocation10 + $0x10] sm:$0xff]
        %v3999 = vld [vmem:[#allocation10 + $0x18] sm:$0xff]
        %v4000 = vld [vmem:[#allocation10 + $0x20] sm:$0xff]
        %v4001 = vld [vmem:[#allocation10 + $0x28] sm:$0xff]
        %v4002 = vld [vmem:[#allocation10 + $0x30] sm:$0xff]
        %v4003 = vld [vmem:[#allocation10 + $0x38] sm:$0xff]
        %v4004 = vmul.f32 %v3958, %v3996
        %v4005 = vmul.f32 %v3963, %v3997
        %v4006 = vmul.f32 %v3968, %v3998
        %v4007 = vmul.f32 %v3973, %v3999
        %v4008 = vmul.f32 %v3978, %v4000
        %v4009 = vmul.f32 %v3983, %v4001
        %v4010 = vmul.f32 %v3988, %v4002
        %v4011 = vmul.f32 %v3993, %v4003
        %v4012 = vld [vmem:[%s11] sm:$0xff]
        %v4013 = vld [vmem:[%s11 + $0x8] sm:$0xff]
        %v4014 = vld [vmem:[%s11 + $0x10] sm:$0xff]
        %v4015 = vld [vmem:[%s11 + $0x18] sm:$0xff]
        %v4016 = vld [vmem:[%s11 + $0x20] sm:$0xff]
        %v4017 = vld [vmem:[%s11 + $0x28] sm:$0xff]
        %v4018 = vld [vmem:[%s11 + $0x30] sm:$0xff]
        %v4019 = vld [vmem:[%s11 + $0x38] sm:$0xff]
        %v4021 = vsel %vm1107, %v4004, 0
        %v4024 = vsel %vm1107, %v4005, 0
        %v4027 = vsel %vm1107, %v4006, 0
        %v4030 = vsel %vm1107, %v4007, 0
        %v4033 = vsel %vm1107, %v4008, 0
        %v4036 = vsel %vm1107, %v4009, 0
        %v4039 = vsel %vm1107, %v4010, 0
        %v4042 = vsel %vm1107, %v4011, 0
        %4044 = vmatprep.subr.mxu0 0.0
        %4045 = vmatpush1.msra.mxu0 %v4012
        %4046 = vmatprep.subr.mxu0 0.0
        %4047 = vmatpush1.msra.mxu0 %v4013
        %4048 = vmatprep.subr.mxu0 0.0
        %4049 = vmatpush1.msra.mxu0 %v4014
        %4050 = vmatprep.subr.mxu0 0.0
        %4051 = vmatpush1.msra.mxu0 %v4015
        %4052 = vmatprep.subr.mxu0 0.0
        %4053 = vmatpush1.msra.mxu0 %v4016
        %4054 = vmatprep.subr.mxu0 0.0
        %4055 = vmatpush1.msra.mxu0 %v4017
        %4056 = vmatprep.subr.mxu0 0.0
        %4057 = vmatpush1.msra.mxu0 %v4018
        %4058 = vmatprep.subr.mxu0 0.0
        %4059 = vmatpush1.msra.mxu0 %v4019
        %4060 = vmatprep.subr.mxu0 0.0
        %4061 = vmatpush1.msra.mxu0 0.0
        %4062 = vmatprep.subr.mxu0 0.0
        %4063 = vmatpush1.msra.mxu0 0.0
        %4064 = vmatprep.subr.mxu0 0.0
        %4065 = vmatpush1.msra.mxu0 0.0
        %4066 = vmatprep.subr.mxu0 0.0
        %4067 = vmatpush1.msra.mxu0 0.0
        %4068 = vmatprep.subr.mxu0 0.0
        %4069 = vmatpush1.msra.mxu0 0.0
        %4070 = vmatprep.subr.mxu0 0.0
        %4071 = vmatpush1.msra.mxu0 0.0
        %4072 = vmatprep.subr.mxu0 0.0
        %4073 = vmatpush1.msra.mxu0 0.0
        %4074 = vmatprep.subr.mxu0 0.0
        %4075 = vmatpush1.msra.mxu0 0.0
        %4076 = vmatprep.subr.mxu0 0.0
        %4077 = vmatpush1.msra.mxu0 0.0
        %4078 = vmatprep.subr.mxu0 0.0
        %4079 = vmatpush1.msra.mxu0 0.0
        %4080 = vmatprep.subr.mxu0 0.0
        %4081 = vmatpush1.msra.mxu0 0.0
        %4082 = vmatprep.subr.mxu0 0.0
        %4083 = vmatpush1.msra.mxu0 0.0
        %4084 = vmatprep.subr.mxu0 0.0
        %4085 = vmatpush1.msra.mxu0 0.0
        %4086 = vmatprep.subr.mxu0 0.0
        %4087 = vmatpush1.msra.mxu0 0.0
        %4088 = vmatprep.subr.mxu0 0.0
        %4089 = vmatpush1.msra.mxu0 0.0
        %4090 = vmatprep.subr.mxu0 0.0
        %4091 = vmatpush1.msra.mxu0 0.0
        %4092 = vmatprep.subr.mxu0 0.0
        %4093 = vmatpush1.msra.mxu0 0.0
        %4094 = vmatprep.subr.mxu0 0.0
        %4095 = vmatpush1.msra.mxu0 0.0
        %4096 = vmatprep.subr.mxu0 0.0
        %4097 = vmatpush1.msra.mxu0 0.0
        %4098 = vmatprep.subr.mxu0 0.0
        %4099 = vmatpush1.msra.mxu0 0.0
        %4100 = vmatprep.subr.mxu0 0.0
        %4101 = vmatpush1.msra.mxu0 0.0
        %4102 = vmatprep.subr.mxu0 0.0
        %4103 = vmatpush1.msra.mxu0 0.0
        %4104 = vmatprep.subr.mxu0 0.0
        %4105 = vmatpush1.msra.mxu0 0.0
        %4106 = vmatprep.subr.mxu0 0.0
        %4107 = vmatpush1.msra.mxu0 0.0
        %4108 = vmatprep.mubr.f32.mxu0 0.0
        %4109 = vmatmul.mubr.f32.gmra.mrb[0].mxu0 %v4021
        %v4110 = vpop.f32.mrb[0].mxu0
        %v4111 = vadd.f32 0.0, %v4110
        %v4112 = vpop.f32.mrb[0].mxu0
        %4113 = vmatprep.mubr.f32.mxu0 0.0
        %4114 = vmatmul.mubr.f32.gmra.mrb[0].mxu0 %v4024
        %v4115 = vpop.f32.mrb[0].mxu0
        %v4116 = vadd.f32 0.0, %v4115
        %v4117 = vpop.f32.mrb[0].mxu0
        %4118 = vmatprep.mubr.f32.mxu0 0.0
        %4119 = vmatmul.mubr.f32.gmra.mrb[0].mxu0 %v4027
        %v4120 = vpop.f32.mrb[0].mxu0
        %v4121 = vadd.f32 0.0, %v4120
        %v4122 = vpop.f32.mrb[0].mxu0
        %4123 = vmatprep.mubr.f32.mxu0 0.0
        %4124 = vmatmul.mubr.f32.gmra.mrb[0].mxu0 %v4030
        %v4125 = vpop.f32.mrb[0].mxu0
        %v4126 = vadd.f32 0.0, %v4125
        %v4127 = vpop.f32.mrb[0].mxu0
        %4128 = vmatprep.mubr.f32.mxu0 0.0
        %4129 = vmatmul.mubr.f32.gmra.mrb[0].mxu0 %v4033
        %v4130 = vpop.f32.mrb[0].mxu0
        %v4131 = vadd.f32 0.0, %v4130
        %v4132 = vpop.f32.mrb[0].mxu0
        %4133 = vmatprep.mubr.f32.mxu0 0.0
        %4134 = vmatmul.mubr.f32.gmra.mrb[0].mxu0 %v4036
        %v4135 = vpop.f32.mrb[0].mxu0
        %v4136 = vadd.f32 0.0, %v4135
        %v4137 = vpop.f32.mrb[0].mxu0
        %4138 = vmatprep.mubr.f32.mxu0 0.0
        %4139 = vmatmul.mubr.f32.gmra.mrb[0].mxu0 %v4039
        %v4140 = vpop.f32.mrb[0].mxu0
        %v4141 = vadd.f32 0.0, %v4140
        %v4142 = vpop.f32.mrb[0].mxu0
        %4143 = vmatprep.mubr.f32.mxu0 0.0
        %4144 = vmatmul.mubr.f32.gmra.mrb[0].mxu0 %v4042
        %v4145 = vpop.f32.mrb[0].mxu0
        %v4146 = vadd.f32 0.0, %v4145
        %v4147 = vpop.f32.mrb[0].mxu0
        %4148 = vdwg.mxu0
        %v4149 = vld [vmem:[#allocation11] sm:$0xf]
        %v4150 = vld [vmem:[#allocation13] sm:$0x1]
        %v4152 = vlaneseq
        %v4153 = vshrl.u32 %v4152, 7
        %v4154 = vsub.s32 0, %v4153
        %v4155 = vrot.slane %v4150, %v4154
        %v4158 = vsel %vm1107, %v4149, 0
        %4160 = vmatprep.subr.mxu0 0.0
        %4161 = vmatpush1.msra.mxu0 %v4111
        %4162 = vmatprep.subr.mxu0 0.0
        %4163 = vmatpush1.msra.mxu0 %v4116
        %4164 = vmatprep.subr.mxu0 0.0
        %4165 = vmatpush1.msra.mxu0 %v4121
        %4166 = vmatprep.subr.mxu0 0.0
        %4167 = vmatpush1.msra.mxu0 %v4126
        %4168 = vmatprep.subr.mxu0 0.0
        %4169 = vmatpush1.msra.mxu0 %v4131
        %4170 = vmatprep.subr.mxu0 0.0
        %4171 = vmatpush1.msra.mxu0 %v4136
        %4172 = vmatprep.subr.mxu0 0.0
        %4173 = vmatpush1.msra.mxu0 %v4141
        %4174 = vmatprep.subr.mxu0 0.0
        %4175 = vmatpush1.msra.mxu0 %v4146
        %4176 = vmatprep.subr.mxu0 0.0
        %4177 = vmatpush1.msra.mxu0 0.0
        %4178 = vmatprep.subr.mxu0 0.0
        %4179 = vmatpush1.msra.mxu0 0.0
        %4180 = vmatprep.subr.mxu0 0.0
        %4181 = vmatpush1.msra.mxu0 0.0
        %4182 = vmatprep.subr.mxu0 0.0
        %4183 = vmatpush1.msra.mxu0 0.0
        %4184 = vmatprep.subr.mxu0 0.0
        %4185 = vmatpush1.msra.mxu0 0.0
        %4186 = vmatprep.subr.mxu0 0.0
        %4187 = vmatpush1.msra.mxu0 0.0
        %4188 = vmatprep.subr.mxu0 0.0
        %4189 = vmatpush1.msra.mxu0 0.0
        %4190 = vmatprep.subr.mxu0 0.0
        %4191 = vmatpush1.msra.mxu0 0.0
        %4192 = vmatprep.subr.mxu0 0.0
        %4193 = vmatpush1.msra.mxu0 0.0
        %4194 = vmatprep.subr.mxu0 0.0
        %4195 = vmatpush1.msra.mxu0 0.0
        %4196 = vmatprep.subr.mxu0 0.0
        %4197 = vmatpush1.msra.mxu0 0.0
        %4198 = vmatprep.subr.mxu0 0.0
        %4199 = vmatpush1.msra.mxu0 0.0
        %4200 = vmatprep.subr.mxu0 0.0
        %4201 = vmatpush1.msra.mxu0 0.0
        %4202 = vmatprep.subr.mxu0 0.0
        %4203 = vmatpush1.msra.mxu0 0.0
        %4204 = vmatprep.subr.mxu0 0.0
        %4205 = vmatpush1.msra.mxu0 0.0
        %4206 = vmatprep.subr.mxu0 0.0
        %4207 = vmatpush1.msra.mxu0 0.0
        %4208 = vmatprep.subr.mxu0 0.0
        %4209 = vmatpush1.msra.mxu0 0.0
        %4210 = vmatprep.subr.mxu0 0.0
        %4211 = vmatpush1.msra.mxu0 0.0
        %4212 = vmatprep.subr.mxu0 0.0
        %4213 = vmatpush1.msra.mxu0 0.0
        %4214 = vmatprep.subr.mxu0 0.0
        %4215 = vmatpush1.msra.mxu0 0.0
        %4216 = vmatprep.subr.mxu0 0.0
        %4217 = vmatpush1.msra.mxu0 0.0
        %4218 = vmatprep.subr.mxu0 0.0
        %4219 = vmatpush1.msra.mxu0 0.0
        %4220 = vmatprep.subr.mxu0 0.0
        %4221 = vmatpush1.msra.mxu0 0.0
        %4222 = vmatprep.subr.mxu0 0.0
        %4223 = vmatpush1.msra.mxu0 0.0
        %4224 = vmatprep.mubr.f32.mxu0 0.0
        %4225 = vmatmul.mubr.f32.gmra.mrb[0].mxu0 %v4158
        %v4226 = vpop.f32.mrb[0].mxu0
        %v4227 = vadd.f32 %v4155, %v4226
        %v4228 = vpop.f32.mrb[0].mxu0
        %4229 = vdwg.mxu0
        %vm4230 = vcmask 27648
        %4231 = vst.msk [vmem:[%s568] sm:$0xf] %vm4230, %v4227
        %s4232 = sand.u32 %s341, 1
        %s4233 = scalar_lea.sflag [#allocation4], %s4232
        %s4234 = sand.u32 %s341, 1
        %s4235 = smul.addr %s4234, 4
        %s4236 = scalar_lea.vmem [#allocation14], %s4235
        // Predicated region
        $region105: #{tpu_custom_call.1} parent=75 // pred_check
          %p4237 = pneg %p351
        $region106: #{tpu_custom_call.1} parent=75 // pred_check_branch
          %4239 = sbr.rel (%p4237) target = $region108
        $region107: #{tpu_custom_call.1} parent=75 // pred_region
          %s4241 = ssub.s32 64, 64
          %4242 = vsyncadd %s4233, %s4241
          %s4243 = smul.addr %s34, 64
          %s4244 = scalar_lea.hbm %s14, %s4243
          %s4246 = sshll.u32 %s4236, 4
          %s4247 = int_to_ptr.vmem [resolvable:$true] %s4246
          %4249 = dma.vmem_to_hbm [thread:$0]  %s4247, 64, %s4244, %s4233
        $region108: #{tpu_custom_call.1} parent=75 // pred_fallthru
          _
      $region76: #{tpu_custom_call.1} parent=5 // pred_fallthru
        _
      %p4250 = scmp.le.s32.totalorder 2, %s29
      // Predicated region
      $region109: #{tpu_custom_call.1} parent=5 // pred_check
        %p4251 = pneg %p4250
      $region110: #{tpu_custom_call.1} parent=5 // pred_check_branch
        %4253 = sbr.rel (%p4251) target = $region112
      $region111: #{tpu_custom_call.1} parent=5 // pred_region
        %s4254 = ssub.s32 %s29, 2
        // Predicated region
        $region113: #{tpu_custom_call.1} parent=111 // pred_check
          %p4255 = pneg %p357
        $region114: #{tpu_custom_call.1} parent=111 // pred_check_branch
          %4257 = sbr.rel (%p4255) target = $region116
        $region115: #{tpu_custom_call.1} parent=111 // pred_region
          %s4258 = sand.u32 %s342, 1
          %s4259 = scalar_lea.sflag [#allocation4], %s4258
          %s4260 = sand.u32 %s342, 1
          %s4261 = smul.addr %s4260, 4
          %s4262 = scalar_lea.vmem [#allocation14], %s4261
          %4263 = dma.done %s4259, 64
        $region116: #{tpu_custom_call.1} parent=111 // pred_fallthru
          _
      $region112: #{tpu_custom_call.1} parent=5 // pred_fallthru
        _
    $region6: #{tpu_custom_call.1} parent=1 // loop_footer
      %s33 = sadd.s32 1, %s29
    $region7: #{tpu_custom_call.1} parent=1 // loop_footer_branch
      %28 = sbr.rel target = $region3
    $region8: #{tpu_custom_call.1} parent=1 // loop_exit
      _
    %4264 = vsyncpa [#allocation3], 1
    %s4265 = scalar_lea.sflag [#allocation3], 1
    %4266 = vsyncpa %s4265, 1
    %4267 = vsyncpa [#allocation6], 1
    %4268 = vsyncpa [#allocation9], 1
    %4269 = vsyncpa [#allocation12], 1
    %4270 = vsyncpa [#allocation4], 1
    %s4271 = scalar_lea.sflag [#allocation4], 1
    %4272 = vsyncpa %s4271, 1

</llo_original>
